<compile_context>
chip_gen: v7x
topology: tpu7x:2x2x1
jax: 0.10.0
libtpu: 0.0.40
codegen_flags: <defaults>
</compile_context>

<pallas_src>
import functools

import numpy as np

import jax
import jax.numpy as jnp
from jax.experimental import pallas as pl
from jax.experimental.pallas import tpu as pltpu


def _round_up(x, m):
    return (x + m - 1) // m * m


# ---------------------------------------------------------------------------
# Kernel
# ---------------------------------------------------------------------------
def _pointconv_kernel(tile_ref, first_ref, last_ref,       # SMEM (num_chunks,) i32 (scalar prefetch)
                      edge_ref,                            # (TE, D+1) f32: [diff..., col_local]
                      basis2_ref, phase_ref,               # (D, 2F) f32, (1, 2F) f32
                      wd_ref, wsc_ref, bl_ref,             # (D,Hp) cdt, (2F,Hp) cdt, (1,Hp) f32
                      wg_ref, bg_ref,                      # (Hp,Gp) cdt, (1,Gp) f32
                      out_ref,                             # (TN, Gp) f32 -- this dst tile's rows
                      win_ref,                             # VMEM scratch (TN, Hp) f32
                      *, dim, node_tile):
    del tile_ref                                           # only used by the out index_map
    step = pl.program_id(0)
    cdt = wd_ref.dtype                                     # MXU operand dtype
    sdt = jnp.bfloat16 if cdt == jnp.bfloat16 else jnp.float32   # scatter-max dtype

    # First chunk of a destination tile -> reset the running segment-max window.
    # 0 is a valid identity because local_nn ends in ReLU (h >= 0), which also
    # matches torch_scatter's empty-segment fill of 0.
    @pl.when(first_ref[step] == 1)
    def _():
        win_ref[...] = jnp.zeros_like(win_ref)

    diff = edge_ref[:, 0:dim]                              # (TE, D) f32
    local = edge_ref[:, dim:dim + 1]                       # (TE, 1) f32 in [0,TN) or -1 (pad)

    # Basis projection on the VPU (K = D is tiny).  basis2 = [basis | basis] and
    # phase = [0.. | pi/2..] so a single jnp.sin yields [sin(emb) | cos(emb)].
    emb = phase_ref[...] + diff[:, 0:1] * basis2_ref[0:1, :]
    for k in range(1, dim):
        emb = emb + diff[:, k:k + 1] * basis2_ref[k:k + 1, :]
    sc = jnp.sin(emb)                                      # (TE, 2F) f32

    # local_nn Linear(D+2F, H) + ReLU: two MXU pushes into one f32 accumulator
    # (no lane concat; operands optionally bf16, accumulation always f32).
    h = (jnp.dot(diff.astype(cdt), wd_ref[...], preferred_element_type=jnp.float32)
         + jnp.dot(sc.astype(cdt), wsc_ref[...], preferred_element_type=jnp.float32)
         + bl_ref[...])
    h = jnp.maximum(h, 0.0).astype(sdt)                    # (TE, Hp), h >= 0

    # Windowed scatter-max: every chunk touches a single node tile; padded edge
    # slots carry col_local == -1 and never match any n.  Row maxima go straight
    # into the window scratch rows (no sublane-concat relayout).  The window
    # itself stays f32: it is a single (TN, Hp) tile, so bf16 saves nothing there.
    zero = jnp.zeros((), sdt)
    for n in range(node_tile):                             # static unroll, TN small
        rmax = jnp.max(jnp.where(local == float(n), h, zero), axis=0, keepdims=True)
        win_ref[pl.ds(n, 1), :] = jnp.maximum(win_ref[pl.ds(n, 1), :], rmax)

    # Last chunk of this tile -> apply global_nn to the (TN, Hp) window and emit
    # this tile's output block.  Empty tiles get exactly one all-padding chunk,
    # so they still produce the bias row (reference semantics).
    @pl.when(last_ref[step] == 1)
    def _():
        out_ref[...] = (jnp.dot(win_ref[...].astype(cdt), wg_ref[...],
                                preferred_element_type=jnp.float32)
                        + bg_ref[...])


# ---------------------------------------------------------------------------
# Host-side graph preprocessing (cached on the graph structure)
# ---------------------------------------------------------------------------
_GRAPH_CACHE = {}


def _prepare_graph(row, col, edge_tile, node_tile):
    """Sort edges by destination and bucket them into fixed-size chunks, each chunk
    touching a single node_tile-wide destination window.  Requires concrete
    (non-traced) edge_index; result is cached per graph structure."""
    key = (row.tobytes(), col.tobytes(), edge_tile, node_tile)
    hit = _GRAPH_CACHE.get(key)
    if hit is not None:
        return hit

    E = int(row.shape[0])
    n_dst = int(col.max()) + 1                  # matches `col.max().item() + 1`
    TN = node_tile

    order = np.argsort(col, kind="stable")
    row_s, col_s = row[order], col[order]

    n_tiles = -(-n_dst // TN)
    tile_of_edge = col_s // TN
    counts = np.bincount(tile_of_edge, minlength=n_tiles)

    # Padding-aware edge tile: size chunks to the typical per-tile edge count so
    # low-degree graphs don't burn VALU work on dead zero-padded slots.
    if edge_tile is None:
        nz = counts[counts > 0]
        med = int(np.median(nz)) if nz.size else 1
        TE = int(np.clip(_round_up(max(med, 1), 64), 64, 512))
    else:
        TE = int(edge_tile)
    assert TE % 8 == 0

    chunks_per_tile = np.maximum(-(-counts // TE), 1)   # >= 1: empty tiles emit bias
    num_chunks = int(chunks_per_tile.sum())
    chunk_off = np.concatenate([[0], np.cumsum(chunks_per_tile)])[:-1]
    tile_start = np.concatenate([[0], np.cumsum(counts)])[:-1]

    # Slot layout: chunk c is TE contiguous edge slots, all destined to tile chunk_tile[c].
    p = np.arange(E) - tile_start[tile_of_edge]          # rank of edge within its tile
    slot = (chunk_off[tile_of_edge] + p // TE) * TE + (p % TE)
    S = num_chunks * TE
    slot_edge = np.full(S, -1, np.int64)
    slot_edge[slot] = np.arange(E)
    valid = slot_edge >= 0
    src = np.where(valid, slot_edge, 0)

    chunk_tile = np.repeat(np.arange(n_tiles), chunks_per_tile).astype(np.int32)
    chunk_first = np.zeros(num_chunks, np.int32)
    chunk_first[chunk_off] = 1
    chunk_last = np.zeros(num_chunks, np.int32)
    chunk_last[chunk_off + chunks_per_tile - 1] = 1

    base = np.repeat(chunk_tile.astype(np.int64) * TN, TE)
    row_slot = row_s[src].astype(np.int32)
    col_slot = col_s[src].astype(np.int32)
    col_local = np.where(valid, col_s[src] - base, -1).astype(np.float32)

    out = dict(TE=TE, n_dst=n_dst, n_tiles=n_tiles, num_chunks=num_chunks,
               chunk_tile=chunk_tile, chunk_first=chunk_first, chunk_last=chunk_last,
               row_slot=row_slot, col_slot=col_slot, col_local=col_local,
               valid=valid.astype(np.float32))
    _GRAPH_CACHE[key] = out
    return out


# ---------------------------------------------------------------------------
# Wrapper
# ---------------------------------------------------------------------------
def pointconv_pallas(pos, pos_dst, edge_index, basis, wl_t, bl, wg_t, bg,
                     *, edge_tile=None, node_tile=8, compute_dtype=jnp.float32):
    """pos: (N_src, D), pos_dst: (>=col.max()+1, D), edge_index: (2, E) int (concrete),
    basis: (D, F), wl_t: (D+2F, H), bl: (1, H), wg_t: (H, G), bg: (1, G).
    Returns (col.max()+1, G) float32.

    compute_dtype=jnp.bfloat16 uses bf16 MXU operands AND a bf16 scatter-max
    (f32 accumulation everywhere) -- recommended on v6e / v7x, keep f32 on v5e."""
    assert node_tile % 8 == 0
    row = np.asarray(edge_index[0]).astype(np.int64)
    col = np.asarray(edge_index[1]).astype(np.int64)
    E = int(row.shape[0])
    assert E > 0, "PointConv with no edges is undefined (col.max() in the module)"

    D = int(pos.shape[1])
    F = int(basis.shape[1])
    H = int(wl_t.shape[1])
    G = int(wg_t.shape[1])
    assert wl_t.shape[0] == D + 2 * F

    g = _prepare_graph(row, col, edge_tile, node_tile)
    TE, TN = g["TE"], node_tile
    n_dst, n_tiles, num_chunks = g["n_dst"], g["n_tiles"], g["num_chunks"]

    # Packed per-edge operand [diff..., col_local]: one lane-padded block per chunk.
    valid = jnp.asarray(g["valid"])[:, None]
    diff = (jnp.take(pos, jnp.asarray(g["row_slot"]), axis=0)
            - jnp.take(pos_dst, jnp.asarray(g["col_slot"]), axis=0)).astype(jnp.float32)
    diff = diff * valid
    edge_pack = jnp.concatenate([diff, jnp.asarray(g["col_local"])[:, None]], axis=1)

    Hp = _round_up(H, 128)
    Gp = _round_up(G, 128)
    cdt = compute_dtype

    wd = jnp.pad(wl_t[:D], ((0, 0), (0, Hp - H))).astype(cdt)           # (D, Hp)
    wsc = jnp.pad(wl_t[D:], ((0, 0), (0, Hp - H))).astype(cdt)          # [Ws; Wc] (2F, Hp)
    blp = jnp.pad(bl, ((0, 0), (0, Hp - H))).astype(jnp.float32)
    wgp = jnp.pad(wg_t, ((0, Hp - H), (0, Gp - G))).astype(cdt)
    bgp = jnp.pad(bg, ((0, 0), (0, Gp - G))).astype(jnp.float32)
    basis2 = jnp.concatenate([basis, basis], axis=1).astype(jnp.float32)        # (D, 2F)
    phase = jnp.concatenate([jnp.zeros((1, F), jnp.float32),
                             jnp.full((1, F), jnp.pi / 2, jnp.float32)], axis=1)

    kernel = functools.partial(_pointconv_kernel, dim=D, node_tile=TN)

    out = pl.pallas_call(
        kernel,
        out_shape=jax.ShapeDtypeStruct((n_tiles * TN, Gp), jnp.float32),
        grid_spec=pltpu.PrefetchScalarGridSpec(
            num_scalar_prefetch=3,               # per-chunk tile / first / last -> SMEM
            grid=(num_chunks,),
            in_specs=[
                pl.BlockSpec((TE, D + 1), lambda i, ct, cf, cl: (i, 0)),   # packed edges
                pl.BlockSpec((D, 2 * F), lambda i, ct, cf, cl: (0, 0)),    # [basis|basis]
                pl.BlockSpec((1, 2 * F), lambda i, ct, cf, cl: (0, 0)),    # sin/cos phase
                pl.BlockSpec((D, Hp), lambda i, ct, cf, cl: (0, 0)),       # Wd
                pl.BlockSpec((2 * F, Hp), lambda i, ct, cf, cl: (0, 0)),   # [Ws; Wc]
                pl.BlockSpec((1, Hp), lambda i, ct, cf, cl: (0, 0)),       # local bias
                pl.BlockSpec((Hp, Gp), lambda i, ct, cf, cl: (0, 0)),      # Wg
                pl.BlockSpec((1, Gp), lambda i, ct, cf, cl: (0, 0)),       # global bias
            ],
            # Per-node-tile output block: VMEM footprint is O(TN), not O(n_dst).
            out_specs=pl.BlockSpec((TN, Gp), lambda i, ct, cf, cl: (ct[i], 0)),
            scratch_shapes=[pltpu.VMEM((TN, Hp), jnp.float32)],            # running window
        ),
        compiler_params=pltpu.CompilerParams(
            # Sequential grid: the (TN, Hp) window carries across a tile's chunks.
            # TODO(synk): on v7x, add a leading "parallel" axis of size 2 and split the
            #             chunk list at a node-tile boundary across the 2 TensorCores.
            dimension_semantics=("arbitrary",),
            # No vmem_limit_bytes: with per-tile outputs nothing scales with n_dst,
            # so the per-generation scoped default (16/32 MiB) is more than enough.
        ),
    )(jnp.asarray(g["chunk_tile"]), jnp.asarray(g["chunk_first"]),
      jnp.asarray(g["chunk_last"]),
      edge_pack, basis2, phase, wd, wsc, blp, wgp, bgp)

    return out[:n_dst, :G]


# ---------------------------------------------------------------------------
# Pure-JAX reference
# ---------------------------------------------------------------------------
def pointconv_reference(pos, pos_dst, edge_index, basis, wl_t, bl, wg_t, bg):
    row, col = edge_index[0], edge_index[1]
    n_dst = int(jnp.max(col)) + 1
    diff = (pos[row] - pos_dst[col]).astype(basis.dtype)
    emb = diff @ basis
    feat = jnp.concatenate([diff, jnp.sin(emb), jnp.cos(emb)], axis=1)
    h = jnp.maximum(feat @ wl_t + bl, 0.0)
    seg = jax.ops.segment_max(h, col, num_segments=n_dst)
    seg = jnp.where(jnp.isneginf(seg), 0.0, seg)
    return seg @ wg_t + bg


if __name__ == "__main__":
    # Small deterministic shapes.
    N_SRC, D = 16, 3
    E, F, H, G = 320, 16, 32, 16

    key = jax.random.PRNGKey(0)
    k_pos, k_posd, k_row, k_perm, k_basis, k_wl, k_bl, k_wg, k_bg = jax.random.split(key, 9)

    # Destinations hit only cols {0,2,4,6,24,26} -> n_dst = 27; destination tiles
    # 1 and 2 (cols 8..23) are completely empty.  Exercises: empty-tile bias rows,
    # multi-chunk tiles, edge padding and out-of-order edge ordering.
    lut = jnp.array([0, 2, 4, 6, 24, 26], jnp.int32)
    col = lut[jnp.arange(E, dtype=jnp.int32) % 6]
    col = jax.random.permutation(k_perm, col)
    n_dst = int(col.max()) + 1
    row = jax.random.randint(k_row, (E,), 0, N_SRC, jnp.int32)
    edge_index = jnp.stack([row, col], axis=0)

    pos = jax.random.normal(k_pos, (N_SRC, D), jnp.float32)
    pos_dst = jax.random.normal(k_posd, (n_dst, D), jnp.float32)
    basis = jax.random.normal(k_basis, (D, F), jnp.float32)

    # local_nn: Linear(D+2F, H) + ReLU ; global_nn: Linear(H, G)
    wl_t = jax.random.normal(k_wl, (D + 2 * F, H), jnp.float32) * 0.1
    bl = jax.random.normal(k_bl, (1, H), jnp.float32) * 0.1
    wg_t = jax.random.normal(k_wg, (H, G), jnp.float32) * 0.1
    bg = jax.random.normal(k_bg, (1, G), jnp.float32) * 0.1

    ref = jax.block_until_ready(
        pointconv_reference(pos, pos_dst, edge_index, basis, wl_t, bl, wg_t, bg))

    # 1) f32 end-to-end, padding-aware auto edge_tile.
    out_f32 = jax.block_until_ready(
        pointconv_pallas(pos, pos_dst, edge_index, basis, wl_t, bl, wg_t, bg,
                         edge_tile=None, compute_dtype=jnp.float32))
    # 2) f32 with a small explicit edge_tile -> many chunks per destination tile.
    out_mc = jax.block_until_ready(
        pointconv_pallas(pos, pos_dst, edge_index, basis, wl_t, bl, wg_t, bg,
                         edge_tile=32, compute_dtype=jnp.float32))
    # 3) bf16 MXU operands + bf16 scatter-max (v6e/v7x path), f32 accumulation.
    out_bf16 = jax.block_until_ready(
        pointconv_pallas(pos, pos_dst, edge_index, basis, wl_t, bl, wg_t, bg,
                         edge_tile=None, compute_dtype=jnp.bfloat16))

    assert out_f32.shape == (n_dst, G)
    assert out_mc.shape == (n_dst, G)
    assert out_bf16.shape == (n_dst, G)
    assert jnp.allclose(out_f32, ref, atol=1e-4, rtol=1e-4), "f32 kernel mismatch vs reference"
    assert jnp.allclose(out_mc, ref, atol=1e-4, rtol=1e-4), "multi-chunk kernel mismatch vs reference"
    assert jnp.allclose(out_bf16, ref, atol=5e-2, rtol=5e-2), "bf16 kernel mismatch vs reference"
    print("KERNEL_OK")
</pallas_src>

<mosaic_0001>
module attributes {stable_mosaic.version = 11 : i64} {
  func.func @_pointconv_kernel(%arg0: i32, %arg1: memref<5xi32, #tpu.memory_space<smem>>, %arg2: memref<5xi32, #tpu.memory_space<smem>>, %arg3: memref<5xi32, #tpu.memory_space<smem>>, %arg4: memref<192x4xf32, #tpu.memory_space<vmem>>, %arg5: memref<3x32xf32, #tpu.memory_space<vmem>>, %arg6: memref<1x32xf32, #tpu.memory_space<vmem>>, %arg7: memref<3x128xf32, #tpu.memory_space<vmem>>, %arg8: memref<32x128xf32, #tpu.memory_space<vmem>>, %arg9: memref<1x128xf32, #tpu.memory_space<vmem>>, %arg10: memref<128x128xf32, #tpu.memory_space<vmem>>, %arg11: memref<1x128xf32, #tpu.memory_space<vmem>>, %arg12: memref<8x128xf32, #tpu.memory_space<vmem>>, %arg13: memref<8x128xf32, #tpu.memory_space<vmem>>) attributes {dimension_semantics = [#tpu.dimension_semantics<arbitrary>], iteration_bounds = array<i64: 5>, scalar_prefetch = 3 : i64, scratch_operands = 1 : i64, tpu.core_type = #tpu.core_type<tc>, window_params = [{transform_indices = @transform_0, window_bounds = array<i64: 192, 4>}, {pipeline_mode = #tpu.pipeline_mode<synchronous>, transform_indices = @transform_1, window_bounds = array<i64: 3, 32>}, {pipeline_mode = #tpu.pipeline_mode<synchronous>, transform_indices = @transform_2, window_bounds = array<i64: 1, 32>}, {pipeline_mode = #tpu.pipeline_mode<synchronous>, transform_indices = @transform_3, window_bounds = array<i64: 3, 128>}, {pipeline_mode = #tpu.pipeline_mode<synchronous>, transform_indices = @transform_4, window_bounds = array<i64: 32, 128>}, {pipeline_mode = #tpu.pipeline_mode<synchronous>, transform_indices = @transform_5, window_bounds = array<i64: 1, 128>}, {pipeline_mode = #tpu.pipeline_mode<synchronous>, transform_indices = @transform_6, window_bounds = array<i64: 128, 128>}, {pipeline_mode = #tpu.pipeline_mode<synchronous>, transform_indices = @transform_7, window_bounds = array<i64: 1, 128>}, {transform_indices = @transform_8, window_bounds = array<i64: 8, 128>}]} {
    %0 = arith.index_cast %arg0 : i32 to index
    %1 = memref.load %arg2[%0] : memref<5xi32, #tpu.memory_space<smem>>
    %c1_i32 = arith.constant 1 : i32
    %2 = arith.cmpi eq, %1, %c1_i32 : i32
    %3 = arith.extui %2 : i1 to i32
    %c0_i32 = arith.constant 0 : i32
    %4 = arith.cmpi ne, %3, %c0_i32 : i32
    scf.if %4 {
      %cst_70 = arith.constant 0.000000e+00 : f32
      %131 = vector.broadcast %cst_70 : f32 to vector<8x128xf32>
      %c0_71 = arith.constant 0 : index
      %c0_72 = arith.constant 0 : index
      %132 = vector.load %arg13[%c0_71, %c0_72] : memref<8x128xf32, #tpu.memory_space<vmem>>, vector<8x128xf32>
      tpu.vector_store %arg13[%c0_71, %c0_72], %131 {strides = array<i32>} : memref<8x128xf32, #tpu.memory_space<vmem>>, vector<8x128xf32>,
    } else {
    }
    %c0 = arith.constant 0 : index
    %c0_0 = arith.constant 0 : index
    %5 = vector.load %arg4[%c0, %c0_0] : memref<192x4xf32, #tpu.memory_space<vmem>>, vector<192x3xf32>
    %c0_1 = arith.constant 0 : index
    %c3 = arith.constant 3 : index
    %6 = vector.load %arg4[%c0_1, %c3] : memref<192x4xf32, #tpu.memory_space<vmem>>, vector<192x1xf32>
    %c0_2 = arith.constant 0 : index
    %c0_3 = arith.constant 0 : index
    %7 = vector.load %arg6[%c0_2, %c0_3] : memref<1x32xf32, #tpu.memory_space<vmem>>, vector<1x32xf32>
    %8 = vector.extract_strided_slice %5 {offsets = [0, 0], sizes = [192, 1], strides = [1, 1]} : vector<192x3xf32> to vector<192x1xf32>
    %c0_4 = arith.constant 0 : index
    %c0_5 = arith.constant 0 : index
    %9 = vector.load %arg5[%c0_4, %c0_5] : memref<3x32xf32, #tpu.memory_space<vmem>>, vector<1x32xf32>
    %10 = vector.broadcast %8 : vector<192x1xf32> to vector<192x32xf32>
    %11 = vector.broadcast %9 : vector<1x32xf32> to vector<192x32xf32>
    %12 = arith.mulf %10, %11 : vector<192x32xf32>
    %13 = vector.broadcast %7 : vector<1x32xf32> to vector<192x32xf32>
    %14 = arith.addf %13, %12 : vector<192x32xf32>
    %15 = vector.extract_strided_slice %5 {offsets = [0, 1], sizes = [192, 1], strides = [1, 1]} : vector<192x3xf32> to vector<192x1xf32>
    %c1 = arith.constant 1 : index
    %c0_6 = arith.constant 0 : index
    %16 = vector.load %arg5[%c1, %c0_6] : memref<3x32xf32, #tpu.memory_space<vmem>>, vector<1x32xf32>
    %17 = vector.broadcast %15 : vector<192x1xf32> to vector<192x32xf32>
    %18 = vector.broadcast %16 : vector<1x32xf32> to vector<192x32xf32>
    %19 = arith.mulf %17, %18 : vector<192x32xf32>
    %20 = arith.addf %14, %19 : vector<192x32xf32>
    %21 = vector.extract_strided_slice %5 {offsets = [0, 2], sizes = [192, 1], strides = [1, 1]} : vector<192x3xf32> to vector<192x1xf32>
    %c2 = arith.constant 2 : index
    %c0_7 = arith.constant 0 : index
    %22 = vector.load %arg5[%c2, %c0_7] : memref<3x32xf32, #tpu.memory_space<vmem>>, vector<1x32xf32>
    %23 = vector.broadcast %21 : vector<192x1xf32> to vector<192x32xf32>
    %24 = vector.broadcast %22 : vector<1x32xf32> to vector<192x32xf32>
    %25 = arith.mulf %23, %24 : vector<192x32xf32>
    %26 = arith.addf %20, %25 : vector<192x32xf32>
    %27 = math.sin %26 : vector<192x32xf32>
    %c0_8 = arith.constant 0 : index
    %c0_9 = arith.constant 0 : index
    %28 = vector.load %arg7[%c0_8, %c0_9] : memref<3x128xf32, #tpu.memory_space<vmem>>, vector<3x128xf32>
    %cst = arith.constant dense<0.000000e+00> : vector<192x128xf32>
    %29 = tpu.matmul %5, %28, %cst {dimension_numbers = #tpu.dot_dimension_numbers<[1], [0], [0], [1], [0, 0, 1, 1], [], []>} : vector<192x3xf32>, vector<3x128xf32>, vector<192x128xf32> -> vector<192x128xf32>
    %c0_10 = arith.constant 0 : index
    %c0_11 = arith.constant 0 : index
    %30 = vector.load %arg8[%c0_10, %c0_11] : memref<32x128xf32, #tpu.memory_space<vmem>>, vector<32x128xf32>
    %cst_12 = arith.constant dense<0.000000e+00> : vector<192x128xf32>
    %31 = tpu.matmul %27, %30, %cst_12 {dimension_numbers = #tpu.dot_dimension_numbers<[1], [0], [0], [1], [0, 0, 1, 1], [], []>} : vector<192x32xf32>, vector<32x128xf32>, vector<192x128xf32> -> vector<192x128xf32>
    %32 = arith.addf %29, %31 : vector<192x128xf32>
    %c0_13 = arith.constant 0 : index
    %c0_14 = arith.constant 0 : index
    %33 = vector.load %arg9[%c0_13, %c0_14] : memref<1x128xf32, #tpu.memory_space<vmem>>, vector<1x128xf32>
    %34 = vector.broadcast %33 : vector<1x128xf32> to vector<192x128xf32>
    %35 = arith.addf %32, %34 : vector<192x128xf32>
    %cst_15 = arith.constant 0.000000e+00 : f32
    %36 = vector.broadcast %cst_15 : f32 to vector<192x128xf32>
    %37 = arith.maximumf %35, %36 : vector<192x128xf32>
    %cst_16 = arith.constant 0.000000e+00 : f32
    %38 = vector.broadcast %cst_16 : f32 to vector<192x1xf32>
    %39 = arith.cmpf oeq, %6, %38 : vector<192x1xf32>
    %cst_17 = arith.constant 0.000000e+00 : f32
    %40 = vector.shape_cast %39 : vector<192x1xi1> to vector<192x1xi1>
    %41 = vector.broadcast %40 : vector<192x1xi1> to vector<192x128xi1>
    %42 = vector.broadcast %cst_17 : f32 to vector<192x128xf32>
    %43 = arith.select %41, %37, %42 : vector<192x128xi1>, vector<192x128xf32>
    %cst_18 = arith.constant dense<0xFF800000> : vector<128xf32>
    %44 = vector.multi_reduction <maximumf>, %43, %cst_18 [0] : vector<192x128xf32> to vector<128xf32>
    %45 = vector.shape_cast %44 : vector<128xf32> to vector<1x128xf32>
    %c0_19 = arith.constant 0 : index
    %c0_20 = arith.constant 0 : index
    %46 = vector.load %arg13[%c0_19, %c0_20] : memref<8x128xf32, #tpu.memory_space<vmem>>, vector<1x128xf32>
    %47 = arith.maximumf %46, %45 : vector<1x128xf32>
    %c0_21 = arith.constant 0 : index
    %c0_22 = arith.constant 0 : index
    %48 = vector.load %arg13[%c0_21, %c0_22] : memref<8x128xf32, #tpu.memory_space<vmem>>, vector<1x128xf32>
    tpu.vector_store %arg13[%c0_21, %c0_22], %47 {strides = array<i32>} : memref<8x128xf32, #tpu.memory_space<vmem>>, vector<1x128xf32>,
    %cst_23 = arith.constant 1.000000e+00 : f32
    %49 = vector.broadcast %cst_23 : f32 to vector<192x1xf32>
    %50 = arith.cmpf oeq, %6, %49 : vector<192x1xf32>
    %cst_24 = arith.constant 0.000000e+00 : f32
    %51 = vector.shape_cast %50 : vector<192x1xi1> to vector<192x1xi1>
    %52 = vector.broadcast %51 : vector<192x1xi1> to vector<192x128xi1>
    %53 = vector.broadcast %cst_24 : f32 to vector<192x128xf32>
    %54 = arith.select %52, %37, %53 : vector<192x128xi1>, vector<192x128xf32>
    %cst_25 = arith.constant dense<0xFF800000> : vector<128xf32>
    %55 = vector.multi_reduction <maximumf>, %54, %cst_25 [0] : vector<192x128xf32> to vector<128xf32>
    %56 = vector.shape_cast %55 : vector<128xf32> to vector<1x128xf32>
    %c1_26 = arith.constant 1 : index
    %c0_27 = arith.constant 0 : index
    %57 = vector.load %arg13[%c1_26, %c0_27] : memref<8x128xf32, #tpu.memory_space<vmem>>, vector<1x128xf32>
    %58 = arith.maximumf %57, %56 : vector<1x128xf32>
    %c1_28 = arith.constant 1 : index
    %c0_29 = arith.constant 0 : index
    %59 = vector.load %arg13[%c1_28, %c0_29] : memref<8x128xf32, #tpu.memory_space<vmem>>, vector<1x128xf32>
    tpu.vector_store %arg13[%c1_28, %c0_29], %58 {strides = array<i32>} : memref<8x128xf32, #tpu.memory_space<vmem>>, vector<1x128xf32>,
    %cst_30 = arith.constant 2.000000e+00 : f32
    %60 = vector.broadcast %cst_30 : f32 to vector<192x1xf32>
    %61 = arith.cmpf oeq, %6, %60 : vector<192x1xf32>
    %cst_31 = arith.constant 0.000000e+00 : f32
    %62 = vector.shape_cast %61 : vector<192x1xi1> to vector<192x1xi1>
    %63 = vector.broadcast %62 : vector<192x1xi1> to vector<192x128xi1>
    %64 = vector.broadcast %cst_31 : f32 to vector<192x128xf32>
    %65 = arith.select %63, %37, %64 : vector<192x128xi1>, vector<192x128xf32>
    %cst_32 = arith.constant dense<0xFF800000> : vector<128xf32>
    %66 = vector.multi_reduction <maximumf>, %65, %cst_32 [0] : vector<192x128xf32> to vector<128xf32>
    %67 = vector.shape_cast %66 : vector<128xf32> to vector<1x128xf32>
    %c2_33 = arith.constant 2 : index
    %c0_34 = arith.constant 0 : index
    %68 = vector.load %arg13[%c2_33, %c0_34] : memref<8x128xf32, #tpu.memory_space<vmem>>, vector<1x128xf32>
    %69 = arith.maximumf %68, %67 : vector<1x128xf32>
    %c2_35 = arith.constant 2 : index
    %c0_36 = arith.constant 0 : index
    %70 = vector.load %arg13[%c2_35, %c0_36] : memref<8x128xf32, #tpu.memory_space<vmem>>, vector<1x128xf32>
    tpu.vector_store %arg13[%c2_35, %c0_36], %69 {strides = array<i32>} : memref<8x128xf32, #tpu.memory_space<vmem>>, vector<1x128xf32>,
    %cst_37 = arith.constant 3.000000e+00 : f32
    %71 = vector.broadcast %cst_37 : f32 to vector<192x1xf32>
    %72 = arith.cmpf oeq, %6, %71 : vector<192x1xf32>
    %cst_38 = arith.constant 0.000000e+00 : f32
    %73 = vector.shape_cast %72 : vector<192x1xi1> to vector<192x1xi1>
    %74 = vector.broadcast %73 : vector<192x1xi1> to vector<192x128xi1>
    %75 = vector.broadcast %cst_38 : f32 to vector<192x128xf32>
    %76 = arith.select %74, %37, %75 : vector<192x128xi1>, vector<192x128xf32>
    %cst_39 = arith.constant dense<0xFF800000> : vector<128xf32>
    %77 = vector.multi_reduction <maximumf>, %76, %cst_39 [0] : vector<192x128xf32> to vector<128xf32>
    %78 = vector.shape_cast %77 : vector<128xf32> to vector<1x128xf32>
    %c3_40 = arith.constant 3 : index
    %c0_41 = arith.constant 0 : index
    %79 = vector.load %arg13[%c3_40, %c0_41] : memref<8x128xf32, #tpu.memory_space<vmem>>, vector<1x128xf32>
    %80 = arith.maximumf %79, %78 : vector<1x128xf32>
    %c3_42 = arith.constant 3 : index
    %c0_43 = arith.constant 0 : index
    %81 = vector.load %arg13[%c3_42, %c0_43] : memref<8x128xf32, #tpu.memory_space<vmem>>, vector<1x128xf32>
    tpu.vector_store %arg13[%c3_42, %c0_43], %80 {strides = array<i32>} : memref<8x128xf32, #tpu.memory_space<vmem>>, vector<1x128xf32>,
    %cst_44 = arith.constant 4.000000e+00 : f32
    %82 = vector.broadcast %cst_44 : f32 to vector<192x1xf32>
    %83 = arith.cmpf oeq, %6, %82 : vector<192x1xf32>
    %cst_45 = arith.constant 0.000000e+00 : f32
    %84 = vector.shape_cast %83 : vector<192x1xi1> to vector<192x1xi1>
    %85 = vector.broadcast %84 : vector<192x1xi1> to vector<192x128xi1>
    %86 = vector.broadcast %cst_45 : f32 to vector<192x128xf32>
    %87 = arith.select %85, %37, %86 : vector<192x128xi1>, vector<192x128xf32>
    %cst_46 = arith.constant dense<0xFF800000> : vector<128xf32>
    %88 = vector.multi_reduction <maximumf>, %87, %cst_46 [0] : vector<192x128xf32> to vector<128xf32>
    %89 = vector.shape_cast %88 : vector<128xf32> to vector<1x128xf32>
    %c4 = arith.constant 4 : index
    %c0_47 = arith.constant 0 : index
    %90 = vector.load %arg13[%c4, %c0_47] : memref<8x128xf32, #tpu.memory_space<vmem>>, vector<1x128xf32>
    %91 = arith.maximumf %90, %89 : vector<1x128xf32>
    %c4_48 = arith.constant 4 : index
    %c0_49 = arith.constant 0 : index
    %92 = vector.load %arg13[%c4_48, %c0_49] : memref<8x128xf32, #tpu.memory_space<vmem>>, vector<1x128xf32>
    tpu.vector_store %arg13[%c4_48, %c0_49], %91 {strides = array<i32>} : memref<8x128xf32, #tpu.memory_space<vmem>>, vector<1x128xf32>,
    %cst_50 = arith.constant 5.000000e+00 : f32
    %93 = vector.broadcast %cst_50 : f32 to vector<192x1xf32>
    %94 = arith.cmpf oeq, %6, %93 : vector<192x1xf32>
    %cst_51 = arith.constant 0.000000e+00 : f32
    %95 = vector.shape_cast %94 : vector<192x1xi1> to vector<192x1xi1>
    %96 = vector.broadcast %95 : vector<192x1xi1> to vector<192x128xi1>
    %97 = vector.broadcast %cst_51 : f32 to vector<192x128xf32>
    %98 = arith.select %96, %37, %97 : vector<192x128xi1>, vector<192x128xf32>
    %cst_52 = arith.constant dense<0xFF800000> : vector<128xf32>
    %99 = vector.multi_reduction <maximumf>, %98, %cst_52 [0] : vector<192x128xf32> to vector<128xf32>
    %100 = vector.shape_cast %99 : vector<128xf32> to vector<1x128xf32>
    %c5 = arith.constant 5 : index
    %c0_53 = arith.constant 0 : index
    %101 = vector.load %arg13[%c5, %c0_53] : memref<8x128xf32, #tpu.memory_space<vmem>>, vector<1x128xf32>
    %102 = arith.maximumf %101, %100 : vector<1x128xf32>
    %c5_54 = arith.constant 5 : index
    %c0_55 = arith.constant 0 : index
    %103 = vector.load %arg13[%c5_54, %c0_55] : memref<8x128xf32, #tpu.memory_space<vmem>>, vector<1x128xf32>
    tpu.vector_store %arg13[%c5_54, %c0_55], %102 {strides = array<i32>} : memref<8x128xf32, #tpu.memory_space<vmem>>, vector<1x128xf32>,
    %cst_56 = arith.constant 6.000000e+00 : f32
    %104 = vector.broadcast %cst_56 : f32 to vector<192x1xf32>
    %105 = arith.cmpf oeq, %6, %104 : vector<192x1xf32>
    %cst_57 = arith.constant 0.000000e+00 : f32
    %106 = vector.shape_cast %105 : vector<192x1xi1> to vector<192x1xi1>
    %107 = vector.broadcast %106 : vector<192x1xi1> to vector<192x128xi1>
    %108 = vector.broadcast %cst_57 : f32 to vector<192x128xf32>
    %109 = arith.select %107, %37, %108 : vector<192x128xi1>, vector<192x128xf32>
    %cst_58 = arith.constant dense<0xFF800000> : vector<128xf32>
    %110 = vector.multi_reduction <maximumf>, %109, %cst_58 [0] : vector<192x128xf32> to vector<128xf32>
    %111 = vector.shape_cast %110 : vector<128xf32> to vector<1x128xf32>
    %c6 = arith.constant 6 : index
    %c0_59 = arith.constant 0 : index
    %112 = vector.load %arg13[%c6, %c0_59] : memref<8x128xf32, #tpu.memory_space<vmem>>, vector<1x128xf32>
    %113 = arith.maximumf %112, %111 : vector<1x128xf32>
    %c6_60 = arith.constant 6 : index
    %c0_61 = arith.constant 0 : index
    %114 = vector.load %arg13[%c6_60, %c0_61] : memref<8x128xf32, #tpu.memory_space<vmem>>, vector<1x128xf32>
    tpu.vector_store %arg13[%c6_60, %c0_61], %113 {strides = array<i32>} : memref<8x128xf32, #tpu.memory_space<vmem>>, vector<1x128xf32>,
    %cst_62 = arith.constant 7.000000e+00 : f32
    %115 = vector.broadcast %cst_62 : f32 to vector<192x1xf32>
    %116 = arith.cmpf oeq, %6, %115 : vector<192x1xf32>
    %cst_63 = arith.constant 0.000000e+00 : f32
    %117 = vector.shape_cast %116 : vector<192x1xi1> to vector<192x1xi1>
    %118 = vector.broadcast %117 : vector<192x1xi1> to vector<192x128xi1>
    %119 = vector.broadcast %cst_63 : f32 to vector<192x128xf32>
    %120 = arith.select %118, %37, %119 : vector<192x128xi1>, vector<192x128xf32>
    %cst_64 = arith.constant dense<0xFF800000> : vector<128xf32>
    %121 = vector.multi_reduction <maximumf>, %120, %cst_64 [0] : vector<192x128xf32> to vector<128xf32>
    %122 = vector.shape_cast %121 : vector<128xf32> to vector<1x128xf32>
    %c7 = arith.constant 7 : index
    %c0_65 = arith.constant 0 : index
    %123 = vector.load %arg13[%c7, %c0_65] : memref<8x128xf32, #tpu.memory_space<vmem>>, vector<1x128xf32>
    %124 = arith.maximumf %123, %122 : vector<1x128xf32>
    %c7_66 = arith.constant 7 : index
    %c0_67 = arith.constant 0 : index
    %125 = vector.load %arg13[%c7_66, %c0_67] : memref<8x128xf32, #tpu.memory_space<vmem>>, vector<1x128xf32>
    tpu.vector_store %arg13[%c7_66, %c0_67], %124 {strides = array<i32>} : memref<8x128xf32, #tpu.memory_space<vmem>>, vector<1x128xf32>,
    %126 = arith.index_cast %arg0 : i32 to index
    %127 = memref.load %arg3[%126] : memref<5xi32, #tpu.memory_space<smem>>
    %c1_i32_68 = arith.constant 1 : i32
    %128 = arith.cmpi eq, %127, %c1_i32_68 : i32
    %129 = arith.extui %128 : i1 to i32
    %c0_i32_69 = arith.constant 0 : i32
    %130 = arith.cmpi ne, %129, %c0_i32_69 : i32
    scf.if %130 {
      %c0_70 = arith.constant 0 : index
      %c0_71 = arith.constant 0 : index
      %131 = vector.load %arg13[%c0_70, %c0_71] : memref<8x128xf32, #tpu.memory_space<vmem>>, vector<8x128xf32>
      %c0_72 = arith.constant 0 : index
      %c0_73 = arith.constant 0 : index
      %132 = vector.load %arg10[%c0_72, %c0_73] : memref<128x128xf32, #tpu.memory_space<vmem>>, vector<128x128xf32>
      %cst_74 = arith.constant dense<0.000000e+00> : vector<8x128xf32>
      %133 = tpu.matmul %131, %132, %cst_74 {dimension_numbers = #tpu.dot_dimension_numbers<[1], [0], [0], [1], [0, 0, 1, 1], [], []>} : vector<8x128xf32>, vector<128x128xf32>, vector<8x128xf32> -> vector<8x128xf32>
      %c0_75 = arith.constant 0 : index
      %c0_76 = arith.constant 0 : index
      %134 = vector.load %arg11[%c0_75, %c0_76] : memref<1x128xf32, #tpu.memory_space<vmem>>, vector<1x128xf32>
      %135 = vector.broadcast %134 : vector<1x128xf32> to vector<8x128xf32>
      %136 = arith.addf %133, %135 : vector<8x128xf32>
      %c0_77 = arith.constant 0 : index
      %c0_78 = arith.constant 0 : index
      %137 = vector.load %arg12[%c0_77, %c0_78] : memref<8x128xf32, #tpu.memory_space<vmem>>, vector<8x128xf32>
      tpu.vector_store %arg12[%c0_77, %c0_78], %136 {strides = array<i32>} : memref<8x128xf32, #tpu.memory_space<vmem>>, vector<8x128xf32>,
    } else {
    }
    return
  }
  func.func @transform_0(%arg0: i32, %arg1: memref<5xi32, #tpu.memory_space<smem>>, %arg2: memref<5xi32, #tpu.memory_space<smem>>, %arg3: memref<5xi32, #tpu.memory_space<smem>>) -> (i32, i32) {
    %c0_i32 = arith.constant 0 : i32
    %c0_i32_0 = arith.constant 0 : i32
    return %arg0, %c0_i32 : i32, i32
  }
  func.func @transform_1(%arg0: i32, %arg1: memref<5xi32, #tpu.memory_space<smem>>, %arg2: memref<5xi32, #tpu.memory_space<smem>>, %arg3: memref<5xi32, #tpu.memory_space<smem>>) -> (i32, i32) {
    %c0_i32 = arith.constant 0 : i32
    %c0_i32_0 = arith.constant 0 : i32
    %c0_i32_1 = arith.constant 0 : i32
    return %c0_i32, %c0_i32_0 : i32, i32
  }
  func.func @transform_2(%arg0: i32, %arg1: memref<5xi32, #tpu.memory_space<smem>>, %arg2: memref<5xi32, #tpu.memory_space<smem>>, %arg3: memref<5xi32, #tpu.memory_space<smem>>) -> (i32, i32) {
    %c0_i32 = arith.constant 0 : i32
    %c0_i32_0 = arith.constant 0 : i32
    %c0_i32_1 = arith.constant 0 : i32
    return %c0_i32, %c0_i32_0 : i32, i32
  }
  func.func @transform_3(%arg0: i32, %arg1: memref<5xi32, #tpu.memory_space<smem>>, %arg2: memref<5xi32, #tpu.memory_space<smem>>, %arg3: memref<5xi32, #tpu.memory_space<smem>>) -> (i32, i32) {
    %c0_i32 = arith.constant 0 : i32
    %c0_i32_0 = arith.constant 0 : i32
    %c0_i32_1 = arith.constant 0 : i32
    return %c0_i32, %c0_i32_0 : i32, i32
  }
  func.func @transform_4(%arg0: i32, %arg1: memref<5xi32, #tpu.memory_space<smem>>, %arg2: memref<5xi32, #tpu.memory_space<smem>>, %arg3: memref<5xi32, #tpu.memory_space<smem>>) -> (i32, i32) {
    %c0_i32 = arith.constant 0 : i32
    %c0_i32_0 = arith.constant 0 : i32
    %c0_i32_1 = arith.constant 0 : i32
    return %c0_i32, %c0_i32_0 : i32, i32
  }
  func.func @transform_5(%arg0: i32, %arg1: memref<5xi32, #tpu.memory_space<smem>>, %arg2: memref<5xi32, #tpu.memory_space<smem>>, %arg3: memref<5xi32, #tpu.memory_space<smem>>) -> (i32, i32) {
    %c0_i32 = arith.constant 0 : i32
    %c0_i32_0 = arith.constant 0 : i32
    %c0_i32_1 = arith.constant 0 : i32
    return %c0_i32, %c0_i32_0 : i32, i32
  }
  func.func @transform_6(%arg0: i32, %arg1: memref<5xi32, #tpu.memory_space<smem>>, %arg2: memref<5xi32, #tpu.memory_space<smem>>, %arg3: memref<5xi32, #tpu.memory_space<smem>>) -> (i32, i32) {
    %c0_i32 = arith.constant 0 : i32
    %c0_i32_0 = arith.constant 0 : i32
    %c0_i32_1 = arith.constant 0 : i32
    return %c0_i32, %c0_i32_0 : i32, i32
  }
  func.func @transform_7(%arg0: i32, %arg1: memref<5xi32, #tpu.memory_space<smem>>, %arg2: memref<5xi32, #tpu.memory_space<smem>>, %arg3: memref<5xi32, #tpu.memory_space<smem>>) -> (i32, i32) {
    %c0_i32 = arith.constant 0 : i32
    %c0_i32_0 = arith.constant 0 : i32
    %c0_i32_1 = arith.constant 0 : i32
    return %c0_i32, %c0_i32_0 : i32, i32
  }
  func.func @transform_8(%arg0: i32, %arg1: memref<5xi32, #tpu.memory_space<smem>>, %arg2: memref<5xi32, #tpu.memory_space<smem>>, %arg3: memref<5xi32, #tpu.memory_space<smem>>) -> (i32, i32) {
    %0 = arith.index_cast %arg0 : i32 to index
    %1 = memref.load %arg1[%0] : memref<5xi32, #tpu.memory_space<smem>>
    %c0_i32 = arith.constant 0 : i32
    %c0_i32_0 = arith.constant 0 : i32
    return %1, %c0_i32 : i32, i32
  }
}

</mosaic_0001>

<llo_original>
// kernel: tpu_custom_call.1
$region0: #{tpu_custom_call.1}
  #allocation0 [shape = 'u32[]', space=smem, size = 0x4, offset = 0x4, fixed_abs, tag = 'smem constant byte address 0x4 - core index']
  #allocation1 [shape = 'u32[144,128]{1,0:T(1,128)}', space=vmem, size = 0x12000, scoped, tag = 'internal scratch']
  #allocation2 [shape = 'f32[8,128]{1,0:T(8,128)}', space=vmem, size = 0x1000, scoped, tag = 'scratch operand']
  #allocation3 [shape = 's32[1]{0}', space=sflag, size = 0x4, scoped, tag = 'scoped memory for tpu_custom_call.1']
  #allocation4 [shape = 'u8[512]{0}', space=smem, size = 0x200, scoped, tag = 'prefetched SMEM operand 0']
  #allocation5 [shape = 'u8[512]{0}', space=smem, size = 0x200, scoped, tag = 'prefetched SMEM operand 1']
  #allocation6 [shape = 'u8[512]{0}', space=smem, size = 0x200, scoped, tag = 'prefetched SMEM operand 2']
  %s0 = inlined_call_operand.vmem [shape: s32[5], index: 0, kind: input, shape index: {}]
  %s1 = inlined_call_operand.vmem [shape: s32[5], index: 1, kind: input, shape index: {}]
  %s2 = inlined_call_operand.vmem [shape: s32[5], index: 2, kind: input, shape index: {}]
  %s3 = inlined_call_operand.vmem [shape: f32[960,4], index: 3, kind: input, shape index: {}]
  %s4 = inlined_call_operand.vmem [shape: f32[3,32], index: 4, kind: input, shape index: {}]
  %s5 = inlined_call_operand.vmem [shape: f32[1,32], index: 5, kind: input, shape index: {}]
  %s6 = inlined_call_operand.vmem [shape: f32[3,128], index: 6, kind: input, shape index: {}]
  %s7 = inlined_call_operand.vmem [shape: f32[32,128], index: 7, kind: input, shape index: {}]
  %s8 = inlined_call_operand.vmem [shape: f32[1,128], index: 8, kind: input, shape index: {}]
  %s9 = inlined_call_operand.vmem [shape: f32[128,128], index: 9, kind: input, shape index: {}]
  %s10 = inlined_call_operand.vmem [shape: f32[1,128], index: 10, kind: input, shape index: {}]
  %s11 = inlined_call_operand.hbm [shape: f32[32,128], index: 11, kind: output, shape index: {}]
  %s12 = sld [smem:[#allocation0]]
  $region73: #{tpu_custom_call.1} parent=0
    _
  %s14 = ssub.s32 1, %s12
  %s15 = scalar_select 0, %s14, %s12
  %s16 = sshll.u32 %s0, 4
  %s17 = int_to_ptr.vmem [resolvable:$true] %s16
  %19 = dma.vmem_to_smem %s17, 16, [#allocation4], [#allocation3]
  %s20 = sshll.u32 %s1, 4
  %s21 = int_to_ptr.vmem [resolvable:$true] %s20
  %23 = dma.vmem_to_smem %s21, 16, [#allocation5], [#allocation3]
  %s24 = sshll.u32 %s2, 4
  %s25 = int_to_ptr.vmem [resolvable:$true] %s24
  %27 = dma.vmem_to_smem %s25, 16, [#allocation6], [#allocation3]
  %28 = dma.done [#allocation3], 48
  %29 = sfence
  $region1: #{tpu_custom_call.1} parent=0
    #allocation7 [shape = 'u8[8192]{0}', space=vmem, size = 0x2000, scoped, tag = 'output window, operand 0']
    #allocation8 [shape = 's32[2]{0}', space=sflag, size = 0x8, scoped, tag = 'scoped memory for tpu_custom_call.1']
    %30 = vsyncpa [#allocation8], 0
    %s31 = scalar_lea.sflag [#allocation8], 1
    %32 = vsyncpa %s31, 0
    loop: start=0, step=1, limit=7
    $region2: #{tpu_custom_call.1} parent=1 // loop_pre_header
      _
    $region3: #{tpu_custom_call.1} parent=1 // loop_header
      %s34 = sphi 0, %s38
      %p35 = scmp.ge.s32.totalorder %s34, 7
      %s44 = sphi 0, %s46
      %s47 = sphi 0, %s44
      %s48 = sphi 0, %s47
      %s64 = sphi 0, %s48
      %s68 = sphi 0, %s68
      %s70 = sphi 0, %s68
      %s71 = sphi 0, %s70
      %s85 = sphi 0, %s71
      %s89 = sphi 0, %s89
      %s91 = sphi 0, %s89
      %s92 = sphi 0, %s91
      %s106 = sphi 0, %s92
      %s110 = sphi 0, %s110
      %s112 = sphi 0, %s110
      %s113 = sphi 0, %s112
      %s127 = sphi 0, %s113
      %s131 = sphi 0, %s131
      %s133 = sphi 0, %s131
      %s134 = sphi 0, %s133
      %s148 = sphi 0, %s134
      %s152 = sphi 0, %s152
      %s154 = sphi 0, %s152
      %s155 = sphi 0, %s154
      %s169 = sphi 0, %s155
      %s173 = sphi 0, %s173
      %s175 = sphi 0, %s173
      %s176 = sphi 0, %s175
      %s190 = sphi 0, %s176
      %s194 = sphi 0, %s194
      %s196 = sphi 0, %s194
      %s197 = sphi 0, %s196
      %s211 = sphi 0, %s197
      %s219 = sphi 0, %s221
      %s222 = sphi 0, %s219
      %s223 = sphi 0, %s222
      %s239 = sphi 0, %s223
    $region4: #{tpu_custom_call.1} parent=1 // loop_header_branch
      %37 = sbr.rel (%p35) target = $region8
    $region5: #{tpu_custom_call.1} parent=1 // loop_body
      %s39 = ssub.s32 %s34, 1
      %s40 = ssub.s32 %s34, 2
      %s41 = sadd.s32 %s34, 1
      %s42 = ssub.s32 %s34, %s41
      %p43 = scmp.eq.s32.totalorder %s42, 0
      %s45 = sadd.s32 %s44, 1
      %s46 = scalar_select %p43, %s44, %s45
      %p49 = pneg %p43
      %p50 = scmp.eq.s32.totalorder %s34, 4
      %p51 = por %p49, %p50
      %p52 = scmp.ne.s32.totalorder %s44, %s47
      %p53 = scmp.eq.s32.totalorder %s34, 0
      %p54 = por %p52, %p53
      %p55 = scmp.ne.s32.totalorder %s44, %s47
      %p56 = scmp.eq.s32.totalorder %s39, 4
      %p57 = por %p55, %p56
      %p58 = scmp.ne.s32.totalorder %s47, %s48
      %p59 = scmp.eq.s32.totalorder %s39, 0
      %p60 = por %p58, %p59
      %p61 = scmp.ne.s32.totalorder %s47, %s48
      %p62 = scmp.eq.s32.totalorder %s40, 4
      %p63 = por %p61, %p62
      %p65 = scmp.ne.s32.totalorder %s48, %s64
      %p66 = scmp.eq.s32.totalorder %s40, 0
      %p67 = por %p65, %p66
      %s69 = sadd.s32 %s68, 1
      %p72 = scmp.eq.s32.totalorder %s34, 4
      %p73 = scmp.ne.s32.totalorder %s68, %s70
      %p74 = scmp.eq.s32.totalorder %s34, 0
      %p75 = por %p73, %p74
      %p76 = scmp.ne.s32.totalorder %s68, %s70
      %p77 = scmp.eq.s32.totalorder %s39, 4
      %p78 = por %p76, %p77
      %p79 = scmp.ne.s32.totalorder %s70, %s71
      %p80 = scmp.eq.s32.totalorder %s39, 0
      %p81 = por %p79, %p80
      %p82 = scmp.ne.s32.totalorder %s70, %s71
      %p83 = scmp.eq.s32.totalorder %s40, 4
      %p84 = por %p82, %p83
      %p86 = scmp.ne.s32.totalorder %s71, %s85
      %p87 = scmp.eq.s32.totalorder %s40, 0
      %p88 = por %p86, %p87
      %s90 = sadd.s32 %s89, 1
      %p93 = scmp.eq.s32.totalorder %s34, 4
      %p94 = scmp.ne.s32.totalorder %s89, %s91
      %p95 = scmp.eq.s32.totalorder %s34, 0
      %p96 = por %p94, %p95
      %p97 = scmp.ne.s32.totalorder %s89, %s91
      %p98 = scmp.eq.s32.totalorder %s39, 4
      %p99 = por %p97, %p98
      %p100 = scmp.ne.s32.totalorder %s91, %s92
      %p101 = scmp.eq.s32.totalorder %s39, 0
      %p102 = por %p100, %p101
      %p103 = scmp.ne.s32.totalorder %s91, %s92
      %p104 = scmp.eq.s32.totalorder %s40, 4
      %p105 = por %p103, %p104
      %p107 = scmp.ne.s32.totalorder %s92, %s106
      %p108 = scmp.eq.s32.totalorder %s40, 0
      %p109 = por %p107, %p108
      %s111 = sadd.s32 %s110, 1
      %p114 = scmp.eq.s32.totalorder %s34, 4
      %p115 = scmp.ne.s32.totalorder %s110, %s112
      %p116 = scmp.eq.s32.totalorder %s34, 0
      %p117 = por %p115, %p116
      %p118 = scmp.ne.s32.totalorder %s110, %s112
      %p119 = scmp.eq.s32.totalorder %s39, 4
      %p120 = por %p118, %p119
      %p121 = scmp.ne.s32.totalorder %s112, %s113
      %p122 = scmp.eq.s32.totalorder %s39, 0
      %p123 = por %p121, %p122
      %p124 = scmp.ne.s32.totalorder %s112, %s113
      %p125 = scmp.eq.s32.totalorder %s40, 4
      %p126 = por %p124, %p125
      %p128 = scmp.ne.s32.totalorder %s113, %s127
      %p129 = scmp.eq.s32.totalorder %s40, 0
      %p130 = por %p128, %p129
      %s132 = sadd.s32 %s131, 1
      %p135 = scmp.eq.s32.totalorder %s34, 4
      %p136 = scmp.ne.s32.totalorder %s131, %s133
      %p137 = scmp.eq.s32.totalorder %s34, 0
      %p138 = por %p136, %p137
      %p139 = scmp.ne.s32.totalorder %s131, %s133
      %p140 = scmp.eq.s32.totalorder %s39, 4
      %p141 = por %p139, %p140
      %p142 = scmp.ne.s32.totalorder %s133, %s134
      %p143 = scmp.eq.s32.totalorder %s39, 0
      %p144 = por %p142, %p143
      %p145 = scmp.ne.s32.totalorder %s133, %s134
      %p146 = scmp.eq.s32.totalorder %s40, 4
      %p147 = por %p145, %p146
      %p149 = scmp.ne.s32.totalorder %s134, %s148
      %p150 = scmp.eq.s32.totalorder %s40, 0
      %p151 = por %p149, %p150
      %s153 = sadd.s32 %s152, 1
      %p156 = scmp.eq.s32.totalorder %s34, 4
      %p157 = scmp.ne.s32.totalorder %s152, %s154
      %p158 = scmp.eq.s32.totalorder %s34, 0
      %p159 = por %p157, %p158
      %p160 = scmp.ne.s32.totalorder %s152, %s154
      %p161 = scmp.eq.s32.totalorder %s39, 4
      %p162 = por %p160, %p161
      %p163 = scmp.ne.s32.totalorder %s154, %s155
      %p164 = scmp.eq.s32.totalorder %s39, 0
      %p165 = por %p163, %p164
      %p166 = scmp.ne.s32.totalorder %s154, %s155
      %p167 = scmp.eq.s32.totalorder %s40, 4
      %p168 = por %p166, %p167
      %p170 = scmp.ne.s32.totalorder %s155, %s169
      %p171 = scmp.eq.s32.totalorder %s40, 0
      %p172 = por %p170, %p171
      %s174 = sadd.s32 %s173, 1
      %p177 = scmp.eq.s32.totalorder %s34, 4
      %p178 = scmp.ne.s32.totalorder %s173, %s175
      %p179 = scmp.eq.s32.totalorder %s34, 0
      %p180 = por %p178, %p179
      %p181 = scmp.ne.s32.totalorder %s173, %s175
      %p182 = scmp.eq.s32.totalorder %s39, 4
      %p183 = por %p181, %p182
      %p184 = scmp.ne.s32.totalorder %s175, %s176
      %p185 = scmp.eq.s32.totalorder %s39, 0
      %p186 = por %p184, %p185
      %p187 = scmp.ne.s32.totalorder %s175, %s176
      %p188 = scmp.eq.s32.totalorder %s40, 4
      %p189 = por %p187, %p188
      %p191 = scmp.ne.s32.totalorder %s176, %s190
      %p192 = scmp.eq.s32.totalorder %s40, 0
      %p193 = por %p191, %p192
      %s195 = sadd.s32 %s194, 1
      %p198 = scmp.eq.s32.totalorder %s34, 4
      %p199 = scmp.ne.s32.totalorder %s194, %s196
      %p200 = scmp.eq.s32.totalorder %s34, 0
      %p201 = por %p199, %p200
      %p202 = scmp.ne.s32.totalorder %s194, %s196
      %p203 = scmp.eq.s32.totalorder %s39, 4
      %p204 = por %p202, %p203
      %p205 = scmp.ne.s32.totalorder %s196, %s197
      %p206 = scmp.eq.s32.totalorder %s39, 0
      %p207 = por %p205, %p206
      %p208 = scmp.ne.s32.totalorder %s196, %s197
      %p209 = scmp.eq.s32.totalorder %s40, 4
      %p210 = por %p208, %p209
      %p212 = scmp.ne.s32.totalorder %s197, %s211
      %p213 = scmp.eq.s32.totalorder %s40, 0
      %p214 = por %p212, %p213
      %s215 = sld [smem:[#allocation4 + %s34]]
      %s216 = sld [smem:[#allocation4 + %s41]]
      %s217 = ssub.s32 %s215, %s216
      %p218 = scmp.eq.s32.totalorder %s217, 0
      %s220 = sadd.s32 %s219, 1
      %s221 = scalar_select %p218, %s219, %s220
      %p224 = pneg %p218
      %p225 = scmp.eq.s32.totalorder %s34, 4
      %p226 = por %p224, %p225
      %p227 = scmp.ne.s32.totalorder %s219, %s222
      %p228 = scmp.eq.s32.totalorder %s34, 0
      %p229 = por %p227, %p228
      %p230 = scmp.ne.s32.totalorder %s219, %s222
      %p231 = scmp.eq.s32.totalorder %s39, 4
      %p232 = por %p230, %p231
      %p233 = scmp.ne.s32.totalorder %s222, %s223
      %p234 = scmp.eq.s32.totalorder %s39, 0
      %p235 = por %p233, %p234
      %p236 = scmp.ne.s32.totalorder %s222, %s223
      %p237 = scmp.eq.s32.totalorder %s40, 4
      %p238 = por %p236, %p237
      %p240 = scmp.ne.s32.totalorder %s223, %s239
      %p241 = scmp.eq.s32.totalorder %s40, 0
      %p242 = por %p240, %p241
      %p243 = scmp.le.s32.totalorder 1, %s34
      %p244 = scmp.lt.s32.totalorder %s34, 6
      %p245 = pnand %p243, %p244
      %p246 = pneg %p245
      // Predicated region
      $region9: #{tpu_custom_call.1} parent=5 // pred_check
        _
      $region10: #{tpu_custom_call.1} parent=5 // pred_check_branch
        %248 = sbr.rel (%p245) target = $region12
      $region11: #{tpu_custom_call.1} parent=5 // pred_region
        %s249 = ssub.s32 %s34, 1
        // Predicated region
        $region13: #{tpu_custom_call.1} parent=11 // pred_check
          %p250 = pneg %p81
        $region14: #{tpu_custom_call.1} parent=11 // pred_check_branch
          %252 = sbr.rel (%p250) target = $region16
        $region15: #{tpu_custom_call.1} parent=11 // pred_region
          _
        $region16: #{tpu_custom_call.1} parent=11 // pred_fallthru
          _
        // Predicated region
        $region17: #{tpu_custom_call.1} parent=11 // pred_check
          %p253 = pneg %p102
        $region18: #{tpu_custom_call.1} parent=11 // pred_check_branch
          %255 = sbr.rel (%p253) target = $region20
        $region19: #{tpu_custom_call.1} parent=11 // pred_region
          _
        $region20: #{tpu_custom_call.1} parent=11 // pred_fallthru
          _
        // Predicated region
        $region21: #{tpu_custom_call.1} parent=11 // pred_check
          %p256 = pneg %p123
        $region22: #{tpu_custom_call.1} parent=11 // pred_check_branch
          %258 = sbr.rel (%p256) target = $region24
        $region23: #{tpu_custom_call.1} parent=11 // pred_region
          _
        $region24: #{tpu_custom_call.1} parent=11 // pred_fallthru
          _
        // Predicated region
        $region25: #{tpu_custom_call.1} parent=11 // pred_check
          %p259 = pneg %p144
        $region26: #{tpu_custom_call.1} parent=11 // pred_check_branch
          %261 = sbr.rel (%p259) target = $region28
        $region27: #{tpu_custom_call.1} parent=11 // pred_region
          _
        $region28: #{tpu_custom_call.1} parent=11 // pred_fallthru
          _
        // Predicated region
        $region29: #{tpu_custom_call.1} parent=11 // pred_check
          %p262 = pneg %p165
        $region30: #{tpu_custom_call.1} parent=11 // pred_check_branch
          %264 = sbr.rel (%p262) target = $region32
        $region31: #{tpu_custom_call.1} parent=11 // pred_region
          _
        $region32: #{tpu_custom_call.1} parent=11 // pred_fallthru
          _
        // Predicated region
        $region33: #{tpu_custom_call.1} parent=11 // pred_check
          %p265 = pneg %p186
        $region34: #{tpu_custom_call.1} parent=11 // pred_check_branch
          %267 = sbr.rel (%p265) target = $region36
        $region35: #{tpu_custom_call.1} parent=11 // pred_region
          _
        $region36: #{tpu_custom_call.1} parent=11 // pred_fallthru
          _
        // Predicated region
        $region37: #{tpu_custom_call.1} parent=11 // pred_check
          %p268 = pneg %p207
        $region38: #{tpu_custom_call.1} parent=11 // pred_check_branch
          %270 = sbr.rel (%p268) target = $region40
        $region39: #{tpu_custom_call.1} parent=11 // pred_region
          _
        $region40: #{tpu_custom_call.1} parent=11 // pred_fallthru
          _
      $region12: #{tpu_custom_call.1} parent=5 // pred_fallthru
        _
      %p271 = scmp.lt.s32.totalorder %s34, 5
      // Predicated region
      $region41: #{tpu_custom_call.1} parent=5 // pred_check
        %p272 = pneg %p271
      $region42: #{tpu_custom_call.1} parent=5 // pred_check_branch
        %274 = sbr.rel (%p272) target = $region44
      $region43: #{tpu_custom_call.1} parent=5 // pred_region
        // Predicated region
        $region45: #{tpu_custom_call.1} parent=43 // pred_check
          %p275 = pneg %p54
        $region46: #{tpu_custom_call.1} parent=43 // pred_check_branch
          %277 = sbr.rel (%p275) target = $region48
        $region47: #{tpu_custom_call.1} parent=43 // pred_region
          %s278 = smul.u32 24, %s34
          %p279 = scmp.lt.s32.totalorder %s278, 119
          %s280 = scalar_select %p279, %s278, 119
          %s281 = smul.addr %s280, 8
          %s282 = scalar_lea.vmem %s3, %s281
          %s283 = smul.u32 24, %s34
        $region48: #{tpu_custom_call.1} parent=43 // pred_fallthru
          _
      $region44: #{tpu_custom_call.1} parent=5 // pred_fallthru
        _
      %p284 = scmp.le.s32.totalorder 1, %s34
      %p285 = scmp.lt.s32.totalorder %s34, 6
      %p286 = pnand %p284, %p285
      %p287 = pneg %p286
      // Predicated region
      $region49: #{tpu_custom_call.1} parent=5 // pred_check
        _
      $region50: #{tpu_custom_call.1} parent=5 // pred_check_branch
        %289 = sbr.rel (%p286) target = $region52
      $region51: #{tpu_custom_call.1} parent=5 // pred_region
        %s290 = ssub.s32 %s34, 1
        %s291 = smul.u32 24, %s39
        %p292 = scmp.lt.s32.totalorder %s291, 119
        %s293 = scalar_select %p292, %s291, 119
        %s294 = smul.addr %s293, 8
        %s295 = scalar_lea.vmem %s3, %s294
        %p296 = pneg %p60
        %p297 = pneg %p57
        %p298 = pneg %p81
        %p299 = pneg %p78
        %p300 = pneg %p102
        %p301 = pneg %p99
        %p302 = pneg %p123
        %p303 = pneg %p120
        %p304 = pneg %p144
        %p305 = pneg %p141
        %p306 = pneg %p165
        %p307 = pneg %p162
        %p308 = pneg %p186
        %p309 = pneg %p183
        %p310 = pneg %p207
        %p311 = pneg %p204
        %p312 = pneg %p235
        %p313 = pneg %p232
        %s314 = sand.u32 %s222, 1
        %s315 = scalar_lea.sflag [#allocation8], %s314
        %s316 = sand.u32 %s222, 1
        %s317 = smul.addr %s316, 8
        %s318 = scalar_lea.vmem [#allocation7], %s317
        %s319 = smul.u32 24, %s39
        %p320 = scmp.lt.s32.totalorder %s319, 119
        %s321 = scalar_select %p320, %s319, 119
        %s322 = smul.addr %s321, 8
        %s323 = scalar_lea.vmem %s3, %s322
        %s324 = smul.u32 24, %s39
        %s325 = sld [smem:[#allocation4 + %s39]]
        %s326 = sld [smem:[#allocation5 + %s39]]
        %p327 = scmp.eq.s32.totalorder %s326, 1
        // Predicated region
        $region53: #{tpu_custom_call.1} parent=51 // pred_check
          %p328 = pneg %p327
        $region54: #{tpu_custom_call.1} parent=51 // pred_check_branch
          %330 = sbr.rel (%p328) target = $region56
        $region55: #{tpu_custom_call.1} parent=51 // pred_region
          %331 = vst [vmem:[#allocation2] sm:$0xff] 0.0
        $region56: #{tpu_custom_call.1} parent=51 // pred_fallthru
          _
        %v332 = vld [vmem:[%s323] sm:$0xff]
        %v333 = vld [vmem:[%s323 + $0x8] sm:$0xff]
        %v334 = vld [vmem:[%s323 + $0x10] sm:$0xff]
        %v335 = vld [vmem:[%s323 + $0x18] sm:$0xff]
        %v336 = vld [vmem:[%s323 + $0x20] sm:$0xff]
        %v337 = vld [vmem:[%s323 + $0x28] sm:$0xff]
        %v338 = vld [vmem:[%s323 + $0x30] sm:$0xff]
        %v339 = vld [vmem:[%s323 + $0x38] sm:$0xff]
        %v340 = vld [vmem:[%s323 + $0x40] sm:$0xff]
        %v341 = vld [vmem:[%s323 + $0x48] sm:$0xff]
        %v342 = vld [vmem:[%s323 + $0x50] sm:$0xff]
        %v343 = vld [vmem:[%s323 + $0x58] sm:$0xff]
        %v344 = vld [vmem:[%s323 + $0x60] sm:$0xff]
        %v345 = vld [vmem:[%s323 + $0x68] sm:$0xff]
        %v346 = vld [vmem:[%s323 + $0x70] sm:$0xff]
        %v347 = vld [vmem:[%s323 + $0x78] sm:$0xff]
        %v348 = vld [vmem:[%s323 + $0x80] sm:$0xff]
        %v349 = vld [vmem:[%s323 + $0x88] sm:$0xff]
        %v350 = vld [vmem:[%s323 + $0x90] sm:$0xff]
        %v351 = vld [vmem:[%s323 + $0x98] sm:$0xff]
        %v352 = vld [vmem:[%s323 + $0xa0] sm:$0xff]
        %v353 = vld [vmem:[%s323 + $0xa8] sm:$0xff]
        %v354 = vld [vmem:[%s323 + $0xb0] sm:$0xff]
        %v355 = vld [vmem:[%s323 + $0xb8] sm:$0xff]
        %v356 = vld [vmem:[%s5] sm:$0x1]
        %v357 = vld [vmem:[%s4] sm:$0x1]
        %359 = vset.pattern.permute.xlu0 0
        %360 = vperm.xlu0 %359, %v332
        %v361 = vpop.permute.xlu0 %360
        %364 = vset.pattern.permute.xlu0 0
        %365 = vperm.xlu0 %364, %v333
        %v366 = vpop.permute.xlu0 %365
        %369 = vset.pattern.permute.xlu0 0
        %370 = vperm.xlu0 %369, %v334
        %v371 = vpop.permute.xlu0 %370
        %374 = vset.pattern.permute.xlu0 0
        %375 = vperm.xlu0 %374, %v335
        %v376 = vpop.permute.xlu0 %375
        %379 = vset.pattern.permute.xlu0 0
        %380 = vperm.xlu0 %379, %v336
        %v381 = vpop.permute.xlu0 %380
        %384 = vset.pattern.permute.xlu0 0
        %385 = vperm.xlu0 %384, %v337
        %v386 = vpop.permute.xlu0 %385
        %389 = vset.pattern.permute.xlu0 0
        %390 = vperm.xlu0 %389, %v338
        %v391 = vpop.permute.xlu0 %390
        %394 = vset.pattern.permute.xlu0 0
        %395 = vperm.xlu0 %394, %v339
        %v396 = vpop.permute.xlu0 %395
        %399 = vset.pattern.permute.xlu0 0
        %400 = vperm.xlu0 %399, %v340
        %v401 = vpop.permute.xlu0 %400
        %404 = vset.pattern.permute.xlu0 0
        %405 = vperm.xlu0 %404, %v341
        %v406 = vpop.permute.xlu0 %405
        %409 = vset.pattern.permute.xlu0 0
        %410 = vperm.xlu0 %409, %v342
        %v411 = vpop.permute.xlu0 %410
        %414 = vset.pattern.permute.xlu0 0
        %415 = vperm.xlu0 %414, %v343
        %v416 = vpop.permute.xlu0 %415
        %419 = vset.pattern.permute.xlu0 0
        %420 = vperm.xlu0 %419, %v344
        %v421 = vpop.permute.xlu0 %420
        %424 = vset.pattern.permute.xlu0 0
        %425 = vperm.xlu0 %424, %v345
        %v426 = vpop.permute.xlu0 %425
        %429 = vset.pattern.permute.xlu0 0
        %430 = vperm.xlu0 %429, %v346
        %v431 = vpop.permute.xlu0 %430
        %434 = vset.pattern.permute.xlu0 0
        %435 = vperm.xlu0 %434, %v347
        %v436 = vpop.permute.xlu0 %435
        %439 = vset.pattern.permute.xlu0 0
        %440 = vperm.xlu0 %439, %v348
        %v441 = vpop.permute.xlu0 %440
        %444 = vset.pattern.permute.xlu0 0
        %445 = vperm.xlu0 %444, %v349
        %v446 = vpop.permute.xlu0 %445
        %449 = vset.pattern.permute.xlu0 0
        %450 = vperm.xlu0 %449, %v350
        %v451 = vpop.permute.xlu0 %450
        %454 = vset.pattern.permute.xlu0 0
        %455 = vperm.xlu0 %454, %v351
        %v456 = vpop.permute.xlu0 %455
        %459 = vset.pattern.permute.xlu0 0
        %460 = vperm.xlu0 %459, %v352
        %v461 = vpop.permute.xlu0 %460
        %464 = vset.pattern.permute.xlu0 0
        %465 = vperm.xlu0 %464, %v353
        %v466 = vpop.permute.xlu0 %465
        %469 = vset.pattern.permute.xlu0 0
        %470 = vperm.xlu0 %469, %v354
        %v471 = vpop.permute.xlu0 %470
        %474 = vset.pattern.permute.xlu0 0
        %475 = vperm.xlu0 %474, %v355
        %v476 = vpop.permute.xlu0 %475
        %v478 = vlaneseq
        %v479 = vshrl.u32 %v478, 7
        %v480 = vsub.s32 0, %v479
        %v481 = vrot.slane %v357, %v480
        %v482 = vmul.f32 %v361, %v481
        %v483 = vmul.f32 %v366, %v481
        %v484 = vmul.f32 %v371, %v481
        %v485 = vmul.f32 %v376, %v481
        %v486 = vmul.f32 %v381, %v481
        %v487 = vmul.f32 %v386, %v481
        %v488 = vmul.f32 %v391, %v481
        %v489 = vmul.f32 %v396, %v481
        %v490 = vmul.f32 %v401, %v481
        %v491 = vmul.f32 %v406, %v481
        %v492 = vmul.f32 %v411, %v481
        %v493 = vmul.f32 %v416, %v481
        %v494 = vmul.f32 %v421, %v481
        %v495 = vmul.f32 %v426, %v481
        %v496 = vmul.f32 %v431, %v481
        %v497 = vmul.f32 %v436, %v481
        %v498 = vmul.f32 %v441, %v481
        %v499 = vmul.f32 %v446, %v481
        %v500 = vmul.f32 %v451, %v481
        %v501 = vmul.f32 %v456, %v481
        %v502 = vmul.f32 %v461, %v481
        %v503 = vmul.f32 %v466, %v481
        %v504 = vmul.f32 %v471, %v481
        %v505 = vmul.f32 %v476, %v481
        %v507 = vlaneseq
        %v508 = vshrl.u32 %v507, 7
        %v509 = vsub.s32 0, %v508
        %v510 = vrot.slane %v356, %v509
        %v512 = vadd.f32 %v510, %v482
        %v513 = vadd.f32 %v510, %v483
        %v514 = vadd.f32 %v510, %v484
        %v515 = vadd.f32 %v510, %v485
        %v516 = vadd.f32 %v510, %v486
        %v517 = vadd.f32 %v510, %v487
        %v518 = vadd.f32 %v510, %v488
        %v519 = vadd.f32 %v510, %v489
        %v520 = vadd.f32 %v510, %v490
        %v521 = vadd.f32 %v510, %v491
        %v522 = vadd.f32 %v510, %v492
        %v523 = vadd.f32 %v510, %v493
        %v524 = vadd.f32 %v510, %v494
        %v525 = vadd.f32 %v510, %v495
        %v526 = vadd.f32 %v510, %v496
        %v527 = vadd.f32 %v510, %v497
        %v528 = vadd.f32 %v510, %v498
        %v529 = vadd.f32 %v510, %v499
        %v530 = vadd.f32 %v510, %v500
        %v531 = vadd.f32 %v510, %v501
        %v532 = vadd.f32 %v510, %v502
        %v533 = vadd.f32 %v510, %v503
        %v534 = vadd.f32 %v510, %v504
        %v535 = vadd.f32 %v510, %v505
        %v536 = vld [vmem:[%s4 + $0x1] sm:$0x1]
        %537 = vset.pattern.permute.xlu0 1
        %538 = vperm.xlu0 %537, %v332
        %v539 = vpop.permute.xlu0 %538
        %541 = vset.pattern.permute.xlu0 1
        %542 = vperm.xlu0 %541, %v333
        %v543 = vpop.permute.xlu0 %542
        %545 = vset.pattern.permute.xlu0 1
        %546 = vperm.xlu0 %545, %v334
        %v547 = vpop.permute.xlu0 %546
        %549 = vset.pattern.permute.xlu0 1
        %550 = vperm.xlu0 %549, %v335
        %v551 = vpop.permute.xlu0 %550
        %553 = vset.pattern.permute.xlu0 1
        %554 = vperm.xlu0 %553, %v336
        %v555 = vpop.permute.xlu0 %554
        %557 = vset.pattern.permute.xlu0 1
        %558 = vperm.xlu0 %557, %v337
        %v559 = vpop.permute.xlu0 %558
        %561 = vset.pattern.permute.xlu0 1
        %562 = vperm.xlu0 %561, %v338
        %v563 = vpop.permute.xlu0 %562
        %565 = vset.pattern.permute.xlu0 1
        %566 = vperm.xlu0 %565, %v339
        %v567 = vpop.permute.xlu0 %566
        %569 = vset.pattern.permute.xlu0 1
        %570 = vperm.xlu0 %569, %v340
        %v571 = vpop.permute.xlu0 %570
        %573 = vset.pattern.permute.xlu0 1
        %574 = vperm.xlu0 %573, %v341
        %v575 = vpop.permute.xlu0 %574
        %577 = vset.pattern.permute.xlu0 1
        %578 = vperm.xlu0 %577, %v342
        %v579 = vpop.permute.xlu0 %578
        %581 = vset.pattern.permute.xlu0 1
        %582 = vperm.xlu0 %581, %v343
        %v583 = vpop.permute.xlu0 %582
        %585 = vset.pattern.permute.xlu0 1
        %586 = vperm.xlu0 %585, %v344
        %v587 = vpop.permute.xlu0 %586
        %589 = vset.pattern.permute.xlu0 1
        %590 = vperm.xlu0 %589, %v345
        %v591 = vpop.permute.xlu0 %590
        %593 = vset.pattern.permute.xlu0 1
        %594 = vperm.xlu0 %593, %v346
        %v595 = vpop.permute.xlu0 %594
        %597 = vset.pattern.permute.xlu0 1
        %598 = vperm.xlu0 %597, %v347
        %v599 = vpop.permute.xlu0 %598
        %601 = vset.pattern.permute.xlu0 1
        %602 = vperm.xlu0 %601, %v348
        %v603 = vpop.permute.xlu0 %602
        %605 = vset.pattern.permute.xlu0 1
        %606 = vperm.xlu0 %605, %v349
        %v607 = vpop.permute.xlu0 %606
        %609 = vset.pattern.permute.xlu0 1
        %610 = vperm.xlu0 %609, %v350
        %v611 = vpop.permute.xlu0 %610
        %613 = vset.pattern.permute.xlu0 1
        %614 = vperm.xlu0 %613, %v351
        %v615 = vpop.permute.xlu0 %614
        %617 = vset.pattern.permute.xlu0 1
        %618 = vperm.xlu0 %617, %v352
        %v619 = vpop.permute.xlu0 %618
        %621 = vset.pattern.permute.xlu0 1
        %622 = vperm.xlu0 %621, %v353
        %v623 = vpop.permute.xlu0 %622
        %625 = vset.pattern.permute.xlu0 1
        %626 = vperm.xlu0 %625, %v354
        %v627 = vpop.permute.xlu0 %626
        %629 = vset.pattern.permute.xlu0 1
        %630 = vperm.xlu0 %629, %v355
        %v631 = vpop.permute.xlu0 %630
        %v633 = vlaneseq
        %v634 = vshrl.u32 %v633, 7
        %v635 = vsub.s32 0, %v634
        %v636 = vrot.slane %v536, %v635
        %v637 = vmul.f32 %v539, %v636
        %v638 = vmul.f32 %v543, %v636
        %v639 = vmul.f32 %v547, %v636
        %v640 = vmul.f32 %v551, %v636
        %v641 = vmul.f32 %v555, %v636
        %v642 = vmul.f32 %v559, %v636
        %v643 = vmul.f32 %v563, %v636
        %v644 = vmul.f32 %v567, %v636
        %v645 = vmul.f32 %v571, %v636
        %v646 = vmul.f32 %v575, %v636
        %v647 = vmul.f32 %v579, %v636
        %v648 = vmul.f32 %v583, %v636
        %v649 = vmul.f32 %v587, %v636
        %v650 = vmul.f32 %v591, %v636
        %v651 = vmul.f32 %v595, %v636
        %v652 = vmul.f32 %v599, %v636
        %v653 = vmul.f32 %v603, %v636
        %v654 = vmul.f32 %v607, %v636
        %v655 = vmul.f32 %v611, %v636
        %v656 = vmul.f32 %v615, %v636
        %v657 = vmul.f32 %v619, %v636
        %v658 = vmul.f32 %v623, %v636
        %v659 = vmul.f32 %v627, %v636
        %v660 = vmul.f32 %v631, %v636
        %v661 = vadd.f32 %v512, %v637
        %v662 = vadd.f32 %v513, %v638
        %v663 = vadd.f32 %v514, %v639
        %v664 = vadd.f32 %v515, %v640
        %v665 = vadd.f32 %v516, %v641
        %v666 = vadd.f32 %v517, %v642
        %v667 = vadd.f32 %v518, %v643
        %v668 = vadd.f32 %v519, %v644
        %v669 = vadd.f32 %v520, %v645
        %v670 = vadd.f32 %v521, %v646
        %v671 = vadd.f32 %v522, %v647
        %v672 = vadd.f32 %v523, %v648
        %v673 = vadd.f32 %v524, %v649
        %v674 = vadd.f32 %v525, %v650
        %v675 = vadd.f32 %v526, %v651
        %v676 = vadd.f32 %v527, %v652
        %v677 = vadd.f32 %v528, %v653
        %v678 = vadd.f32 %v529, %v654
        %v679 = vadd.f32 %v530, %v655
        %v680 = vadd.f32 %v531, %v656
        %v681 = vadd.f32 %v532, %v657
        %v682 = vadd.f32 %v533, %v658
        %v683 = vadd.f32 %v534, %v659
        %v684 = vadd.f32 %v535, %v660
        %v685 = vld [vmem:[%s4 + $0x2] sm:$0x1]
        %686 = vset.pattern.permute.xlu0 2
        %687 = vperm.xlu0 %686, %v332
        %v688 = vpop.permute.xlu0 %687
        %690 = vset.pattern.permute.xlu0 2
        %691 = vperm.xlu0 %690, %v333
        %v692 = vpop.permute.xlu0 %691
        %694 = vset.pattern.permute.xlu0 2
        %695 = vperm.xlu0 %694, %v334
        %v696 = vpop.permute.xlu0 %695
        %698 = vset.pattern.permute.xlu0 2
        %699 = vperm.xlu0 %698, %v335
        %v700 = vpop.permute.xlu0 %699
        %702 = vset.pattern.permute.xlu0 2
        %703 = vperm.xlu0 %702, %v336
        %v704 = vpop.permute.xlu0 %703
        %706 = vset.pattern.permute.xlu0 2
        %707 = vperm.xlu0 %706, %v337
        %v708 = vpop.permute.xlu0 %707
        %710 = vset.pattern.permute.xlu0 2
        %711 = vperm.xlu0 %710, %v338
        %v712 = vpop.permute.xlu0 %711
        %714 = vset.pattern.permute.xlu0 2
        %715 = vperm.xlu0 %714, %v339
        %v716 = vpop.permute.xlu0 %715
        %718 = vset.pattern.permute.xlu0 2
        %719 = vperm.xlu0 %718, %v340
        %v720 = vpop.permute.xlu0 %719
        %722 = vset.pattern.permute.xlu0 2
        %723 = vperm.xlu0 %722, %v341
        %v724 = vpop.permute.xlu0 %723
        %726 = vset.pattern.permute.xlu0 2
        %727 = vperm.xlu0 %726, %v342
        %v728 = vpop.permute.xlu0 %727
        %730 = vset.pattern.permute.xlu0 2
        %731 = vperm.xlu0 %730, %v343
        %v732 = vpop.permute.xlu0 %731
        %734 = vset.pattern.permute.xlu0 2
        %735 = vperm.xlu0 %734, %v344
        %v736 = vpop.permute.xlu0 %735
        %738 = vset.pattern.permute.xlu0 2
        %739 = vperm.xlu0 %738, %v345
        %v740 = vpop.permute.xlu0 %739
        %742 = vset.pattern.permute.xlu0 2
        %743 = vperm.xlu0 %742, %v346
        %v744 = vpop.permute.xlu0 %743
        %746 = vset.pattern.permute.xlu0 2
        %747 = vperm.xlu0 %746, %v347
        %v748 = vpop.permute.xlu0 %747
        %750 = vset.pattern.permute.xlu0 2
        %751 = vperm.xlu0 %750, %v348
        %v752 = vpop.permute.xlu0 %751
        %754 = vset.pattern.permute.xlu0 2
        %755 = vperm.xlu0 %754, %v349
        %v756 = vpop.permute.xlu0 %755
        %758 = vset.pattern.permute.xlu0 2
        %759 = vperm.xlu0 %758, %v350
        %v760 = vpop.permute.xlu0 %759
        %762 = vset.pattern.permute.xlu0 2
        %763 = vperm.xlu0 %762, %v351
        %v764 = vpop.permute.xlu0 %763
        %766 = vset.pattern.permute.xlu0 2
        %767 = vperm.xlu0 %766, %v352
        %v768 = vpop.permute.xlu0 %767
        %770 = vset.pattern.permute.xlu0 2
        %771 = vperm.xlu0 %770, %v353
        %v772 = vpop.permute.xlu0 %771
        %774 = vset.pattern.permute.xlu0 2
        %775 = vperm.xlu0 %774, %v354
        %v776 = vpop.permute.xlu0 %775
        %778 = vset.pattern.permute.xlu0 2
        %779 = vperm.xlu0 %778, %v355
        %v780 = vpop.permute.xlu0 %779
        %v782 = vlaneseq
        %v783 = vshrl.u32 %v782, 7
        %v784 = vsub.s32 0, %v783
        %v785 = vrot.slane %v685, %v784
        %v786 = vmul.f32 %v688, %v785
        %v787 = vmul.f32 %v692, %v785
        %v788 = vmul.f32 %v696, %v785
        %v789 = vmul.f32 %v700, %v785
        %v790 = vmul.f32 %v704, %v785
        %v791 = vmul.f32 %v708, %v785
        %v792 = vmul.f32 %v712, %v785
        %v793 = vmul.f32 %v716, %v785
        %v794 = vmul.f32 %v720, %v785
        %v795 = vmul.f32 %v724, %v785
        %v796 = vmul.f32 %v728, %v785
        %v797 = vmul.f32 %v732, %v785
        %v798 = vmul.f32 %v736, %v785
        %v799 = vmul.f32 %v740, %v785
        %v800 = vmul.f32 %v744, %v785
        %v801 = vmul.f32 %v748, %v785
        %v802 = vmul.f32 %v752, %v785
        %v803 = vmul.f32 %v756, %v785
        %v804 = vmul.f32 %v760, %v785
        %v805 = vmul.f32 %v764, %v785
        %v806 = vmul.f32 %v768, %v785
        %v807 = vmul.f32 %v772, %v785
        %v808 = vmul.f32 %v776, %v785
        %v809 = vmul.f32 %v780, %v785
        %v810 = vadd.f32 %v661, %v786
        %v811 = vadd.f32 %v662, %v787
        %v812 = vadd.f32 %v663, %v788
        %v813 = vadd.f32 %v664, %v789
        %v814 = vadd.f32 %v665, %v790
        %v815 = vadd.f32 %v666, %v791
        %v816 = vadd.f32 %v667, %v792
        %v817 = vadd.f32 %v668, %v793
        %v818 = vadd.f32 %v669, %v794
        %v819 = vadd.f32 %v670, %v795
        %v820 = vadd.f32 %v671, %v796
        %v821 = vadd.f32 %v672, %v797
        %v822 = vadd.f32 %v673, %v798
        %v823 = vadd.f32 %v674, %v799
        %v824 = vadd.f32 %v675, %v800
        %v825 = vadd.f32 %v676, %v801
        %v826 = vadd.f32 %v677, %v802
        %v827 = vadd.f32 %v678, %v803
        %v828 = vadd.f32 %v679, %v804
        %v829 = vadd.f32 %v680, %v805
        %v830 = vadd.f32 %v681, %v806
        %v831 = vadd.f32 %v682, %v807
        %v832 = vadd.f32 %v683, %v808
        %v833 = vadd.f32 %v684, %v809
        %v834 = vand.u32 2147483647, %v810
        %vm835 = vcmp.le.f32.partialorder %v834, 0.7853982
        %vm836 = vcmp.lt.s32.totalorder %v810, 0
        %v837 = vand.u32 %v810, 2139095040
        %v838 = vshrl.u32 %v837, 23
        %v839 = vsub.s32 %v838, 127
        %v840 = vand.u32 2147483647, %v810
        %v841 = vand.u32 %v840, 8388607
        %v842 = vor.u32 %v841, 8388608
        %v843 = vsub.s32 0, %v842
        %v844 = vadd.s32 %v839, 1
        %vm845 = vcmp.gt.s32.totalorder %v844, 0
        %v846 = vsel %vm845, %v844, 0
        %v847 = vshrl.u32 %v846, 5
        %v848 = vand.u32 %v846, 31
        %v849 = vsub.s32 32, %v848
        %v850 = vshrl.u32 683565275, %v849
        %v851 = vshll.u32 683565275, %v848
        %v852 = vshrl.u32 2475754826, %v849
        %v853 = vor.u32 %v851, %v852
        %v854 = vshll.u32 2475754826, %v848
        %v855 = vshrl.u32 2131351028, %v849
        %v856 = vor.u32 %v854, %v855
        %v857 = vshll.u32 2131351028, %v848
        %v858 = vshrl.u32 2102212464, %v849
        %v859 = vor.u32 %v857, %v858
        %v860 = vshll.u32 2102212464, %v848
        %v861 = vshrl.u32 920167782, %v849
        %v862 = vor.u32 %v860, %v861
        %v863 = vshll.u32 920167782, %v848
        %v864 = vshrl.u32 1326507024, %v849
        %v865 = vor.u32 %v863, %v864
        %vm866 = vcmp.lt.s32.totalorder %v847, 1
        %vm867 = vcmp.lt.s32.totalorder %v847, 2
        %vm868 = vcmp.lt.s32.totalorder %v847, 3
        %vm869 = vcmp.lt.s32.totalorder %v847, 4
        %v870 = vsel %vm866, %v850, %v853
        %v871 = vsel %vm869, %v859, 2102212464
        %v872 = vsel %vm868, %v856, %v871
        %v873 = vsel %vm867, %v870, %v872
        %v874 = vsel %vm866, %v853, %v856
        %v875 = vsel %vm869, %v862, 920167782
        %v876 = vsel %vm868, %v859, %v875
        %v877 = vsel %vm867, %v874, %v876
        %v878 = vsel %vm866, %v856, %v859
        %v879 = vsel %vm869, %v865, 1326507024
        %v880 = vsel %vm868, %v862, %v879
        %v881 = vsel %vm867, %v878, %v880
        %v882 = vshll.u32 %v842, 8
        %v883 = vmul.u32.u64.compose %v882, %v881
        %v884 = vextract.low.u32 %v883
        %v885 = vextract.high.u32 %v883
        %v886 = vmul.u32.u64.compose %v882, %v877
        %v887 = vextract.low.u32 %v886
        %v888 = vextract.high.u32 %v886
        %v889 = vmul.u32 %v882, %v873
        %v890 = vadd.s32 %v885, %v887
        %vm891 = vc.u32 %v885, %v887
        %v892 = vadd.s32 %v888, 1
        %v893 = vsel %vm891, %v892, %v888
        %v894 = vadd.s32 %v889, %v893
        %v895 = vadd.s32 %v894, 536870912
        %v896 = vshrl.u32 %v895, 30
        %v897 = vshll.u32 %v896, 30
        %v898 = vsub.s32 %v894, %v897
        %vm899 = vcmp.lt.s32.totalorder %v898, 0
        %v900 = vsub.s32 0, %v898
        %v901 = vsel %vm899, %v900, %v898
        %v902 = vclz %v901
        %v903 = vsub.s32 %v902, 2
        %vm904 = vcmp.gt.s32.totalorder 0, %v903
        %v905 = vsel %vm904, 0, %v903
        %v906 = vsub.s32 32, %v905
        %v907 = vshll.u32 %v898, %v905
        %v908 = vshrl.u32 %v890, %v906
        %v909 = vor.u32 %v907, %v908
        %v910 = vsub.s32 4294967266, %v905
        %v911 = vadd.s32 %v910, 127
        %v912 = vshll.u32 %v911, 23
        %v913 = vor.u32 4788187, %v912
        %v914 = vand.u32 2147483647, %v913
        %v916 = vcvt.s32.f32 %v909
        %v917 = vmul.f32 %v916, %v914
        %v918 = vxor.u32 %v917, 2147483648
        %v919 = vsel %vm836, %v918, %v917
        %v920 = vsub.s32 4, %v896
        %v921 = vsel %vm836, %v920, %v896
        %v922 = vsel %vm835, %v810, %v919
        %v923 = vsel %vm835, 0, %v921
        %v924 = vcosq.f32.pop %v922
        %v925 = vsinq.f32.pop %v922
        %vm926 = vweird.f32 %v810
        %v927 = vadd.s32 %v923, 3
        %v928 = vand.u32 %v927, 3
        %vm929 = vcmp.lt.s32.totalorder %v928, 2
        %vm930 = vcmp.eq.s32.totalorder %v928, 0
        %v931 = vxor.u32 %v925, 2147483648
        %v932 = vsel %vm930, %v924, %v931
        %vm933 = vcmp.eq.s32.totalorder %v928, 2
        %v934 = vxor.u32 %v924, 2147483648
        %v935 = vsel %vm933, %v934, %v925
        %v936 = vsel %vm929, %v932, %v935
        %v937 = vsel %vm926, nan, %v936
        %v938 = vand.u32 2147483647, %v811
        %vm939 = vcmp.le.f32.partialorder %v938, 0.7853982
        %vm940 = vcmp.lt.s32.totalorder %v811, 0
        %v941 = vand.u32 %v811, 2139095040
        %v942 = vshrl.u32 %v941, 23
        %v943 = vsub.s32 %v942, 127
        %v944 = vand.u32 2147483647, %v811
        %v945 = vand.u32 %v944, 8388607
        %v946 = vor.u32 %v945, 8388608
        %v947 = vsub.s32 0, %v946
        %v948 = vadd.s32 %v943, 1
        %vm949 = vcmp.gt.s32.totalorder %v948, 0
        %v950 = vsel %vm949, %v948, 0
        %v951 = vshrl.u32 %v950, 5
        %v952 = vand.u32 %v950, 31
        %v953 = vsub.s32 32, %v952
        %v954 = vshrl.u32 683565275, %v953
        %v955 = vshll.u32 683565275, %v952
        %v956 = vshrl.u32 2475754826, %v953
        %v957 = vor.u32 %v955, %v956
        %v958 = vshll.u32 2475754826, %v952
        %v959 = vshrl.u32 2131351028, %v953
        %v960 = vor.u32 %v958, %v959
        %v961 = vshll.u32 2131351028, %v952
        %v962 = vshrl.u32 2102212464, %v953
        %v963 = vor.u32 %v961, %v962
        %v964 = vshll.u32 2102212464, %v952
        %v965 = vshrl.u32 920167782, %v953
        %v966 = vor.u32 %v964, %v965
        %v967 = vshll.u32 920167782, %v952
        %v968 = vshrl.u32 1326507024, %v953
        %v969 = vor.u32 %v967, %v968
        %vm970 = vcmp.lt.s32.totalorder %v951, 1
        %vm971 = vcmp.lt.s32.totalorder %v951, 2
        %vm972 = vcmp.lt.s32.totalorder %v951, 3
        %vm973 = vcmp.lt.s32.totalorder %v951, 4
        %v974 = vsel %vm970, %v954, %v957
        %v975 = vsel %vm973, %v963, 2102212464
        %v976 = vsel %vm972, %v960, %v975
        %v977 = vsel %vm971, %v974, %v976
        %v978 = vsel %vm970, %v957, %v960
        %v979 = vsel %vm973, %v966, 920167782
        %v980 = vsel %vm972, %v963, %v979
        %v981 = vsel %vm971, %v978, %v980
        %v982 = vsel %vm970, %v960, %v963
        %v983 = vsel %vm973, %v969, 1326507024
        %v984 = vsel %vm972, %v966, %v983
        %v985 = vsel %vm971, %v982, %v984
        %v986 = vshll.u32 %v946, 8
        %v987 = vmul.u32.u64.compose %v986, %v985
        %v988 = vextract.low.u32 %v987
        %v989 = vextract.high.u32 %v987
        %v990 = vmul.u32.u64.compose %v986, %v981
        %v991 = vextract.low.u32 %v990
        %v992 = vextract.high.u32 %v990
        %v993 = vmul.u32 %v986, %v977
        %v994 = vadd.s32 %v989, %v991
        %vm995 = vc.u32 %v989, %v991
        %v996 = vadd.s32 %v992, 1
        %v997 = vsel %vm995, %v996, %v992
        %v998 = vadd.s32 %v993, %v997
        %v999 = vadd.s32 %v998, 536870912
        %v1000 = vshrl.u32 %v999, 30
        %v1001 = vshll.u32 %v1000, 30
        %v1002 = vsub.s32 %v998, %v1001
        %vm1003 = vcmp.lt.s32.totalorder %v1002, 0
        %v1004 = vsub.s32 0, %v1002
        %v1005 = vsel %vm1003, %v1004, %v1002
        %v1006 = vclz %v1005
        %v1007 = vsub.s32 %v1006, 2
        %vm1008 = vcmp.gt.s32.totalorder 0, %v1007
        %v1009 = vsel %vm1008, 0, %v1007
        %v1010 = vsub.s32 32, %v1009
        %v1011 = vshll.u32 %v1002, %v1009
        %v1012 = vshrl.u32 %v994, %v1010
        %v1013 = vor.u32 %v1011, %v1012
        %v1014 = vsub.s32 4294967266, %v1009
        %v1015 = vadd.s32 %v1014, 127
        %v1016 = vshll.u32 %v1015, 23
        %v1017 = vor.u32 4788187, %v1016
        %v1018 = vand.u32 2147483647, %v1017
        %v1020 = vcvt.s32.f32 %v1013
        %v1021 = vmul.f32 %v1020, %v1018
        %v1022 = vxor.u32 %v1021, 2147483648
        %v1023 = vsel %vm940, %v1022, %v1021
        %v1024 = vsub.s32 4, %v1000
        %v1025 = vsel %vm940, %v1024, %v1000
        %v1026 = vsel %vm939, %v811, %v1023
        %v1027 = vsel %vm939, 0, %v1025
        %v1028 = vcosq.f32.pop %v1026
        %v1029 = vsinq.f32.pop %v1026
        %vm1030 = vweird.f32 %v811
        %v1031 = vadd.s32 %v1027, 3
        %v1032 = vand.u32 %v1031, 3
        %vm1033 = vcmp.lt.s32.totalorder %v1032, 2
        %vm1034 = vcmp.eq.s32.totalorder %v1032, 0
        %v1035 = vxor.u32 %v1029, 2147483648
        %v1036 = vsel %vm1034, %v1028, %v1035
        %vm1037 = vcmp.eq.s32.totalorder %v1032, 2
        %v1038 = vxor.u32 %v1028, 2147483648
        %v1039 = vsel %vm1037, %v1038, %v1029
        %v1040 = vsel %vm1033, %v1036, %v1039
        %v1041 = vsel %vm1030, nan, %v1040
        %v1042 = vand.u32 2147483647, %v812
        %vm1043 = vcmp.le.f32.partialorder %v1042, 0.7853982
        %vm1044 = vcmp.lt.s32.totalorder %v812, 0
        %v1045 = vand.u32 %v812, 2139095040
        %v1046 = vshrl.u32 %v1045, 23
        %v1047 = vsub.s32 %v1046, 127
        %v1048 = vand.u32 2147483647, %v812
        %v1049 = vand.u32 %v1048, 8388607
        %v1050 = vor.u32 %v1049, 8388608
        %v1051 = vsub.s32 0, %v1050
        %v1052 = vadd.s32 %v1047, 1
        %vm1053 = vcmp.gt.s32.totalorder %v1052, 0
        %v1054 = vsel %vm1053, %v1052, 0
        %v1055 = vshrl.u32 %v1054, 5
        %v1056 = vand.u32 %v1054, 31
        %v1057 = vsub.s32 32, %v1056
        %v1058 = vshrl.u32 683565275, %v1057
        %v1059 = vshll.u32 683565275, %v1056
        %v1060 = vshrl.u32 2475754826, %v1057
        %v1061 = vor.u32 %v1059, %v1060
        %v1062 = vshll.u32 2475754826, %v1056
        %v1063 = vshrl.u32 2131351028, %v1057
        %v1064 = vor.u32 %v1062, %v1063
        %v1065 = vshll.u32 2131351028, %v1056
        %v1066 = vshrl.u32 2102212464, %v1057
        %v1067 = vor.u32 %v1065, %v1066
        %v1068 = vshll.u32 2102212464, %v1056
        %v1069 = vshrl.u32 920167782, %v1057
        %v1070 = vor.u32 %v1068, %v1069
        %v1071 = vshll.u32 920167782, %v1056
        %v1072 = vshrl.u32 1326507024, %v1057
        %v1073 = vor.u32 %v1071, %v1072
        %vm1074 = vcmp.lt.s32.totalorder %v1055, 1
        %vm1075 = vcmp.lt.s32.totalorder %v1055, 2
        %vm1076 = vcmp.lt.s32.totalorder %v1055, 3
        %vm1077 = vcmp.lt.s32.totalorder %v1055, 4
        %v1078 = vsel %vm1074, %v1058, %v1061
        %v1079 = vsel %vm1077, %v1067, 2102212464
        %v1080 = vsel %vm1076, %v1064, %v1079
        %v1081 = vsel %vm1075, %v1078, %v1080
        %v1082 = vsel %vm1074, %v1061, %v1064
        %v1083 = vsel %vm1077, %v1070, 920167782
        %v1084 = vsel %vm1076, %v1067, %v1083
        %v1085 = vsel %vm1075, %v1082, %v1084
        %v1086 = vsel %vm1074, %v1064, %v1067
        %v1087 = vsel %vm1077, %v1073, 1326507024
        %v1088 = vsel %vm1076, %v1070, %v1087
        %v1089 = vsel %vm1075, %v1086, %v1088
        %v1090 = vshll.u32 %v1050, 8
        %v1091 = vmul.u32.u64.compose %v1090, %v1089
        %v1092 = vextract.low.u32 %v1091
        %v1093 = vextract.high.u32 %v1091
        %v1094 = vmul.u32.u64.compose %v1090, %v1085
        %v1095 = vextract.low.u32 %v1094
        %v1096 = vextract.high.u32 %v1094
        %v1097 = vmul.u32 %v1090, %v1081
        %v1098 = vadd.s32 %v1093, %v1095
        %vm1099 = vc.u32 %v1093, %v1095
        %v1100 = vadd.s32 %v1096, 1
        %v1101 = vsel %vm1099, %v1100, %v1096
        %v1102 = vadd.s32 %v1097, %v1101
        %v1103 = vadd.s32 %v1102, 536870912
        %v1104 = vshrl.u32 %v1103, 30
        %v1105 = vshll.u32 %v1104, 30
        %v1106 = vsub.s32 %v1102, %v1105
        %vm1107 = vcmp.lt.s32.totalorder %v1106, 0
        %v1108 = vsub.s32 0, %v1106
        %v1109 = vsel %vm1107, %v1108, %v1106
        %v1110 = vclz %v1109
        %v1111 = vsub.s32 %v1110, 2
        %vm1112 = vcmp.gt.s32.totalorder 0, %v1111
        %v1113 = vsel %vm1112, 0, %v1111
        %v1114 = vsub.s32 32, %v1113
        %v1115 = vshll.u32 %v1106, %v1113
        %v1116 = vshrl.u32 %v1098, %v1114
        %v1117 = vor.u32 %v1115, %v1116
        %v1118 = vsub.s32 4294967266, %v1113
        %v1119 = vadd.s32 %v1118, 127
        %v1120 = vshll.u32 %v1119, 23
        %v1121 = vor.u32 4788187, %v1120
        %v1122 = vand.u32 2147483647, %v1121
        %v1124 = vcvt.s32.f32 %v1117
        %v1125 = vmul.f32 %v1124, %v1122
        %v1126 = vxor.u32 %v1125, 2147483648
        %v1127 = vsel %vm1044, %v1126, %v1125
        %v1128 = vsub.s32 4, %v1104
        %v1129 = vsel %vm1044, %v1128, %v1104
        %v1130 = vsel %vm1043, %v812, %v1127
        %v1131 = vsel %vm1043, 0, %v1129
        %v1132 = vcosq.f32.pop %v1130
        %v1133 = vsinq.f32.pop %v1130
        %vm1134 = vweird.f32 %v812
        %v1135 = vadd.s32 %v1131, 3
        %v1136 = vand.u32 %v1135, 3
        %vm1137 = vcmp.lt.s32.totalorder %v1136, 2
        %vm1138 = vcmp.eq.s32.totalorder %v1136, 0
        %v1139 = vxor.u32 %v1133, 2147483648
        %v1140 = vsel %vm1138, %v1132, %v1139
        %vm1141 = vcmp.eq.s32.totalorder %v1136, 2
        %v1142 = vxor.u32 %v1132, 2147483648
        %v1143 = vsel %vm1141, %v1142, %v1133
        %v1144 = vsel %vm1137, %v1140, %v1143
        %v1145 = vsel %vm1134, nan, %v1144
        %v1146 = vand.u32 2147483647, %v813
        %vm1147 = vcmp.le.f32.partialorder %v1146, 0.7853982
        %vm1148 = vcmp.lt.s32.totalorder %v813, 0
        %v1149 = vand.u32 %v813, 2139095040
        %v1150 = vshrl.u32 %v1149, 23
        %v1151 = vsub.s32 %v1150, 127
        %v1152 = vand.u32 2147483647, %v813
        %v1153 = vand.u32 %v1152, 8388607
        %v1154 = vor.u32 %v1153, 8388608
        %v1155 = vsub.s32 0, %v1154
        %v1156 = vadd.s32 %v1151, 1
        %vm1157 = vcmp.gt.s32.totalorder %v1156, 0
        %v1158 = vsel %vm1157, %v1156, 0
        %v1159 = vshrl.u32 %v1158, 5
        %v1160 = vand.u32 %v1158, 31
        %v1161 = vsub.s32 32, %v1160
        %v1162 = vshrl.u32 683565275, %v1161
        %v1163 = vshll.u32 683565275, %v1160
        %v1164 = vshrl.u32 2475754826, %v1161
        %v1165 = vor.u32 %v1163, %v1164
        %v1166 = vshll.u32 2475754826, %v1160
        %v1167 = vshrl.u32 2131351028, %v1161
        %v1168 = vor.u32 %v1166, %v1167
        %v1169 = vshll.u32 2131351028, %v1160
        %v1170 = vshrl.u32 2102212464, %v1161
        %v1171 = vor.u32 %v1169, %v1170
        %v1172 = vshll.u32 2102212464, %v1160
        %v1173 = vshrl.u32 920167782, %v1161
        %v1174 = vor.u32 %v1172, %v1173
        %v1175 = vshll.u32 920167782, %v1160
        %v1176 = vshrl.u32 1326507024, %v1161
        %v1177 = vor.u32 %v1175, %v1176
        %vm1178 = vcmp.lt.s32.totalorder %v1159, 1
        %vm1179 = vcmp.lt.s32.totalorder %v1159, 2
        %vm1180 = vcmp.lt.s32.totalorder %v1159, 3
        %vm1181 = vcmp.lt.s32.totalorder %v1159, 4
        %v1182 = vsel %vm1178, %v1162, %v1165
        %v1183 = vsel %vm1181, %v1171, 2102212464
        %v1184 = vsel %vm1180, %v1168, %v1183
        %v1185 = vsel %vm1179, %v1182, %v1184
        %v1186 = vsel %vm1178, %v1165, %v1168
        %v1187 = vsel %vm1181, %v1174, 920167782
        %v1188 = vsel %vm1180, %v1171, %v1187
        %v1189 = vsel %vm1179, %v1186, %v1188
        %v1190 = vsel %vm1178, %v1168, %v1171
        %v1191 = vsel %vm1181, %v1177, 1326507024
        %v1192 = vsel %vm1180, %v1174, %v1191
        %v1193 = vsel %vm1179, %v1190, %v1192
        %v1194 = vshll.u32 %v1154, 8
        %v1195 = vmul.u32.u64.compose %v1194, %v1193
        %v1196 = vextract.low.u32 %v1195
        %v1197 = vextract.high.u32 %v1195
        %v1198 = vmul.u32.u64.compose %v1194, %v1189
        %v1199 = vextract.low.u32 %v1198
        %v1200 = vextract.high.u32 %v1198
        %v1201 = vmul.u32 %v1194, %v1185
        %v1202 = vadd.s32 %v1197, %v1199
        %vm1203 = vc.u32 %v1197, %v1199
        %v1204 = vadd.s32 %v1200, 1
        %v1205 = vsel %vm1203, %v1204, %v1200
        %v1206 = vadd.s32 %v1201, %v1205
        %v1207 = vadd.s32 %v1206, 536870912
        %v1208 = vshrl.u32 %v1207, 30
        %v1209 = vshll.u32 %v1208, 30
        %v1210 = vsub.s32 %v1206, %v1209
        %vm1211 = vcmp.lt.s32.totalorder %v1210, 0
        %v1212 = vsub.s32 0, %v1210
        %v1213 = vsel %vm1211, %v1212, %v1210
        %v1214 = vclz %v1213
        %v1215 = vsub.s32 %v1214, 2
        %vm1216 = vcmp.gt.s32.totalorder 0, %v1215
        %v1217 = vsel %vm1216, 0, %v1215
        %v1218 = vsub.s32 32, %v1217
        %v1219 = vshll.u32 %v1210, %v1217
        %v1220 = vshrl.u32 %v1202, %v1218
        %v1221 = vor.u32 %v1219, %v1220
        %v1222 = vsub.s32 4294967266, %v1217
        %v1223 = vadd.s32 %v1222, 127
        %v1224 = vshll.u32 %v1223, 23
        %v1225 = vor.u32 4788187, %v1224
        %v1226 = vand.u32 2147483647, %v1225
        %v1228 = vcvt.s32.f32 %v1221
        %v1229 = vmul.f32 %v1228, %v1226
        %v1230 = vxor.u32 %v1229, 2147483648
        %v1231 = vsel %vm1148, %v1230, %v1229
        %v1232 = vsub.s32 4, %v1208
        %v1233 = vsel %vm1148, %v1232, %v1208
        %v1234 = vsel %vm1147, %v813, %v1231
        %v1235 = vsel %vm1147, 0, %v1233
        %v1236 = vcosq.f32.pop %v1234
        %v1237 = vsinq.f32.pop %v1234
        %vm1238 = vweird.f32 %v813
        %v1239 = vadd.s32 %v1235, 3
        %v1240 = vand.u32 %v1239, 3
        %vm1241 = vcmp.lt.s32.totalorder %v1240, 2
        %vm1242 = vcmp.eq.s32.totalorder %v1240, 0
        %v1243 = vxor.u32 %v1237, 2147483648
        %v1244 = vsel %vm1242, %v1236, %v1243
        %vm1245 = vcmp.eq.s32.totalorder %v1240, 2
        %v1246 = vxor.u32 %v1236, 2147483648
        %v1247 = vsel %vm1245, %v1246, %v1237
        %v1248 = vsel %vm1241, %v1244, %v1247
        %v1249 = vsel %vm1238, nan, %v1248
        %v1250 = vand.u32 2147483647, %v814
        %vm1251 = vcmp.le.f32.partialorder %v1250, 0.7853982
        %vm1252 = vcmp.lt.s32.totalorder %v814, 0
        %v1253 = vand.u32 %v814, 2139095040
        %v1254 = vshrl.u32 %v1253, 23
        %v1255 = vsub.s32 %v1254, 127
        %v1256 = vand.u32 2147483647, %v814
        %v1257 = vand.u32 %v1256, 8388607
        %v1258 = vor.u32 %v1257, 8388608
        %v1259 = vsub.s32 0, %v1258
        %v1260 = vadd.s32 %v1255, 1
        %vm1261 = vcmp.gt.s32.totalorder %v1260, 0
        %v1262 = vsel %vm1261, %v1260, 0
        %v1263 = vshrl.u32 %v1262, 5
        %v1264 = vand.u32 %v1262, 31
        %v1265 = vsub.s32 32, %v1264
        %v1266 = vshrl.u32 683565275, %v1265
        %v1267 = vshll.u32 683565275, %v1264
        %v1268 = vshrl.u32 2475754826, %v1265
        %v1269 = vor.u32 %v1267, %v1268
        %v1270 = vshll.u32 2475754826, %v1264
        %v1271 = vshrl.u32 2131351028, %v1265
        %v1272 = vor.u32 %v1270, %v1271
        %v1273 = vshll.u32 2131351028, %v1264
        %v1274 = vshrl.u32 2102212464, %v1265
        %v1275 = vor.u32 %v1273, %v1274
        %v1276 = vshll.u32 2102212464, %v1264
        %v1277 = vshrl.u32 920167782, %v1265
        %v1278 = vor.u32 %v1276, %v1277
        %v1279 = vshll.u32 920167782, %v1264
        %v1280 = vshrl.u32 1326507024, %v1265
        %v1281 = vor.u32 %v1279, %v1280
        %vm1282 = vcmp.lt.s32.totalorder %v1263, 1
        %vm1283 = vcmp.lt.s32.totalorder %v1263, 2
        %vm1284 = vcmp.lt.s32.totalorder %v1263, 3
        %vm1285 = vcmp.lt.s32.totalorder %v1263, 4
        %v1286 = vsel %vm1282, %v1266, %v1269
        %v1287 = vsel %vm1285, %v1275, 2102212464
        %v1288 = vsel %vm1284, %v1272, %v1287
        %v1289 = vsel %vm1283, %v1286, %v1288
        %v1290 = vsel %vm1282, %v1269, %v1272
        %v1291 = vsel %vm1285, %v1278, 920167782
        %v1292 = vsel %vm1284, %v1275, %v1291
        %v1293 = vsel %vm1283, %v1290, %v1292
        %v1294 = vsel %vm1282, %v1272, %v1275
        %v1295 = vsel %vm1285, %v1281, 1326507024
        %v1296 = vsel %vm1284, %v1278, %v1295
        %v1297 = vsel %vm1283, %v1294, %v1296
        %v1298 = vshll.u32 %v1258, 8
        %v1299 = vmul.u32.u64.compose %v1298, %v1297
        %v1300 = vextract.low.u32 %v1299
        %v1301 = vextract.high.u32 %v1299
        %v1302 = vmul.u32.u64.compose %v1298, %v1293
        %v1303 = vextract.low.u32 %v1302
        %v1304 = vextract.high.u32 %v1302
        %v1305 = vmul.u32 %v1298, %v1289
        %v1306 = vadd.s32 %v1301, %v1303
        %vm1307 = vc.u32 %v1301, %v1303
        %v1308 = vadd.s32 %v1304, 1
        %v1309 = vsel %vm1307, %v1308, %v1304
        %v1310 = vadd.s32 %v1305, %v1309
        %v1311 = vadd.s32 %v1310, 536870912
        %v1312 = vshrl.u32 %v1311, 30
        %v1313 = vshll.u32 %v1312, 30
        %v1314 = vsub.s32 %v1310, %v1313
        %vm1315 = vcmp.lt.s32.totalorder %v1314, 0
        %v1316 = vsub.s32 0, %v1314
        %v1317 = vsel %vm1315, %v1316, %v1314
        %v1318 = vclz %v1317
        %v1319 = vsub.s32 %v1318, 2
        %vm1320 = vcmp.gt.s32.totalorder 0, %v1319
        %v1321 = vsel %vm1320, 0, %v1319
        %v1322 = vsub.s32 32, %v1321
        %v1323 = vshll.u32 %v1314, %v1321
        %v1324 = vshrl.u32 %v1306, %v1322
        %v1325 = vor.u32 %v1323, %v1324
        %v1326 = vsub.s32 4294967266, %v1321
        %v1327 = vadd.s32 %v1326, 127
        %v1328 = vshll.u32 %v1327, 23
        %v1329 = vor.u32 4788187, %v1328
        %v1330 = vand.u32 2147483647, %v1329
        %v1332 = vcvt.s32.f32 %v1325
        %v1333 = vmul.f32 %v1332, %v1330
        %v1334 = vxor.u32 %v1333, 2147483648
        %v1335 = vsel %vm1252, %v1334, %v1333
        %v1336 = vsub.s32 4, %v1312
        %v1337 = vsel %vm1252, %v1336, %v1312
        %v1338 = vsel %vm1251, %v814, %v1335
        %v1339 = vsel %vm1251, 0, %v1337
        %v1340 = vcosq.f32.pop %v1338
        %v1341 = vsinq.f32.pop %v1338
        %vm1342 = vweird.f32 %v814
        %v1343 = vadd.s32 %v1339, 3
        %v1344 = vand.u32 %v1343, 3
        %vm1345 = vcmp.lt.s32.totalorder %v1344, 2
        %vm1346 = vcmp.eq.s32.totalorder %v1344, 0
        %v1347 = vxor.u32 %v1341, 2147483648
        %v1348 = vsel %vm1346, %v1340, %v1347
        %vm1349 = vcmp.eq.s32.totalorder %v1344, 2
        %v1350 = vxor.u32 %v1340, 2147483648
        %v1351 = vsel %vm1349, %v1350, %v1341
        %v1352 = vsel %vm1345, %v1348, %v1351
        %v1353 = vsel %vm1342, nan, %v1352
        %v1354 = vand.u32 2147483647, %v815
        %vm1355 = vcmp.le.f32.partialorder %v1354, 0.7853982
        %vm1356 = vcmp.lt.s32.totalorder %v815, 0
        %v1357 = vand.u32 %v815, 2139095040
        %v1358 = vshrl.u32 %v1357, 23
        %v1359 = vsub.s32 %v1358, 127
        %v1360 = vand.u32 2147483647, %v815
        %v1361 = vand.u32 %v1360, 8388607
        %v1362 = vor.u32 %v1361, 8388608
        %v1363 = vsub.s32 0, %v1362
        %v1364 = vadd.s32 %v1359, 1
        %vm1365 = vcmp.gt.s32.totalorder %v1364, 0
        %v1366 = vsel %vm1365, %v1364, 0
        %v1367 = vshrl.u32 %v1366, 5
        %v1368 = vand.u32 %v1366, 31
        %v1369 = vsub.s32 32, %v1368
        %v1370 = vshrl.u32 683565275, %v1369
        %v1371 = vshll.u32 683565275, %v1368
        %v1372 = vshrl.u32 2475754826, %v1369
        %v1373 = vor.u32 %v1371, %v1372
        %v1374 = vshll.u32 2475754826, %v1368
        %v1375 = vshrl.u32 2131351028, %v1369
        %v1376 = vor.u32 %v1374, %v1375
        %v1377 = vshll.u32 2131351028, %v1368
        %v1378 = vshrl.u32 2102212464, %v1369
        %v1379 = vor.u32 %v1377, %v1378
        %v1380 = vshll.u32 2102212464, %v1368
        %v1381 = vshrl.u32 920167782, %v1369
        %v1382 = vor.u32 %v1380, %v1381
        %v1383 = vshll.u32 920167782, %v1368
        %v1384 = vshrl.u32 1326507024, %v1369
        %v1385 = vor.u32 %v1383, %v1384
        %vm1386 = vcmp.lt.s32.totalorder %v1367, 1
        %vm1387 = vcmp.lt.s32.totalorder %v1367, 2
        %vm1388 = vcmp.lt.s32.totalorder %v1367, 3
        %vm1389 = vcmp.lt.s32.totalorder %v1367, 4
        %v1390 = vsel %vm1386, %v1370, %v1373
        %v1391 = vsel %vm1389, %v1379, 2102212464
        %v1392 = vsel %vm1388, %v1376, %v1391
        %v1393 = vsel %vm1387, %v1390, %v1392
        %v1394 = vsel %vm1386, %v1373, %v1376
        %v1395 = vsel %vm1389, %v1382, 920167782
        %v1396 = vsel %vm1388, %v1379, %v1395
        %v1397 = vsel %vm1387, %v1394, %v1396
        %v1398 = vsel %vm1386, %v1376, %v1379
        %v1399 = vsel %vm1389, %v1385, 1326507024
        %v1400 = vsel %vm1388, %v1382, %v1399
        %v1401 = vsel %vm1387, %v1398, %v1400
        %v1402 = vshll.u32 %v1362, 8
        %v1403 = vmul.u32.u64.compose %v1402, %v1401
        %v1404 = vextract.low.u32 %v1403
        %v1405 = vextract.high.u32 %v1403
        %v1406 = vmul.u32.u64.compose %v1402, %v1397
        %v1407 = vextract.low.u32 %v1406
        %v1408 = vextract.high.u32 %v1406
        %v1409 = vmul.u32 %v1402, %v1393
        %v1410 = vadd.s32 %v1405, %v1407
        %vm1411 = vc.u32 %v1405, %v1407
        %v1412 = vadd.s32 %v1408, 1
        %v1413 = vsel %vm1411, %v1412, %v1408
        %v1414 = vadd.s32 %v1409, %v1413
        %v1415 = vadd.s32 %v1414, 536870912
        %v1416 = vshrl.u32 %v1415, 30
        %v1417 = vshll.u32 %v1416, 30
        %v1418 = vsub.s32 %v1414, %v1417
        %vm1419 = vcmp.lt.s32.totalorder %v1418, 0
        %v1420 = vsub.s32 0, %v1418
        %v1421 = vsel %vm1419, %v1420, %v1418
        %v1422 = vclz %v1421
        %v1423 = vsub.s32 %v1422, 2
        %vm1424 = vcmp.gt.s32.totalorder 0, %v1423
        %v1425 = vsel %vm1424, 0, %v1423
        %v1426 = vsub.s32 32, %v1425
        %v1427 = vshll.u32 %v1418, %v1425
        %v1428 = vshrl.u32 %v1410, %v1426
        %v1429 = vor.u32 %v1427, %v1428
        %v1430 = vsub.s32 4294967266, %v1425
        %v1431 = vadd.s32 %v1430, 127
        %v1432 = vshll.u32 %v1431, 23
        %v1433 = vor.u32 4788187, %v1432
        %v1434 = vand.u32 2147483647, %v1433
        %v1436 = vcvt.s32.f32 %v1429
        %v1437 = vmul.f32 %v1436, %v1434
        %v1438 = vxor.u32 %v1437, 2147483648
        %v1439 = vsel %vm1356, %v1438, %v1437
        %v1440 = vsub.s32 4, %v1416
        %v1441 = vsel %vm1356, %v1440, %v1416
        %v1442 = vsel %vm1355, %v815, %v1439
        %v1443 = vsel %vm1355, 0, %v1441
        %v1444 = vcosq.f32.pop %v1442
        %v1445 = vsinq.f32.pop %v1442
        %vm1446 = vweird.f32 %v815
        %v1447 = vadd.s32 %v1443, 3
        %v1448 = vand.u32 %v1447, 3
        %vm1449 = vcmp.lt.s32.totalorder %v1448, 2
        %vm1450 = vcmp.eq.s32.totalorder %v1448, 0
        %v1451 = vxor.u32 %v1445, 2147483648
        %v1452 = vsel %vm1450, %v1444, %v1451
        %vm1453 = vcmp.eq.s32.totalorder %v1448, 2
        %v1454 = vxor.u32 %v1444, 2147483648
        %v1455 = vsel %vm1453, %v1454, %v1445
        %v1456 = vsel %vm1449, %v1452, %v1455
        %v1457 = vsel %vm1446, nan, %v1456
        %v1458 = vand.u32 2147483647, %v816
        %vm1459 = vcmp.le.f32.partialorder %v1458, 0.7853982
        %vm1460 = vcmp.lt.s32.totalorder %v816, 0
        %v1461 = vand.u32 %v816, 2139095040
        %v1462 = vshrl.u32 %v1461, 23
        %v1463 = vsub.s32 %v1462, 127
        %v1464 = vand.u32 2147483647, %v816
        %v1465 = vand.u32 %v1464, 8388607
        %v1466 = vor.u32 %v1465, 8388608
        %v1467 = vsub.s32 0, %v1466
        %v1468 = vadd.s32 %v1463, 1
        %vm1469 = vcmp.gt.s32.totalorder %v1468, 0
        %v1470 = vsel %vm1469, %v1468, 0
        %v1471 = vshrl.u32 %v1470, 5
        %v1472 = vand.u32 %v1470, 31
        %v1473 = vsub.s32 32, %v1472
        %v1474 = vshrl.u32 683565275, %v1473
        %v1475 = vshll.u32 683565275, %v1472
        %v1476 = vshrl.u32 2475754826, %v1473
        %v1477 = vor.u32 %v1475, %v1476
        %v1478 = vshll.u32 2475754826, %v1472
        %v1479 = vshrl.u32 2131351028, %v1473
        %v1480 = vor.u32 %v1478, %v1479
        %v1481 = vshll.u32 2131351028, %v1472
        %v1482 = vshrl.u32 2102212464, %v1473
        %v1483 = vor.u32 %v1481, %v1482
        %v1484 = vshll.u32 2102212464, %v1472
        %v1485 = vshrl.u32 920167782, %v1473
        %v1486 = vor.u32 %v1484, %v1485
        %v1487 = vshll.u32 920167782, %v1472
        %v1488 = vshrl.u32 1326507024, %v1473
        %v1489 = vor.u32 %v1487, %v1488
        %vm1490 = vcmp.lt.s32.totalorder %v1471, 1
        %vm1491 = vcmp.lt.s32.totalorder %v1471, 2
        %vm1492 = vcmp.lt.s32.totalorder %v1471, 3
        %vm1493 = vcmp.lt.s32.totalorder %v1471, 4
        %v1494 = vsel %vm1490, %v1474, %v1477
        %v1495 = vsel %vm1493, %v1483, 2102212464
        %v1496 = vsel %vm1492, %v1480, %v1495
        %v1497 = vsel %vm1491, %v1494, %v1496
        %v1498 = vsel %vm1490, %v1477, %v1480
        %v1499 = vsel %vm1493, %v1486, 920167782
        %v1500 = vsel %vm1492, %v1483, %v1499
        %v1501 = vsel %vm1491, %v1498, %v1500
        %v1502 = vsel %vm1490, %v1480, %v1483
        %v1503 = vsel %vm1493, %v1489, 1326507024
        %v1504 = vsel %vm1492, %v1486, %v1503
        %v1505 = vsel %vm1491, %v1502, %v1504
        %v1506 = vshll.u32 %v1466, 8
        %v1507 = vmul.u32.u64.compose %v1506, %v1505
        %v1508 = vextract.low.u32 %v1507
        %v1509 = vextract.high.u32 %v1507
        %v1510 = vmul.u32.u64.compose %v1506, %v1501
        %v1511 = vextract.low.u32 %v1510
        %v1512 = vextract.high.u32 %v1510
        %v1513 = vmul.u32 %v1506, %v1497
        %v1514 = vadd.s32 %v1509, %v1511
        %vm1515 = vc.u32 %v1509, %v1511
        %v1516 = vadd.s32 %v1512, 1
        %v1517 = vsel %vm1515, %v1516, %v1512
        %v1518 = vadd.s32 %v1513, %v1517
        %v1519 = vadd.s32 %v1518, 536870912
        %v1520 = vshrl.u32 %v1519, 30
        %v1521 = vshll.u32 %v1520, 30
        %v1522 = vsub.s32 %v1518, %v1521
        %vm1523 = vcmp.lt.s32.totalorder %v1522, 0
        %v1524 = vsub.s32 0, %v1522
        %v1525 = vsel %vm1523, %v1524, %v1522
        %v1526 = vclz %v1525
        %v1527 = vsub.s32 %v1526, 2
        %vm1528 = vcmp.gt.s32.totalorder 0, %v1527
        %v1529 = vsel %vm1528, 0, %v1527
        %v1530 = vsub.s32 32, %v1529
        %v1531 = vshll.u32 %v1522, %v1529
        %v1532 = vshrl.u32 %v1514, %v1530
        %v1533 = vor.u32 %v1531, %v1532
        %v1534 = vsub.s32 4294967266, %v1529
        %v1535 = vadd.s32 %v1534, 127
        %v1536 = vshll.u32 %v1535, 23
        %v1537 = vor.u32 4788187, %v1536
        %v1538 = vand.u32 2147483647, %v1537
        %v1540 = vcvt.s32.f32 %v1533
        %v1541 = vmul.f32 %v1540, %v1538
        %v1542 = vxor.u32 %v1541, 2147483648
        %v1543 = vsel %vm1460, %v1542, %v1541
        %v1544 = vsub.s32 4, %v1520
        %v1545 = vsel %vm1460, %v1544, %v1520
        %v1546 = vsel %vm1459, %v816, %v1543
        %v1547 = vsel %vm1459, 0, %v1545
        %v1548 = vcosq.f32.pop %v1546
        %v1549 = vsinq.f32.pop %v1546
        %vm1550 = vweird.f32 %v816
        %v1551 = vadd.s32 %v1547, 3
        %v1552 = vand.u32 %v1551, 3
        %vm1553 = vcmp.lt.s32.totalorder %v1552, 2
        %vm1554 = vcmp.eq.s32.totalorder %v1552, 0
        %v1555 = vxor.u32 %v1549, 2147483648
        %v1556 = vsel %vm1554, %v1548, %v1555
        %vm1557 = vcmp.eq.s32.totalorder %v1552, 2
        %v1558 = vxor.u32 %v1548, 2147483648
        %v1559 = vsel %vm1557, %v1558, %v1549
        %v1560 = vsel %vm1553, %v1556, %v1559
        %v1561 = vsel %vm1550, nan, %v1560
        %v1562 = vand.u32 2147483647, %v817
        %vm1563 = vcmp.le.f32.partialorder %v1562, 0.7853982
        %vm1564 = vcmp.lt.s32.totalorder %v817, 0
        %v1565 = vand.u32 %v817, 2139095040
        %v1566 = vshrl.u32 %v1565, 23
        %v1567 = vsub.s32 %v1566, 127
        %v1568 = vand.u32 2147483647, %v817
        %v1569 = vand.u32 %v1568, 8388607
        %v1570 = vor.u32 %v1569, 8388608
        %v1571 = vsub.s32 0, %v1570
        %v1572 = vadd.s32 %v1567, 1
        %vm1573 = vcmp.gt.s32.totalorder %v1572, 0
        %v1574 = vsel %vm1573, %v1572, 0
        %v1575 = vshrl.u32 %v1574, 5
        %v1576 = vand.u32 %v1574, 31
        %v1577 = vsub.s32 32, %v1576
        %v1578 = vshrl.u32 683565275, %v1577
        %v1579 = vshll.u32 683565275, %v1576
        %v1580 = vshrl.u32 2475754826, %v1577
        %v1581 = vor.u32 %v1579, %v1580
        %v1582 = vshll.u32 2475754826, %v1576
        %v1583 = vshrl.u32 2131351028, %v1577
        %v1584 = vor.u32 %v1582, %v1583
        %v1585 = vshll.u32 2131351028, %v1576
        %v1586 = vshrl.u32 2102212464, %v1577
        %v1587 = vor.u32 %v1585, %v1586
        %v1588 = vshll.u32 2102212464, %v1576
        %v1589 = vshrl.u32 920167782, %v1577
        %v1590 = vor.u32 %v1588, %v1589
        %v1591 = vshll.u32 920167782, %v1576
        %v1592 = vshrl.u32 1326507024, %v1577
        %v1593 = vor.u32 %v1591, %v1592
        %vm1594 = vcmp.lt.s32.totalorder %v1575, 1
        %vm1595 = vcmp.lt.s32.totalorder %v1575, 2
        %vm1596 = vcmp.lt.s32.totalorder %v1575, 3
        %vm1597 = vcmp.lt.s32.totalorder %v1575, 4
        %v1598 = vsel %vm1594, %v1578, %v1581
        %v1599 = vsel %vm1597, %v1587, 2102212464
        %v1600 = vsel %vm1596, %v1584, %v1599
        %v1601 = vsel %vm1595, %v1598, %v1600
        %v1602 = vsel %vm1594, %v1581, %v1584
        %v1603 = vsel %vm1597, %v1590, 920167782
        %v1604 = vsel %vm1596, %v1587, %v1603
        %v1605 = vsel %vm1595, %v1602, %v1604
        %v1606 = vsel %vm1594, %v1584, %v1587
        %v1607 = vsel %vm1597, %v1593, 1326507024
        %v1608 = vsel %vm1596, %v1590, %v1607
        %v1609 = vsel %vm1595, %v1606, %v1608
        %v1610 = vshll.u32 %v1570, 8
        %v1611 = vmul.u32.u64.compose %v1610, %v1609
        %v1612 = vextract.low.u32 %v1611
        %v1613 = vextract.high.u32 %v1611
        %v1614 = vmul.u32.u64.compose %v1610, %v1605
        %v1615 = vextract.low.u32 %v1614
        %v1616 = vextract.high.u32 %v1614
        %v1617 = vmul.u32 %v1610, %v1601
        %v1618 = vadd.s32 %v1613, %v1615
        %vm1619 = vc.u32 %v1613, %v1615
        %v1620 = vadd.s32 %v1616, 1
        %v1621 = vsel %vm1619, %v1620, %v1616
        %v1622 = vadd.s32 %v1617, %v1621
        %v1623 = vadd.s32 %v1622, 536870912
        %v1624 = vshrl.u32 %v1623, 30
        %v1625 = vshll.u32 %v1624, 30
        %v1626 = vsub.s32 %v1622, %v1625
        %vm1627 = vcmp.lt.s32.totalorder %v1626, 0
        %v1628 = vsub.s32 0, %v1626
        %v1629 = vsel %vm1627, %v1628, %v1626
        %v1630 = vclz %v1629
        %v1631 = vsub.s32 %v1630, 2
        %vm1632 = vcmp.gt.s32.totalorder 0, %v1631
        %v1633 = vsel %vm1632, 0, %v1631
        %v1634 = vsub.s32 32, %v1633
        %v1635 = vshll.u32 %v1626, %v1633
        %v1636 = vshrl.u32 %v1618, %v1634
        %v1637 = vor.u32 %v1635, %v1636
        %v1638 = vsub.s32 4294967266, %v1633
        %v1639 = vadd.s32 %v1638, 127
        %v1640 = vshll.u32 %v1639, 23
        %v1641 = vor.u32 4788187, %v1640
        %v1642 = vand.u32 2147483647, %v1641
        %v1644 = vcvt.s32.f32 %v1637
        %v1645 = vmul.f32 %v1644, %v1642
        %v1646 = vxor.u32 %v1645, 2147483648
        %v1647 = vsel %vm1564, %v1646, %v1645
        %v1648 = vsub.s32 4, %v1624
        %v1649 = vsel %vm1564, %v1648, %v1624
        %v1650 = vsel %vm1563, %v817, %v1647
        %v1651 = vsel %vm1563, 0, %v1649
        %v1652 = vcosq.f32.pop %v1650
        %v1653 = vsinq.f32.pop %v1650
        %vm1654 = vweird.f32 %v817
        %v1655 = vadd.s32 %v1651, 3
        %v1656 = vand.u32 %v1655, 3
        %vm1657 = vcmp.lt.s32.totalorder %v1656, 2
        %vm1658 = vcmp.eq.s32.totalorder %v1656, 0
        %v1659 = vxor.u32 %v1653, 2147483648
        %v1660 = vsel %vm1658, %v1652, %v1659
        %vm1661 = vcmp.eq.s32.totalorder %v1656, 2
        %v1662 = vxor.u32 %v1652, 2147483648
        %v1663 = vsel %vm1661, %v1662, %v1653
        %v1664 = vsel %vm1657, %v1660, %v1663
        %v1665 = vsel %vm1654, nan, %v1664
        %v1666 = vand.u32 2147483647, %v818
        %vm1667 = vcmp.le.f32.partialorder %v1666, 0.7853982
        %vm1668 = vcmp.lt.s32.totalorder %v818, 0
        %v1669 = vand.u32 %v818, 2139095040
        %v1670 = vshrl.u32 %v1669, 23
        %v1671 = vsub.s32 %v1670, 127
        %v1672 = vand.u32 2147483647, %v818
        %v1673 = vand.u32 %v1672, 8388607
        %v1674 = vor.u32 %v1673, 8388608
        %v1675 = vsub.s32 0, %v1674
        %v1676 = vadd.s32 %v1671, 1
        %vm1677 = vcmp.gt.s32.totalorder %v1676, 0
        %v1678 = vsel %vm1677, %v1676, 0
        %v1679 = vshrl.u32 %v1678, 5
        %v1680 = vand.u32 %v1678, 31
        %v1681 = vsub.s32 32, %v1680
        %v1682 = vshrl.u32 683565275, %v1681
        %v1683 = vshll.u32 683565275, %v1680
        %v1684 = vshrl.u32 2475754826, %v1681
        %v1685 = vor.u32 %v1683, %v1684
        %v1686 = vshll.u32 2475754826, %v1680
        %v1687 = vshrl.u32 2131351028, %v1681
        %v1688 = vor.u32 %v1686, %v1687
        %v1689 = vshll.u32 2131351028, %v1680
        %v1690 = vshrl.u32 2102212464, %v1681
        %v1691 = vor.u32 %v1689, %v1690
        %v1692 = vshll.u32 2102212464, %v1680
        %v1693 = vshrl.u32 920167782, %v1681
        %v1694 = vor.u32 %v1692, %v1693
        %v1695 = vshll.u32 920167782, %v1680
        %v1696 = vshrl.u32 1326507024, %v1681
        %v1697 = vor.u32 %v1695, %v1696
        %vm1698 = vcmp.lt.s32.totalorder %v1679, 1
        %vm1699 = vcmp.lt.s32.totalorder %v1679, 2
        %vm1700 = vcmp.lt.s32.totalorder %v1679, 3
        %vm1701 = vcmp.lt.s32.totalorder %v1679, 4
        %v1702 = vsel %vm1698, %v1682, %v1685
        %v1703 = vsel %vm1701, %v1691, 2102212464
        %v1704 = vsel %vm1700, %v1688, %v1703
        %v1705 = vsel %vm1699, %v1702, %v1704
        %v1706 = vsel %vm1698, %v1685, %v1688
        %v1707 = vsel %vm1701, %v1694, 920167782
        %v1708 = vsel %vm1700, %v1691, %v1707
        %v1709 = vsel %vm1699, %v1706, %v1708
        %v1710 = vsel %vm1698, %v1688, %v1691
        %v1711 = vsel %vm1701, %v1697, 1326507024
        %v1712 = vsel %vm1700, %v1694, %v1711
        %v1713 = vsel %vm1699, %v1710, %v1712
        %v1714 = vshll.u32 %v1674, 8
        %v1715 = vmul.u32.u64.compose %v1714, %v1713
        %v1716 = vextract.low.u32 %v1715
        %v1717 = vextract.high.u32 %v1715
        %v1718 = vmul.u32.u64.compose %v1714, %v1709
        %v1719 = vextract.low.u32 %v1718
        %v1720 = vextract.high.u32 %v1718
        %v1721 = vmul.u32 %v1714, %v1705
        %v1722 = vadd.s32 %v1717, %v1719
        %vm1723 = vc.u32 %v1717, %v1719
        %v1724 = vadd.s32 %v1720, 1
        %v1725 = vsel %vm1723, %v1724, %v1720
        %v1726 = vadd.s32 %v1721, %v1725
        %v1727 = vadd.s32 %v1726, 536870912
        %v1728 = vshrl.u32 %v1727, 30
        %v1729 = vshll.u32 %v1728, 30
        %v1730 = vsub.s32 %v1726, %v1729
        %vm1731 = vcmp.lt.s32.totalorder %v1730, 0
        %v1732 = vsub.s32 0, %v1730
        %v1733 = vsel %vm1731, %v1732, %v1730
        %v1734 = vclz %v1733
        %v1735 = vsub.s32 %v1734, 2
        %vm1736 = vcmp.gt.s32.totalorder 0, %v1735
        %v1737 = vsel %vm1736, 0, %v1735
        %v1738 = vsub.s32 32, %v1737
        %v1739 = vshll.u32 %v1730, %v1737
        %v1740 = vshrl.u32 %v1722, %v1738
        %v1741 = vor.u32 %v1739, %v1740
        %v1742 = vsub.s32 4294967266, %v1737
        %v1743 = vadd.s32 %v1742, 127
        %v1744 = vshll.u32 %v1743, 23
        %v1745 = vor.u32 4788187, %v1744
        %v1746 = vand.u32 2147483647, %v1745
        %v1748 = vcvt.s32.f32 %v1741
        %v1749 = vmul.f32 %v1748, %v1746
        %v1750 = vxor.u32 %v1749, 2147483648
        %v1751 = vsel %vm1668, %v1750, %v1749
        %v1752 = vsub.s32 4, %v1728
        %v1753 = vsel %vm1668, %v1752, %v1728
        %v1754 = vsel %vm1667, %v818, %v1751
        %v1755 = vsel %vm1667, 0, %v1753
        %v1756 = vcosq.f32.pop %v1754
        %v1757 = vsinq.f32.pop %v1754
        %vm1758 = vweird.f32 %v818
        %v1759 = vadd.s32 %v1755, 3
        %v1760 = vand.u32 %v1759, 3
        %vm1761 = vcmp.lt.s32.totalorder %v1760, 2
        %vm1762 = vcmp.eq.s32.totalorder %v1760, 0
        %v1763 = vxor.u32 %v1757, 2147483648
        %v1764 = vsel %vm1762, %v1756, %v1763
        %vm1765 = vcmp.eq.s32.totalorder %v1760, 2
        %v1766 = vxor.u32 %v1756, 2147483648
        %v1767 = vsel %vm1765, %v1766, %v1757
        %v1768 = vsel %vm1761, %v1764, %v1767
        %v1769 = vsel %vm1758, nan, %v1768
        %v1770 = vand.u32 2147483647, %v819
        %vm1771 = vcmp.le.f32.partialorder %v1770, 0.7853982
        %vm1772 = vcmp.lt.s32.totalorder %v819, 0
        %v1773 = vand.u32 %v819, 2139095040
        %v1774 = vshrl.u32 %v1773, 23
        %v1775 = vsub.s32 %v1774, 127
        %v1776 = vand.u32 2147483647, %v819
        %v1777 = vand.u32 %v1776, 8388607
        %v1778 = vor.u32 %v1777, 8388608
        %v1779 = vsub.s32 0, %v1778
        %v1780 = vadd.s32 %v1775, 1
        %vm1781 = vcmp.gt.s32.totalorder %v1780, 0
        %v1782 = vsel %vm1781, %v1780, 0
        %v1783 = vshrl.u32 %v1782, 5
        %v1784 = vand.u32 %v1782, 31
        %v1785 = vsub.s32 32, %v1784
        %v1786 = vshrl.u32 683565275, %v1785
        %v1787 = vshll.u32 683565275, %v1784
        %v1788 = vshrl.u32 2475754826, %v1785
        %v1789 = vor.u32 %v1787, %v1788
        %v1790 = vshll.u32 2475754826, %v1784
        %v1791 = vshrl.u32 2131351028, %v1785
        %v1792 = vor.u32 %v1790, %v1791
        %v1793 = vshll.u32 2131351028, %v1784
        %v1794 = vshrl.u32 2102212464, %v1785
        %v1795 = vor.u32 %v1793, %v1794
        %v1796 = vshll.u32 2102212464, %v1784
        %v1797 = vshrl.u32 920167782, %v1785
        %v1798 = vor.u32 %v1796, %v1797
        %v1799 = vshll.u32 920167782, %v1784
        %v1800 = vshrl.u32 1326507024, %v1785
        %v1801 = vor.u32 %v1799, %v1800
        %vm1802 = vcmp.lt.s32.totalorder %v1783, 1
        %vm1803 = vcmp.lt.s32.totalorder %v1783, 2
        %vm1804 = vcmp.lt.s32.totalorder %v1783, 3
        %vm1805 = vcmp.lt.s32.totalorder %v1783, 4
        %v1806 = vsel %vm1802, %v1786, %v1789
        %v1807 = vsel %vm1805, %v1795, 2102212464
        %v1808 = vsel %vm1804, %v1792, %v1807
        %v1809 = vsel %vm1803, %v1806, %v1808
        %v1810 = vsel %vm1802, %v1789, %v1792
        %v1811 = vsel %vm1805, %v1798, 920167782
        %v1812 = vsel %vm1804, %v1795, %v1811
        %v1813 = vsel %vm1803, %v1810, %v1812
        %v1814 = vsel %vm1802, %v1792, %v1795
        %v1815 = vsel %vm1805, %v1801, 1326507024
        %v1816 = vsel %vm1804, %v1798, %v1815
        %v1817 = vsel %vm1803, %v1814, %v1816
        %v1818 = vshll.u32 %v1778, 8
        %v1819 = vmul.u32.u64.compose %v1818, %v1817
        %v1820 = vextract.low.u32 %v1819
        %v1821 = vextract.high.u32 %v1819
        %v1822 = vmul.u32.u64.compose %v1818, %v1813
        %v1823 = vextract.low.u32 %v1822
        %v1824 = vextract.high.u32 %v1822
        %v1825 = vmul.u32 %v1818, %v1809
        %v1826 = vadd.s32 %v1821, %v1823
        %vm1827 = vc.u32 %v1821, %v1823
        %v1828 = vadd.s32 %v1824, 1
        %v1829 = vsel %vm1827, %v1828, %v1824
        %v1830 = vadd.s32 %v1825, %v1829
        %v1831 = vadd.s32 %v1830, 536870912
        %v1832 = vshrl.u32 %v1831, 30
        %v1833 = vshll.u32 %v1832, 30
        %v1834 = vsub.s32 %v1830, %v1833
        %vm1835 = vcmp.lt.s32.totalorder %v1834, 0
        %v1836 = vsub.s32 0, %v1834
        %v1837 = vsel %vm1835, %v1836, %v1834
        %v1838 = vclz %v1837
        %v1839 = vsub.s32 %v1838, 2
        %vm1840 = vcmp.gt.s32.totalorder 0, %v1839
        %v1841 = vsel %vm1840, 0, %v1839
        %v1842 = vsub.s32 32, %v1841
        %v1843 = vshll.u32 %v1834, %v1841
        %v1844 = vshrl.u32 %v1826, %v1842
        %v1845 = vor.u32 %v1843, %v1844
        %v1846 = vsub.s32 4294967266, %v1841
        %v1847 = vadd.s32 %v1846, 127
        %v1848 = vshll.u32 %v1847, 23
        %v1849 = vor.u32 4788187, %v1848
        %v1850 = vand.u32 2147483647, %v1849
        %v1852 = vcvt.s32.f32 %v1845
        %v1853 = vmul.f32 %v1852, %v1850
        %v1854 = vxor.u32 %v1853, 2147483648
        %v1855 = vsel %vm1772, %v1854, %v1853
        %v1856 = vsub.s32 4, %v1832
        %v1857 = vsel %vm1772, %v1856, %v1832
        %v1858 = vsel %vm1771, %v819, %v1855
        %v1859 = vsel %vm1771, 0, %v1857
        %v1860 = vcosq.f32.pop %v1858
        %v1861 = vsinq.f32.pop %v1858
        %vm1862 = vweird.f32 %v819
        %v1863 = vadd.s32 %v1859, 3
        %v1864 = vand.u32 %v1863, 3
        %vm1865 = vcmp.lt.s32.totalorder %v1864, 2
        %vm1866 = vcmp.eq.s32.totalorder %v1864, 0
        %v1867 = vxor.u32 %v1861, 2147483648
        %v1868 = vsel %vm1866, %v1860, %v1867
        %vm1869 = vcmp.eq.s32.totalorder %v1864, 2
        %v1870 = vxor.u32 %v1860, 2147483648
        %v1871 = vsel %vm1869, %v1870, %v1861
        %v1872 = vsel %vm1865, %v1868, %v1871
        %v1873 = vsel %vm1862, nan, %v1872
        %v1874 = vand.u32 2147483647, %v820
        %vm1875 = vcmp.le.f32.partialorder %v1874, 0.7853982
        %vm1876 = vcmp.lt.s32.totalorder %v820, 0
        %v1877 = vand.u32 %v820, 2139095040
        %v1878 = vshrl.u32 %v1877, 23
        %v1879 = vsub.s32 %v1878, 127
        %v1880 = vand.u32 2147483647, %v820
        %v1881 = vand.u32 %v1880, 8388607
        %v1882 = vor.u32 %v1881, 8388608
        %v1883 = vsub.s32 0, %v1882
        %v1884 = vadd.s32 %v1879, 1
        %vm1885 = vcmp.gt.s32.totalorder %v1884, 0
        %v1886 = vsel %vm1885, %v1884, 0
        %v1887 = vshrl.u32 %v1886, 5
        %v1888 = vand.u32 %v1886, 31
        %v1889 = vsub.s32 32, %v1888
        %v1890 = vshrl.u32 683565275, %v1889
        %v1891 = vshll.u32 683565275, %v1888
        %v1892 = vshrl.u32 2475754826, %v1889
        %v1893 = vor.u32 %v1891, %v1892
        %v1894 = vshll.u32 2475754826, %v1888
        %v1895 = vshrl.u32 2131351028, %v1889
        %v1896 = vor.u32 %v1894, %v1895
        %v1897 = vshll.u32 2131351028, %v1888
        %v1898 = vshrl.u32 2102212464, %v1889
        %v1899 = vor.u32 %v1897, %v1898
        %v1900 = vshll.u32 2102212464, %v1888
        %v1901 = vshrl.u32 920167782, %v1889
        %v1902 = vor.u32 %v1900, %v1901
        %v1903 = vshll.u32 920167782, %v1888
        %v1904 = vshrl.u32 1326507024, %v1889
        %v1905 = vor.u32 %v1903, %v1904
        %vm1906 = vcmp.lt.s32.totalorder %v1887, 1
        %vm1907 = vcmp.lt.s32.totalorder %v1887, 2
        %vm1908 = vcmp.lt.s32.totalorder %v1887, 3
        %vm1909 = vcmp.lt.s32.totalorder %v1887, 4
        %v1910 = vsel %vm1906, %v1890, %v1893
        %v1911 = vsel %vm1909, %v1899, 2102212464
        %v1912 = vsel %vm1908, %v1896, %v1911
        %v1913 = vsel %vm1907, %v1910, %v1912
        %v1914 = vsel %vm1906, %v1893, %v1896
        %v1915 = vsel %vm1909, %v1902, 920167782
        %v1916 = vsel %vm1908, %v1899, %v1915
        %v1917 = vsel %vm1907, %v1914, %v1916
        %v1918 = vsel %vm1906, %v1896, %v1899
        %v1919 = vsel %vm1909, %v1905, 1326507024
        %v1920 = vsel %vm1908, %v1902, %v1919
        %v1921 = vsel %vm1907, %v1918, %v1920
        %v1922 = vshll.u32 %v1882, 8
        %v1923 = vmul.u32.u64.compose %v1922, %v1921
        %v1924 = vextract.low.u32 %v1923
        %v1925 = vextract.high.u32 %v1923
        %v1926 = vmul.u32.u64.compose %v1922, %v1917
        %v1927 = vextract.low.u32 %v1926
        %v1928 = vextract.high.u32 %v1926
        %v1929 = vmul.u32 %v1922, %v1913
        %v1930 = vadd.s32 %v1925, %v1927
        %vm1931 = vc.u32 %v1925, %v1927
        %v1932 = vadd.s32 %v1928, 1
        %v1933 = vsel %vm1931, %v1932, %v1928
        %v1934 = vadd.s32 %v1929, %v1933
        %v1935 = vadd.s32 %v1934, 536870912
        %v1936 = vshrl.u32 %v1935, 30
        %v1937 = vshll.u32 %v1936, 30
        %v1938 = vsub.s32 %v1934, %v1937
        %vm1939 = vcmp.lt.s32.totalorder %v1938, 0
        %v1940 = vsub.s32 0, %v1938
        %v1941 = vsel %vm1939, %v1940, %v1938
        %v1942 = vclz %v1941
        %v1943 = vsub.s32 %v1942, 2
        %vm1944 = vcmp.gt.s32.totalorder 0, %v1943
        %v1945 = vsel %vm1944, 0, %v1943
        %v1946 = vsub.s32 32, %v1945
        %v1947 = vshll.u32 %v1938, %v1945
        %v1948 = vshrl.u32 %v1930, %v1946
        %v1949 = vor.u32 %v1947, %v1948
        %v1950 = vsub.s32 4294967266, %v1945
        %v1951 = vadd.s32 %v1950, 127
        %v1952 = vshll.u32 %v1951, 23
        %v1953 = vor.u32 4788187, %v1952
        %v1954 = vand.u32 2147483647, %v1953
        %v1956 = vcvt.s32.f32 %v1949
        %v1957 = vmul.f32 %v1956, %v1954
        %v1958 = vxor.u32 %v1957, 2147483648
        %v1959 = vsel %vm1876, %v1958, %v1957
        %v1960 = vsub.s32 4, %v1936
        %v1961 = vsel %vm1876, %v1960, %v1936
        %v1962 = vsel %vm1875, %v820, %v1959
        %v1963 = vsel %vm1875, 0, %v1961
        %v1964 = vcosq.f32.pop %v1962
        %v1965 = vsinq.f32.pop %v1962
        %vm1966 = vweird.f32 %v820
        %v1967 = vadd.s32 %v1963, 3
        %v1968 = vand.u32 %v1967, 3
        %vm1969 = vcmp.lt.s32.totalorder %v1968, 2
        %vm1970 = vcmp.eq.s32.totalorder %v1968, 0
        %v1971 = vxor.u32 %v1965, 2147483648
        %v1972 = vsel %vm1970, %v1964, %v1971
        %vm1973 = vcmp.eq.s32.totalorder %v1968, 2
        %v1974 = vxor.u32 %v1964, 2147483648
        %v1975 = vsel %vm1973, %v1974, %v1965
        %v1976 = vsel %vm1969, %v1972, %v1975
        %v1977 = vsel %vm1966, nan, %v1976
        %v1978 = vand.u32 2147483647, %v821
        %vm1979 = vcmp.le.f32.partialorder %v1978, 0.7853982
        %vm1980 = vcmp.lt.s32.totalorder %v821, 0
        %v1981 = vand.u32 %v821, 2139095040
        %v1982 = vshrl.u32 %v1981, 23
        %v1983 = vsub.s32 %v1982, 127
        %v1984 = vand.u32 2147483647, %v821
        %v1985 = vand.u32 %v1984, 8388607
        %v1986 = vor.u32 %v1985, 8388608
        %v1987 = vsub.s32 0, %v1986
        %v1988 = vadd.s32 %v1983, 1
        %vm1989 = vcmp.gt.s32.totalorder %v1988, 0
        %v1990 = vsel %vm1989, %v1988, 0
        %v1991 = vshrl.u32 %v1990, 5
        %v1992 = vand.u32 %v1990, 31
        %v1993 = vsub.s32 32, %v1992
        %v1994 = vshrl.u32 683565275, %v1993
        %v1995 = vshll.u32 683565275, %v1992
        %v1996 = vshrl.u32 2475754826, %v1993
        %v1997 = vor.u32 %v1995, %v1996
        %v1998 = vshll.u32 2475754826, %v1992
        %v1999 = vshrl.u32 2131351028, %v1993
        %v2000 = vor.u32 %v1998, %v1999
        %v2001 = vshll.u32 2131351028, %v1992
        %v2002 = vshrl.u32 2102212464, %v1993
        %v2003 = vor.u32 %v2001, %v2002
        %v2004 = vshll.u32 2102212464, %v1992
        %v2005 = vshrl.u32 920167782, %v1993
        %v2006 = vor.u32 %v2004, %v2005
        %v2007 = vshll.u32 920167782, %v1992
        %v2008 = vshrl.u32 1326507024, %v1993
        %v2009 = vor.u32 %v2007, %v2008
        %vm2010 = vcmp.lt.s32.totalorder %v1991, 1
        %vm2011 = vcmp.lt.s32.totalorder %v1991, 2
        %vm2012 = vcmp.lt.s32.totalorder %v1991, 3
        %vm2013 = vcmp.lt.s32.totalorder %v1991, 4
        %v2014 = vsel %vm2010, %v1994, %v1997
        %v2015 = vsel %vm2013, %v2003, 2102212464
        %v2016 = vsel %vm2012, %v2000, %v2015
        %v2017 = vsel %vm2011, %v2014, %v2016
        %v2018 = vsel %vm2010, %v1997, %v2000
        %v2019 = vsel %vm2013, %v2006, 920167782
        %v2020 = vsel %vm2012, %v2003, %v2019
        %v2021 = vsel %vm2011, %v2018, %v2020
        %v2022 = vsel %vm2010, %v2000, %v2003
        %v2023 = vsel %vm2013, %v2009, 1326507024
        %v2024 = vsel %vm2012, %v2006, %v2023
        %v2025 = vsel %vm2011, %v2022, %v2024
        %v2026 = vshll.u32 %v1986, 8
        %v2027 = vmul.u32.u64.compose %v2026, %v2025
        %v2028 = vextract.low.u32 %v2027
        %v2029 = vextract.high.u32 %v2027
        %v2030 = vmul.u32.u64.compose %v2026, %v2021
        %v2031 = vextract.low.u32 %v2030
        %v2032 = vextract.high.u32 %v2030
        %v2033 = vmul.u32 %v2026, %v2017
        %v2034 = vadd.s32 %v2029, %v2031
        %vm2035 = vc.u32 %v2029, %v2031
        %v2036 = vadd.s32 %v2032, 1
        %v2037 = vsel %vm2035, %v2036, %v2032
        %v2038 = vadd.s32 %v2033, %v2037
        %v2039 = vadd.s32 %v2038, 536870912
        %v2040 = vshrl.u32 %v2039, 30
        %v2041 = vshll.u32 %v2040, 30
        %v2042 = vsub.s32 %v2038, %v2041
        %vm2043 = vcmp.lt.s32.totalorder %v2042, 0
        %v2044 = vsub.s32 0, %v2042
        %v2045 = vsel %vm2043, %v2044, %v2042
        %v2046 = vclz %v2045
        %v2047 = vsub.s32 %v2046, 2
        %vm2048 = vcmp.gt.s32.totalorder 0, %v2047
        %v2049 = vsel %vm2048, 0, %v2047
        %v2050 = vsub.s32 32, %v2049
        %v2051 = vshll.u32 %v2042, %v2049
        %v2052 = vshrl.u32 %v2034, %v2050
        %v2053 = vor.u32 %v2051, %v2052
        %v2054 = vsub.s32 4294967266, %v2049
        %v2055 = vadd.s32 %v2054, 127
        %v2056 = vshll.u32 %v2055, 23
        %v2057 = vor.u32 4788187, %v2056
        %v2058 = vand.u32 2147483647, %v2057
        %v2060 = vcvt.s32.f32 %v2053
        %v2061 = vmul.f32 %v2060, %v2058
        %v2062 = vxor.u32 %v2061, 2147483648
        %v2063 = vsel %vm1980, %v2062, %v2061
        %v2064 = vsub.s32 4, %v2040
        %v2065 = vsel %vm1980, %v2064, %v2040
        %v2066 = vsel %vm1979, %v821, %v2063
        %v2067 = vsel %vm1979, 0, %v2065
        %v2068 = vcosq.f32.pop %v2066
        %v2069 = vsinq.f32.pop %v2066
        %vm2070 = vweird.f32 %v821
        %v2071 = vadd.s32 %v2067, 3
        %v2072 = vand.u32 %v2071, 3
        %vm2073 = vcmp.lt.s32.totalorder %v2072, 2
        %vm2074 = vcmp.eq.s32.totalorder %v2072, 0
        %v2075 = vxor.u32 %v2069, 2147483648
        %v2076 = vsel %vm2074, %v2068, %v2075
        %vm2077 = vcmp.eq.s32.totalorder %v2072, 2
        %v2078 = vxor.u32 %v2068, 2147483648
        %v2079 = vsel %vm2077, %v2078, %v2069
        %v2080 = vsel %vm2073, %v2076, %v2079
        %v2081 = vsel %vm2070, nan, %v2080
        %v2082 = vand.u32 2147483647, %v822
        %vm2083 = vcmp.le.f32.partialorder %v2082, 0.7853982
        %vm2084 = vcmp.lt.s32.totalorder %v822, 0
        %v2085 = vand.u32 %v822, 2139095040
        %v2086 = vshrl.u32 %v2085, 23
        %v2087 = vsub.s32 %v2086, 127
        %v2088 = vand.u32 2147483647, %v822
        %v2089 = vand.u32 %v2088, 8388607
        %v2090 = vor.u32 %v2089, 8388608
        %v2091 = vsub.s32 0, %v2090
        %v2092 = vadd.s32 %v2087, 1
        %vm2093 = vcmp.gt.s32.totalorder %v2092, 0
        %v2094 = vsel %vm2093, %v2092, 0
        %v2095 = vshrl.u32 %v2094, 5
        %v2096 = vand.u32 %v2094, 31
        %v2097 = vsub.s32 32, %v2096
        %v2098 = vshrl.u32 683565275, %v2097
        %v2099 = vshll.u32 683565275, %v2096
        %v2100 = vshrl.u32 2475754826, %v2097
        %v2101 = vor.u32 %v2099, %v2100
        %v2102 = vshll.u32 2475754826, %v2096
        %v2103 = vshrl.u32 2131351028, %v2097
        %v2104 = vor.u32 %v2102, %v2103
        %v2105 = vshll.u32 2131351028, %v2096
        %v2106 = vshrl.u32 2102212464, %v2097
        %v2107 = vor.u32 %v2105, %v2106
        %v2108 = vshll.u32 2102212464, %v2096
        %v2109 = vshrl.u32 920167782, %v2097
        %v2110 = vor.u32 %v2108, %v2109
        %v2111 = vshll.u32 920167782, %v2096
        %v2112 = vshrl.u32 1326507024, %v2097
        %v2113 = vor.u32 %v2111, %v2112
        %vm2114 = vcmp.lt.s32.totalorder %v2095, 1
        %vm2115 = vcmp.lt.s32.totalorder %v2095, 2
        %vm2116 = vcmp.lt.s32.totalorder %v2095, 3
        %vm2117 = vcmp.lt.s32.totalorder %v2095, 4
        %v2118 = vsel %vm2114, %v2098, %v2101
        %v2119 = vsel %vm2117, %v2107, 2102212464
        %v2120 = vsel %vm2116, %v2104, %v2119
        %v2121 = vsel %vm2115, %v2118, %v2120
        %v2122 = vsel %vm2114, %v2101, %v2104
        %v2123 = vsel %vm2117, %v2110, 920167782
        %v2124 = vsel %vm2116, %v2107, %v2123
        %v2125 = vsel %vm2115, %v2122, %v2124
        %v2126 = vsel %vm2114, %v2104, %v2107
        %v2127 = vsel %vm2117, %v2113, 1326507024
        %v2128 = vsel %vm2116, %v2110, %v2127
        %v2129 = vsel %vm2115, %v2126, %v2128
        %v2130 = vshll.u32 %v2090, 8
        %v2131 = vmul.u32.u64.compose %v2130, %v2129
        %v2132 = vextract.low.u32 %v2131
        %v2133 = vextract.high.u32 %v2131
        %v2134 = vmul.u32.u64.compose %v2130, %v2125
        %v2135 = vextract.low.u32 %v2134
        %v2136 = vextract.high.u32 %v2134
        %v2137 = vmul.u32 %v2130, %v2121
        %v2138 = vadd.s32 %v2133, %v2135
        %vm2139 = vc.u32 %v2133, %v2135
        %v2140 = vadd.s32 %v2136, 1
        %v2141 = vsel %vm2139, %v2140, %v2136
        %v2142 = vadd.s32 %v2137, %v2141
        %v2143 = vadd.s32 %v2142, 536870912
        %v2144 = vshrl.u32 %v2143, 30
        %v2145 = vshll.u32 %v2144, 30
        %v2146 = vsub.s32 %v2142, %v2145
        %vm2147 = vcmp.lt.s32.totalorder %v2146, 0
        %v2148 = vsub.s32 0, %v2146
        %v2149 = vsel %vm2147, %v2148, %v2146
        %v2150 = vclz %v2149
        %v2151 = vsub.s32 %v2150, 2
        %vm2152 = vcmp.gt.s32.totalorder 0, %v2151
        %v2153 = vsel %vm2152, 0, %v2151
        %v2154 = vsub.s32 32, %v2153
        %v2155 = vshll.u32 %v2146, %v2153
        %v2156 = vshrl.u32 %v2138, %v2154
        %v2157 = vor.u32 %v2155, %v2156
        %v2158 = vsub.s32 4294967266, %v2153
        %v2159 = vadd.s32 %v2158, 127
        %v2160 = vshll.u32 %v2159, 23
        %v2161 = vor.u32 4788187, %v2160
        %v2162 = vand.u32 2147483647, %v2161
        %v2164 = vcvt.s32.f32 %v2157
        %v2165 = vmul.f32 %v2164, %v2162
        %v2166 = vxor.u32 %v2165, 2147483648
        %v2167 = vsel %vm2084, %v2166, %v2165
        %v2168 = vsub.s32 4, %v2144
        %v2169 = vsel %vm2084, %v2168, %v2144
        %v2170 = vsel %vm2083, %v822, %v2167
        %v2171 = vsel %vm2083, 0, %v2169
        %v2172 = vcosq.f32.pop %v2170
        %v2173 = vsinq.f32.pop %v2170
        %vm2174 = vweird.f32 %v822
        %v2175 = vadd.s32 %v2171, 3
        %v2176 = vand.u32 %v2175, 3
        %vm2177 = vcmp.lt.s32.totalorder %v2176, 2
        %vm2178 = vcmp.eq.s32.totalorder %v2176, 0
        %v2179 = vxor.u32 %v2173, 2147483648
        %v2180 = vsel %vm2178, %v2172, %v2179
        %vm2181 = vcmp.eq.s32.totalorder %v2176, 2
        %v2182 = vxor.u32 %v2172, 2147483648
        %v2183 = vsel %vm2181, %v2182, %v2173
        %v2184 = vsel %vm2177, %v2180, %v2183
        %v2185 = vsel %vm2174, nan, %v2184
        %v2186 = vand.u32 2147483647, %v823
        %vm2187 = vcmp.le.f32.partialorder %v2186, 0.7853982
        %vm2188 = vcmp.lt.s32.totalorder %v823, 0
        %v2189 = vand.u32 %v823, 2139095040
        %v2190 = vshrl.u32 %v2189, 23
        %v2191 = vsub.s32 %v2190, 127
        %v2192 = vand.u32 2147483647, %v823
        %v2193 = vand.u32 %v2192, 8388607
        %v2194 = vor.u32 %v2193, 8388608
        %v2195 = vsub.s32 0, %v2194
        %v2196 = vadd.s32 %v2191, 1
        %vm2197 = vcmp.gt.s32.totalorder %v2196, 0
        %v2198 = vsel %vm2197, %v2196, 0
        %v2199 = vshrl.u32 %v2198, 5
        %v2200 = vand.u32 %v2198, 31
        %v2201 = vsub.s32 32, %v2200
        %v2202 = vshrl.u32 683565275, %v2201
        %v2203 = vshll.u32 683565275, %v2200
        %v2204 = vshrl.u32 2475754826, %v2201
        %v2205 = vor.u32 %v2203, %v2204
        %v2206 = vshll.u32 2475754826, %v2200
        %v2207 = vshrl.u32 2131351028, %v2201
        %v2208 = vor.u32 %v2206, %v2207
        %v2209 = vshll.u32 2131351028, %v2200
        %v2210 = vshrl.u32 2102212464, %v2201
        %v2211 = vor.u32 %v2209, %v2210
        %v2212 = vshll.u32 2102212464, %v2200
        %v2213 = vshrl.u32 920167782, %v2201
        %v2214 = vor.u32 %v2212, %v2213
        %v2215 = vshll.u32 920167782, %v2200
        %v2216 = vshrl.u32 1326507024, %v2201
        %v2217 = vor.u32 %v2215, %v2216
        %vm2218 = vcmp.lt.s32.totalorder %v2199, 1
        %vm2219 = vcmp.lt.s32.totalorder %v2199, 2
        %vm2220 = vcmp.lt.s32.totalorder %v2199, 3
        %vm2221 = vcmp.lt.s32.totalorder %v2199, 4
        %v2222 = vsel %vm2218, %v2202, %v2205
        %v2223 = vsel %vm2221, %v2211, 2102212464
        %v2224 = vsel %vm2220, %v2208, %v2223
        %v2225 = vsel %vm2219, %v2222, %v2224
        %v2226 = vsel %vm2218, %v2205, %v2208
        %v2227 = vsel %vm2221, %v2214, 920167782
        %v2228 = vsel %vm2220, %v2211, %v2227
        %v2229 = vsel %vm2219, %v2226, %v2228
        %v2230 = vsel %vm2218, %v2208, %v2211
        %v2231 = vsel %vm2221, %v2217, 1326507024
        %v2232 = vsel %vm2220, %v2214, %v2231
        %v2233 = vsel %vm2219, %v2230, %v2232
        %v2234 = vshll.u32 %v2194, 8
        %v2235 = vmul.u32.u64.compose %v2234, %v2233
        %v2236 = vextract.low.u32 %v2235
        %v2237 = vextract.high.u32 %v2235
        %v2238 = vmul.u32.u64.compose %v2234, %v2229
        %v2239 = vextract.low.u32 %v2238
        %v2240 = vextract.high.u32 %v2238
        %v2241 = vmul.u32 %v2234, %v2225
        %v2242 = vadd.s32 %v2237, %v2239
        %vm2243 = vc.u32 %v2237, %v2239
        %v2244 = vadd.s32 %v2240, 1
        %v2245 = vsel %vm2243, %v2244, %v2240
        %v2246 = vadd.s32 %v2241, %v2245
        %v2247 = vadd.s32 %v2246, 536870912
        %v2248 = vshrl.u32 %v2247, 30
        %v2249 = vshll.u32 %v2248, 30
        %v2250 = vsub.s32 %v2246, %v2249
        %vm2251 = vcmp.lt.s32.totalorder %v2250, 0
        %v2252 = vsub.s32 0, %v2250
        %v2253 = vsel %vm2251, %v2252, %v2250
        %v2254 = vclz %v2253
        %v2255 = vsub.s32 %v2254, 2
        %vm2256 = vcmp.gt.s32.totalorder 0, %v2255
        %v2257 = vsel %vm2256, 0, %v2255
        %v2258 = vsub.s32 32, %v2257
        %v2259 = vshll.u32 %v2250, %v2257
        %v2260 = vshrl.u32 %v2242, %v2258
        %v2261 = vor.u32 %v2259, %v2260
        %v2262 = vsub.s32 4294967266, %v2257
        %v2263 = vadd.s32 %v2262, 127
        %v2264 = vshll.u32 %v2263, 23
        %v2265 = vor.u32 4788187, %v2264
        %v2266 = vand.u32 2147483647, %v2265
        %v2268 = vcvt.s32.f32 %v2261
        %v2269 = vmul.f32 %v2268, %v2266
        %v2270 = vxor.u32 %v2269, 2147483648
        %v2271 = vsel %vm2188, %v2270, %v2269
        %v2272 = vsub.s32 4, %v2248
        %v2273 = vsel %vm2188, %v2272, %v2248
        %v2274 = vsel %vm2187, %v823, %v2271
        %v2275 = vsel %vm2187, 0, %v2273
        %v2276 = vcosq.f32.pop %v2274
        %v2277 = vsinq.f32.pop %v2274
        %vm2278 = vweird.f32 %v823
        %v2279 = vadd.s32 %v2275, 3
        %v2280 = vand.u32 %v2279, 3
        %vm2281 = vcmp.lt.s32.totalorder %v2280, 2
        %vm2282 = vcmp.eq.s32.totalorder %v2280, 0
        %v2283 = vxor.u32 %v2277, 2147483648
        %v2284 = vsel %vm2282, %v2276, %v2283
        %vm2285 = vcmp.eq.s32.totalorder %v2280, 2
        %v2286 = vxor.u32 %v2276, 2147483648
        %v2287 = vsel %vm2285, %v2286, %v2277
        %v2288 = vsel %vm2281, %v2284, %v2287
        %v2289 = vsel %vm2278, nan, %v2288
        %v2290 = vand.u32 2147483647, %v824
        %vm2291 = vcmp.le.f32.partialorder %v2290, 0.7853982
        %vm2292 = vcmp.lt.s32.totalorder %v824, 0
        %v2293 = vand.u32 %v824, 2139095040
        %v2294 = vshrl.u32 %v2293, 23
        %v2295 = vsub.s32 %v2294, 127
        %v2296 = vand.u32 2147483647, %v824
        %v2297 = vand.u32 %v2296, 8388607
        %v2298 = vor.u32 %v2297, 8388608
        %v2299 = vsub.s32 0, %v2298
        %v2300 = vadd.s32 %v2295, 1
        %vm2301 = vcmp.gt.s32.totalorder %v2300, 0
        %v2302 = vsel %vm2301, %v2300, 0
        %v2303 = vshrl.u32 %v2302, 5
        %v2304 = vand.u32 %v2302, 31
        %v2305 = vsub.s32 32, %v2304
        %v2306 = vshrl.u32 683565275, %v2305
        %v2307 = vshll.u32 683565275, %v2304
        %v2308 = vshrl.u32 2475754826, %v2305
        %v2309 = vor.u32 %v2307, %v2308
        %v2310 = vshll.u32 2475754826, %v2304
        %v2311 = vshrl.u32 2131351028, %v2305
        %v2312 = vor.u32 %v2310, %v2311
        %v2313 = vshll.u32 2131351028, %v2304
        %v2314 = vshrl.u32 2102212464, %v2305
        %v2315 = vor.u32 %v2313, %v2314
        %v2316 = vshll.u32 2102212464, %v2304
        %v2317 = vshrl.u32 920167782, %v2305
        %v2318 = vor.u32 %v2316, %v2317
        %v2319 = vshll.u32 920167782, %v2304
        %v2320 = vshrl.u32 1326507024, %v2305
        %v2321 = vor.u32 %v2319, %v2320
        %vm2322 = vcmp.lt.s32.totalorder %v2303, 1
        %vm2323 = vcmp.lt.s32.totalorder %v2303, 2
        %vm2324 = vcmp.lt.s32.totalorder %v2303, 3
        %vm2325 = vcmp.lt.s32.totalorder %v2303, 4
        %v2326 = vsel %vm2322, %v2306, %v2309
        %v2327 = vsel %vm2325, %v2315, 2102212464
        %v2328 = vsel %vm2324, %v2312, %v2327
        %v2329 = vsel %vm2323, %v2326, %v2328
        %v2330 = vsel %vm2322, %v2309, %v2312
        %v2331 = vsel %vm2325, %v2318, 920167782
        %v2332 = vsel %vm2324, %v2315, %v2331
        %v2333 = vsel %vm2323, %v2330, %v2332
        %v2334 = vsel %vm2322, %v2312, %v2315
        %v2335 = vsel %vm2325, %v2321, 1326507024
        %v2336 = vsel %vm2324, %v2318, %v2335
        %v2337 = vsel %vm2323, %v2334, %v2336
        %v2338 = vshll.u32 %v2298, 8
        %v2339 = vmul.u32.u64.compose %v2338, %v2337
        %v2340 = vextract.low.u32 %v2339
        %v2341 = vextract.high.u32 %v2339
        %v2342 = vmul.u32.u64.compose %v2338, %v2333
        %v2343 = vextract.low.u32 %v2342
        %v2344 = vextract.high.u32 %v2342
        %v2345 = vmul.u32 %v2338, %v2329
        %v2346 = vadd.s32 %v2341, %v2343
        %vm2347 = vc.u32 %v2341, %v2343
        %v2348 = vadd.s32 %v2344, 1
        %v2349 = vsel %vm2347, %v2348, %v2344
        %v2350 = vadd.s32 %v2345, %v2349
        %v2351 = vadd.s32 %v2350, 536870912
        %v2352 = vshrl.u32 %v2351, 30
        %v2353 = vshll.u32 %v2352, 30
        %v2354 = vsub.s32 %v2350, %v2353
        %vm2355 = vcmp.lt.s32.totalorder %v2354, 0
        %v2356 = vsub.s32 0, %v2354
        %v2357 = vsel %vm2355, %v2356, %v2354
        %v2358 = vclz %v2357
        %v2359 = vsub.s32 %v2358, 2
        %vm2360 = vcmp.gt.s32.totalorder 0, %v2359
        %v2361 = vsel %vm2360, 0, %v2359
        %v2362 = vsub.s32 32, %v2361
        %v2363 = vshll.u32 %v2354, %v2361
        %v2364 = vshrl.u32 %v2346, %v2362
        %v2365 = vor.u32 %v2363, %v2364
        %v2366 = vsub.s32 4294967266, %v2361
        %v2367 = vadd.s32 %v2366, 127
        %v2368 = vshll.u32 %v2367, 23
        %v2369 = vor.u32 4788187, %v2368
        %v2370 = vand.u32 2147483647, %v2369
        %v2372 = vcvt.s32.f32 %v2365
        %v2373 = vmul.f32 %v2372, %v2370
        %v2374 = vxor.u32 %v2373, 2147483648
        %v2375 = vsel %vm2292, %v2374, %v2373
        %v2376 = vsub.s32 4, %v2352
        %v2377 = vsel %vm2292, %v2376, %v2352
        %v2378 = vsel %vm2291, %v824, %v2375
        %v2379 = vsel %vm2291, 0, %v2377
        %v2380 = vcosq.f32.pop %v2378
        %v2381 = vsinq.f32.pop %v2378
        %vm2382 = vweird.f32 %v824
        %v2383 = vadd.s32 %v2379, 3
        %v2384 = vand.u32 %v2383, 3
        %vm2385 = vcmp.lt.s32.totalorder %v2384, 2
        %vm2386 = vcmp.eq.s32.totalorder %v2384, 0
        %v2387 = vxor.u32 %v2381, 2147483648
        %v2388 = vsel %vm2386, %v2380, %v2387
        %vm2389 = vcmp.eq.s32.totalorder %v2384, 2
        %v2390 = vxor.u32 %v2380, 2147483648
        %v2391 = vsel %vm2389, %v2390, %v2381
        %v2392 = vsel %vm2385, %v2388, %v2391
        %v2393 = vsel %vm2382, nan, %v2392
        %v2394 = vand.u32 2147483647, %v825
        %vm2395 = vcmp.le.f32.partialorder %v2394, 0.7853982
        %vm2396 = vcmp.lt.s32.totalorder %v825, 0
        %v2397 = vand.u32 %v825, 2139095040
        %v2398 = vshrl.u32 %v2397, 23
        %v2399 = vsub.s32 %v2398, 127
        %v2400 = vand.u32 2147483647, %v825
        %v2401 = vand.u32 %v2400, 8388607
        %v2402 = vor.u32 %v2401, 8388608
        %v2403 = vsub.s32 0, %v2402
        %v2404 = vadd.s32 %v2399, 1
        %vm2405 = vcmp.gt.s32.totalorder %v2404, 0
        %v2406 = vsel %vm2405, %v2404, 0
        %v2407 = vshrl.u32 %v2406, 5
        %v2408 = vand.u32 %v2406, 31
        %v2409 = vsub.s32 32, %v2408
        %v2410 = vshrl.u32 683565275, %v2409
        %v2411 = vshll.u32 683565275, %v2408
        %v2412 = vshrl.u32 2475754826, %v2409
        %v2413 = vor.u32 %v2411, %v2412
        %v2414 = vshll.u32 2475754826, %v2408
        %v2415 = vshrl.u32 2131351028, %v2409
        %v2416 = vor.u32 %v2414, %v2415
        %v2417 = vshll.u32 2131351028, %v2408
        %v2418 = vshrl.u32 2102212464, %v2409
        %v2419 = vor.u32 %v2417, %v2418
        %v2420 = vshll.u32 2102212464, %v2408
        %v2421 = vshrl.u32 920167782, %v2409
        %v2422 = vor.u32 %v2420, %v2421
        %v2423 = vshll.u32 920167782, %v2408
        %v2424 = vshrl.u32 1326507024, %v2409
        %v2425 = vor.u32 %v2423, %v2424
        %vm2426 = vcmp.lt.s32.totalorder %v2407, 1
        %vm2427 = vcmp.lt.s32.totalorder %v2407, 2
        %vm2428 = vcmp.lt.s32.totalorder %v2407, 3
        %vm2429 = vcmp.lt.s32.totalorder %v2407, 4
        %v2430 = vsel %vm2426, %v2410, %v2413
        %v2431 = vsel %vm2429, %v2419, 2102212464
        %v2432 = vsel %vm2428, %v2416, %v2431
        %v2433 = vsel %vm2427, %v2430, %v2432
        %v2434 = vsel %vm2426, %v2413, %v2416
        %v2435 = vsel %vm2429, %v2422, 920167782
        %v2436 = vsel %vm2428, %v2419, %v2435
        %v2437 = vsel %vm2427, %v2434, %v2436
        %v2438 = vsel %vm2426, %v2416, %v2419
        %v2439 = vsel %vm2429, %v2425, 1326507024
        %v2440 = vsel %vm2428, %v2422, %v2439
        %v2441 = vsel %vm2427, %v2438, %v2440
        %v2442 = vshll.u32 %v2402, 8
        %v2443 = vmul.u32.u64.compose %v2442, %v2441
        %v2444 = vextract.low.u32 %v2443
        %v2445 = vextract.high.u32 %v2443
        %v2446 = vmul.u32.u64.compose %v2442, %v2437
        %v2447 = vextract.low.u32 %v2446
        %v2448 = vextract.high.u32 %v2446
        %v2449 = vmul.u32 %v2442, %v2433
        %v2450 = vadd.s32 %v2445, %v2447
        %vm2451 = vc.u32 %v2445, %v2447
        %v2452 = vadd.s32 %v2448, 1
        %v2453 = vsel %vm2451, %v2452, %v2448
        %v2454 = vadd.s32 %v2449, %v2453
        %v2455 = vadd.s32 %v2454, 536870912
        %v2456 = vshrl.u32 %v2455, 30
        %v2457 = vshll.u32 %v2456, 30
        %v2458 = vsub.s32 %v2454, %v2457
        %vm2459 = vcmp.lt.s32.totalorder %v2458, 0
        %v2460 = vsub.s32 0, %v2458
        %v2461 = vsel %vm2459, %v2460, %v2458
        %v2462 = vclz %v2461
        %v2463 = vsub.s32 %v2462, 2
        %vm2464 = vcmp.gt.s32.totalorder 0, %v2463
        %v2465 = vsel %vm2464, 0, %v2463
        %v2466 = vsub.s32 32, %v2465
        %v2467 = vshll.u32 %v2458, %v2465
        %v2468 = vshrl.u32 %v2450, %v2466
        %v2469 = vor.u32 %v2467, %v2468
        %v2470 = vsub.s32 4294967266, %v2465
        %v2471 = vadd.s32 %v2470, 127
        %v2472 = vshll.u32 %v2471, 23
        %v2473 = vor.u32 4788187, %v2472
        %v2474 = vand.u32 2147483647, %v2473
        %v2476 = vcvt.s32.f32 %v2469
        %v2477 = vmul.f32 %v2476, %v2474
        %v2478 = vxor.u32 %v2477, 2147483648
        %v2479 = vsel %vm2396, %v2478, %v2477
        %v2480 = vsub.s32 4, %v2456
        %v2481 = vsel %vm2396, %v2480, %v2456
        %v2482 = vsel %vm2395, %v825, %v2479
        %v2483 = vsel %vm2395, 0, %v2481
        %v2484 = vcosq.f32.pop %v2482
        %v2485 = vsinq.f32.pop %v2482
        %vm2486 = vweird.f32 %v825
        %v2487 = vadd.s32 %v2483, 3
        %v2488 = vand.u32 %v2487, 3
        %vm2489 = vcmp.lt.s32.totalorder %v2488, 2
        %vm2490 = vcmp.eq.s32.totalorder %v2488, 0
        %v2491 = vxor.u32 %v2485, 2147483648
        %v2492 = vsel %vm2490, %v2484, %v2491
        %vm2493 = vcmp.eq.s32.totalorder %v2488, 2
        %v2494 = vxor.u32 %v2484, 2147483648
        %v2495 = vsel %vm2493, %v2494, %v2485
        %v2496 = vsel %vm2489, %v2492, %v2495
        %v2497 = vsel %vm2486, nan, %v2496
        %v2498 = vand.u32 2147483647, %v826
        %vm2499 = vcmp.le.f32.partialorder %v2498, 0.7853982
        %vm2500 = vcmp.lt.s32.totalorder %v826, 0
        %v2501 = vand.u32 %v826, 2139095040
        %v2502 = vshrl.u32 %v2501, 23
        %v2503 = vsub.s32 %v2502, 127
        %v2504 = vand.u32 2147483647, %v826
        %v2505 = vand.u32 %v2504, 8388607
        %v2506 = vor.u32 %v2505, 8388608
        %v2507 = vsub.s32 0, %v2506
        %v2508 = vadd.s32 %v2503, 1
        %vm2509 = vcmp.gt.s32.totalorder %v2508, 0
        %v2510 = vsel %vm2509, %v2508, 0
        %v2511 = vshrl.u32 %v2510, 5
        %v2512 = vand.u32 %v2510, 31
        %v2513 = vsub.s32 32, %v2512
        %v2514 = vshrl.u32 683565275, %v2513
        %v2515 = vshll.u32 683565275, %v2512
        %v2516 = vshrl.u32 2475754826, %v2513
        %v2517 = vor.u32 %v2515, %v2516
        %v2518 = vshll.u32 2475754826, %v2512
        %v2519 = vshrl.u32 2131351028, %v2513
        %v2520 = vor.u32 %v2518, %v2519
        %v2521 = vshll.u32 2131351028, %v2512
        %v2522 = vshrl.u32 2102212464, %v2513
        %v2523 = vor.u32 %v2521, %v2522
        %v2524 = vshll.u32 2102212464, %v2512
        %v2525 = vshrl.u32 920167782, %v2513
        %v2526 = vor.u32 %v2524, %v2525
        %v2527 = vshll.u32 920167782, %v2512
        %v2528 = vshrl.u32 1326507024, %v2513
        %v2529 = vor.u32 %v2527, %v2528
        %vm2530 = vcmp.lt.s32.totalorder %v2511, 1
        %vm2531 = vcmp.lt.s32.totalorder %v2511, 2
        %vm2532 = vcmp.lt.s32.totalorder %v2511, 3
        %vm2533 = vcmp.lt.s32.totalorder %v2511, 4
        %v2534 = vsel %vm2530, %v2514, %v2517
        %v2535 = vsel %vm2533, %v2523, 2102212464
        %v2536 = vsel %vm2532, %v2520, %v2535
        %v2537 = vsel %vm2531, %v2534, %v2536
        %v2538 = vsel %vm2530, %v2517, %v2520
        %v2539 = vsel %vm2533, %v2526, 920167782
        %v2540 = vsel %vm2532, %v2523, %v2539
        %v2541 = vsel %vm2531, %v2538, %v2540
        %v2542 = vsel %vm2530, %v2520, %v2523
        %v2543 = vsel %vm2533, %v2529, 1326507024
        %v2544 = vsel %vm2532, %v2526, %v2543
        %v2545 = vsel %vm2531, %v2542, %v2544
        %v2546 = vshll.u32 %v2506, 8
        %v2547 = vmul.u32.u64.compose %v2546, %v2545
        %v2548 = vextract.low.u32 %v2547
        %v2549 = vextract.high.u32 %v2547
        %v2550 = vmul.u32.u64.compose %v2546, %v2541
        %v2551 = vextract.low.u32 %v2550
        %v2552 = vextract.high.u32 %v2550
        %v2553 = vmul.u32 %v2546, %v2537
        %v2554 = vadd.s32 %v2549, %v2551
        %vm2555 = vc.u32 %v2549, %v2551
        %v2556 = vadd.s32 %v2552, 1
        %v2557 = vsel %vm2555, %v2556, %v2552
        %v2558 = vadd.s32 %v2553, %v2557
        %v2559 = vadd.s32 %v2558, 536870912
        %v2560 = vshrl.u32 %v2559, 30
        %v2561 = vshll.u32 %v2560, 30
        %v2562 = vsub.s32 %v2558, %v2561
        %vm2563 = vcmp.lt.s32.totalorder %v2562, 0
        %v2564 = vsub.s32 0, %v2562
        %v2565 = vsel %vm2563, %v2564, %v2562
        %v2566 = vclz %v2565
        %v2567 = vsub.s32 %v2566, 2
        %vm2568 = vcmp.gt.s32.totalorder 0, %v2567
        %v2569 = vsel %vm2568, 0, %v2567
        %v2570 = vsub.s32 32, %v2569
        %v2571 = vshll.u32 %v2562, %v2569
        %v2572 = vshrl.u32 %v2554, %v2570
        %v2573 = vor.u32 %v2571, %v2572
        %v2574 = vsub.s32 4294967266, %v2569
        %v2575 = vadd.s32 %v2574, 127
        %v2576 = vshll.u32 %v2575, 23
        %v2577 = vor.u32 4788187, %v2576
        %v2578 = vand.u32 2147483647, %v2577
        %v2580 = vcvt.s32.f32 %v2573
        %v2581 = vmul.f32 %v2580, %v2578
        %v2582 = vxor.u32 %v2581, 2147483648
        %v2583 = vsel %vm2500, %v2582, %v2581
        %v2584 = vsub.s32 4, %v2560
        %v2585 = vsel %vm2500, %v2584, %v2560
        %v2586 = vsel %vm2499, %v826, %v2583
        %v2587 = vsel %vm2499, 0, %v2585
        %v2588 = vcosq.f32.pop %v2586
        %v2589 = vsinq.f32.pop %v2586
        %vm2590 = vweird.f32 %v826
        %v2591 = vadd.s32 %v2587, 3
        %v2592 = vand.u32 %v2591, 3
        %vm2593 = vcmp.lt.s32.totalorder %v2592, 2
        %vm2594 = vcmp.eq.s32.totalorder %v2592, 0
        %v2595 = vxor.u32 %v2589, 2147483648
        %v2596 = vsel %vm2594, %v2588, %v2595
        %vm2597 = vcmp.eq.s32.totalorder %v2592, 2
        %v2598 = vxor.u32 %v2588, 2147483648
        %v2599 = vsel %vm2597, %v2598, %v2589
        %v2600 = vsel %vm2593, %v2596, %v2599
        %v2601 = vsel %vm2590, nan, %v2600
        %v2602 = vand.u32 2147483647, %v827
        %vm2603 = vcmp.le.f32.partialorder %v2602, 0.7853982
        %vm2604 = vcmp.lt.s32.totalorder %v827, 0
        %v2605 = vand.u32 %v827, 2139095040
        %v2606 = vshrl.u32 %v2605, 23
        %v2607 = vsub.s32 %v2606, 127
        %v2608 = vand.u32 2147483647, %v827
        %v2609 = vand.u32 %v2608, 8388607
        %v2610 = vor.u32 %v2609, 8388608
        %v2611 = vsub.s32 0, %v2610
        %v2612 = vadd.s32 %v2607, 1
        %vm2613 = vcmp.gt.s32.totalorder %v2612, 0
        %v2614 = vsel %vm2613, %v2612, 0
        %v2615 = vshrl.u32 %v2614, 5
        %v2616 = vand.u32 %v2614, 31
        %v2617 = vsub.s32 32, %v2616
        %v2618 = vshrl.u32 683565275, %v2617
        %v2619 = vshll.u32 683565275, %v2616
        %v2620 = vshrl.u32 2475754826, %v2617
        %v2621 = vor.u32 %v2619, %v2620
        %v2622 = vshll.u32 2475754826, %v2616
        %v2623 = vshrl.u32 2131351028, %v2617
        %v2624 = vor.u32 %v2622, %v2623
        %v2625 = vshll.u32 2131351028, %v2616
        %v2626 = vshrl.u32 2102212464, %v2617
        %v2627 = vor.u32 %v2625, %v2626
        %v2628 = vshll.u32 2102212464, %v2616
        %v2629 = vshrl.u32 920167782, %v2617
        %v2630 = vor.u32 %v2628, %v2629
        %v2631 = vshll.u32 920167782, %v2616
        %v2632 = vshrl.u32 1326507024, %v2617
        %v2633 = vor.u32 %v2631, %v2632
        %vm2634 = vcmp.lt.s32.totalorder %v2615, 1
        %vm2635 = vcmp.lt.s32.totalorder %v2615, 2
        %vm2636 = vcmp.lt.s32.totalorder %v2615, 3
        %vm2637 = vcmp.lt.s32.totalorder %v2615, 4
        %v2638 = vsel %vm2634, %v2618, %v2621
        %v2639 = vsel %vm2637, %v2627, 2102212464
        %v2640 = vsel %vm2636, %v2624, %v2639
        %v2641 = vsel %vm2635, %v2638, %v2640
        %v2642 = vsel %vm2634, %v2621, %v2624
        %v2643 = vsel %vm2637, %v2630, 920167782
        %v2644 = vsel %vm2636, %v2627, %v2643
        %v2645 = vsel %vm2635, %v2642, %v2644
        %v2646 = vsel %vm2634, %v2624, %v2627
        %v2647 = vsel %vm2637, %v2633, 1326507024
        %v2648 = vsel %vm2636, %v2630, %v2647
        %v2649 = vsel %vm2635, %v2646, %v2648
        %v2650 = vshll.u32 %v2610, 8
        %v2651 = vmul.u32.u64.compose %v2650, %v2649
        %v2652 = vextract.low.u32 %v2651
        %v2653 = vextract.high.u32 %v2651
        %v2654 = vmul.u32.u64.compose %v2650, %v2645
        %v2655 = vextract.low.u32 %v2654
        %v2656 = vextract.high.u32 %v2654
        %v2657 = vmul.u32 %v2650, %v2641
        %v2658 = vadd.s32 %v2653, %v2655
        %vm2659 = vc.u32 %v2653, %v2655
        %v2660 = vadd.s32 %v2656, 1
        %v2661 = vsel %vm2659, %v2660, %v2656
        %v2662 = vadd.s32 %v2657, %v2661
        %v2663 = vadd.s32 %v2662, 536870912
        %v2664 = vshrl.u32 %v2663, 30
        %v2665 = vshll.u32 %v2664, 30
        %v2666 = vsub.s32 %v2662, %v2665
        %vm2667 = vcmp.lt.s32.totalorder %v2666, 0
        %v2668 = vsub.s32 0, %v2666
        %v2669 = vsel %vm2667, %v2668, %v2666
        %v2670 = vclz %v2669
        %v2671 = vsub.s32 %v2670, 2
        %vm2672 = vcmp.gt.s32.totalorder 0, %v2671
        %v2673 = vsel %vm2672, 0, %v2671
        %v2674 = vsub.s32 32, %v2673
        %v2675 = vshll.u32 %v2666, %v2673
        %v2676 = vshrl.u32 %v2658, %v2674
        %v2677 = vor.u32 %v2675, %v2676
        %v2678 = vsub.s32 4294967266, %v2673
        %v2679 = vadd.s32 %v2678, 127
        %v2680 = vshll.u32 %v2679, 23
        %v2681 = vor.u32 4788187, %v2680
        %v2682 = vand.u32 2147483647, %v2681
        %v2684 = vcvt.s32.f32 %v2677
        %v2685 = vmul.f32 %v2684, %v2682
        %v2686 = vxor.u32 %v2685, 2147483648
        %v2687 = vsel %vm2604, %v2686, %v2685
        %v2688 = vsub.s32 4, %v2664
        %v2689 = vsel %vm2604, %v2688, %v2664
        %v2690 = vsel %vm2603, %v827, %v2687
        %v2691 = vsel %vm2603, 0, %v2689
        %v2692 = vcosq.f32.pop %v2690
        %v2693 = vsinq.f32.pop %v2690
        %vm2694 = vweird.f32 %v827
        %v2695 = vadd.s32 %v2691, 3
        %v2696 = vand.u32 %v2695, 3
        %vm2697 = vcmp.lt.s32.totalorder %v2696, 2
        %vm2698 = vcmp.eq.s32.totalorder %v2696, 0
        %v2699 = vxor.u32 %v2693, 2147483648
        %v2700 = vsel %vm2698, %v2692, %v2699
        %vm2701 = vcmp.eq.s32.totalorder %v2696, 2
        %v2702 = vxor.u32 %v2692, 2147483648
        %v2703 = vsel %vm2701, %v2702, %v2693
        %v2704 = vsel %vm2697, %v2700, %v2703
        %v2705 = vsel %vm2694, nan, %v2704
        %v2706 = vand.u32 2147483647, %v828
        %vm2707 = vcmp.le.f32.partialorder %v2706, 0.7853982
        %vm2708 = vcmp.lt.s32.totalorder %v828, 0
        %v2709 = vand.u32 %v828, 2139095040
        %v2710 = vshrl.u32 %v2709, 23
        %v2711 = vsub.s32 %v2710, 127
        %v2712 = vand.u32 2147483647, %v828
        %v2713 = vand.u32 %v2712, 8388607
        %v2714 = vor.u32 %v2713, 8388608
        %v2715 = vsub.s32 0, %v2714
        %v2716 = vadd.s32 %v2711, 1
        %vm2717 = vcmp.gt.s32.totalorder %v2716, 0
        %v2718 = vsel %vm2717, %v2716, 0
        %v2719 = vshrl.u32 %v2718, 5
        %v2720 = vand.u32 %v2718, 31
        %v2721 = vsub.s32 32, %v2720
        %v2722 = vshrl.u32 683565275, %v2721
        %v2723 = vshll.u32 683565275, %v2720
        %v2724 = vshrl.u32 2475754826, %v2721
        %v2725 = vor.u32 %v2723, %v2724
        %v2726 = vshll.u32 2475754826, %v2720
        %v2727 = vshrl.u32 2131351028, %v2721
        %v2728 = vor.u32 %v2726, %v2727
        %v2729 = vshll.u32 2131351028, %v2720
        %v2730 = vshrl.u32 2102212464, %v2721
        %v2731 = vor.u32 %v2729, %v2730
        %v2732 = vshll.u32 2102212464, %v2720
        %v2733 = vshrl.u32 920167782, %v2721
        %v2734 = vor.u32 %v2732, %v2733
        %v2735 = vshll.u32 920167782, %v2720
        %v2736 = vshrl.u32 1326507024, %v2721
        %v2737 = vor.u32 %v2735, %v2736
        %vm2738 = vcmp.lt.s32.totalorder %v2719, 1
        %vm2739 = vcmp.lt.s32.totalorder %v2719, 2
        %vm2740 = vcmp.lt.s32.totalorder %v2719, 3
        %vm2741 = vcmp.lt.s32.totalorder %v2719, 4
        %v2742 = vsel %vm2738, %v2722, %v2725
        %v2743 = vsel %vm2741, %v2731, 2102212464
        %v2744 = vsel %vm2740, %v2728, %v2743
        %v2745 = vsel %vm2739, %v2742, %v2744
        %v2746 = vsel %vm2738, %v2725, %v2728
        %v2747 = vsel %vm2741, %v2734, 920167782
        %v2748 = vsel %vm2740, %v2731, %v2747
        %v2749 = vsel %vm2739, %v2746, %v2748
        %v2750 = vsel %vm2738, %v2728, %v2731
        %v2751 = vsel %vm2741, %v2737, 1326507024
        %v2752 = vsel %vm2740, %v2734, %v2751
        %v2753 = vsel %vm2739, %v2750, %v2752
        %v2754 = vshll.u32 %v2714, 8
        %v2755 = vmul.u32.u64.compose %v2754, %v2753
        %v2756 = vextract.low.u32 %v2755
        %v2757 = vextract.high.u32 %v2755
        %v2758 = vmul.u32.u64.compose %v2754, %v2749
        %v2759 = vextract.low.u32 %v2758
        %v2760 = vextract.high.u32 %v2758
        %v2761 = vmul.u32 %v2754, %v2745
        %v2762 = vadd.s32 %v2757, %v2759
        %vm2763 = vc.u32 %v2757, %v2759
        %v2764 = vadd.s32 %v2760, 1
        %v2765 = vsel %vm2763, %v2764, %v2760
        %v2766 = vadd.s32 %v2761, %v2765
        %v2767 = vadd.s32 %v2766, 536870912
        %v2768 = vshrl.u32 %v2767, 30
        %v2769 = vshll.u32 %v2768, 30
        %v2770 = vsub.s32 %v2766, %v2769
        %vm2771 = vcmp.lt.s32.totalorder %v2770, 0
        %v2772 = vsub.s32 0, %v2770
        %v2773 = vsel %vm2771, %v2772, %v2770
        %v2774 = vclz %v2773
        %v2775 = vsub.s32 %v2774, 2
        %vm2776 = vcmp.gt.s32.totalorder 0, %v2775
        %v2777 = vsel %vm2776, 0, %v2775
        %v2778 = vsub.s32 32, %v2777
        %v2779 = vshll.u32 %v2770, %v2777
        %v2780 = vshrl.u32 %v2762, %v2778
        %v2781 = vor.u32 %v2779, %v2780
        %v2782 = vsub.s32 4294967266, %v2777
        %v2783 = vadd.s32 %v2782, 127
        %v2784 = vshll.u32 %v2783, 23
        %v2785 = vor.u32 4788187, %v2784
        %v2786 = vand.u32 2147483647, %v2785
        %v2788 = vcvt.s32.f32 %v2781
        %v2789 = vmul.f32 %v2788, %v2786
        %v2790 = vxor.u32 %v2789, 2147483648
        %v2791 = vsel %vm2708, %v2790, %v2789
        %v2792 = vsub.s32 4, %v2768
        %v2793 = vsel %vm2708, %v2792, %v2768
        %v2794 = vsel %vm2707, %v828, %v2791
        %v2795 = vsel %vm2707, 0, %v2793
        %v2796 = vcosq.f32.pop %v2794
        %v2797 = vsinq.f32.pop %v2794
        %vm2798 = vweird.f32 %v828
        %v2799 = vadd.s32 %v2795, 3
        %v2800 = vand.u32 %v2799, 3
        %vm2801 = vcmp.lt.s32.totalorder %v2800, 2
        %vm2802 = vcmp.eq.s32.totalorder %v2800, 0
        %v2803 = vxor.u32 %v2797, 2147483648
        %v2804 = vsel %vm2802, %v2796, %v2803
        %vm2805 = vcmp.eq.s32.totalorder %v2800, 2
        %v2806 = vxor.u32 %v2796, 2147483648
        %v2807 = vsel %vm2805, %v2806, %v2797
        %v2808 = vsel %vm2801, %v2804, %v2807
        %v2809 = vsel %vm2798, nan, %v2808
        %v2810 = vand.u32 2147483647, %v829
        %vm2811 = vcmp.le.f32.partialorder %v2810, 0.7853982
        %vm2812 = vcmp.lt.s32.totalorder %v829, 0
        %v2813 = vand.u32 %v829, 2139095040
        %v2814 = vshrl.u32 %v2813, 23
        %v2815 = vsub.s32 %v2814, 127
        %v2816 = vand.u32 2147483647, %v829
        %v2817 = vand.u32 %v2816, 8388607
        %v2818 = vor.u32 %v2817, 8388608
        %v2819 = vsub.s32 0, %v2818
        %v2820 = vadd.s32 %v2815, 1
        %vm2821 = vcmp.gt.s32.totalorder %v2820, 0
        %v2822 = vsel %vm2821, %v2820, 0
        %v2823 = vshrl.u32 %v2822, 5
        %v2824 = vand.u32 %v2822, 31
        %v2825 = vsub.s32 32, %v2824
        %v2826 = vshrl.u32 683565275, %v2825
        %v2827 = vshll.u32 683565275, %v2824
        %v2828 = vshrl.u32 2475754826, %v2825
        %v2829 = vor.u32 %v2827, %v2828
        %v2830 = vshll.u32 2475754826, %v2824
        %v2831 = vshrl.u32 2131351028, %v2825
        %v2832 = vor.u32 %v2830, %v2831
        %v2833 = vshll.u32 2131351028, %v2824
        %v2834 = vshrl.u32 2102212464, %v2825
        %v2835 = vor.u32 %v2833, %v2834
        %v2836 = vshll.u32 2102212464, %v2824
        %v2837 = vshrl.u32 920167782, %v2825
        %v2838 = vor.u32 %v2836, %v2837
        %v2839 = vshll.u32 920167782, %v2824
        %v2840 = vshrl.u32 1326507024, %v2825
        %v2841 = vor.u32 %v2839, %v2840
        %vm2842 = vcmp.lt.s32.totalorder %v2823, 1
        %vm2843 = vcmp.lt.s32.totalorder %v2823, 2
        %vm2844 = vcmp.lt.s32.totalorder %v2823, 3
        %vm2845 = vcmp.lt.s32.totalorder %v2823, 4
        %v2846 = vsel %vm2842, %v2826, %v2829
        %v2847 = vsel %vm2845, %v2835, 2102212464
        %v2848 = vsel %vm2844, %v2832, %v2847
        %v2849 = vsel %vm2843, %v2846, %v2848
        %v2850 = vsel %vm2842, %v2829, %v2832
        %v2851 = vsel %vm2845, %v2838, 920167782
        %v2852 = vsel %vm2844, %v2835, %v2851
        %v2853 = vsel %vm2843, %v2850, %v2852
        %v2854 = vsel %vm2842, %v2832, %v2835
        %v2855 = vsel %vm2845, %v2841, 1326507024
        %v2856 = vsel %vm2844, %v2838, %v2855
        %v2857 = vsel %vm2843, %v2854, %v2856
        %v2858 = vshll.u32 %v2818, 8
        %v2859 = vmul.u32.u64.compose %v2858, %v2857
        %v2860 = vextract.low.u32 %v2859
        %v2861 = vextract.high.u32 %v2859
        %v2862 = vmul.u32.u64.compose %v2858, %v2853
        %v2863 = vextract.low.u32 %v2862
        %v2864 = vextract.high.u32 %v2862
        %v2865 = vmul.u32 %v2858, %v2849
        %v2866 = vadd.s32 %v2861, %v2863
        %vm2867 = vc.u32 %v2861, %v2863
        %v2868 = vadd.s32 %v2864, 1
        %v2869 = vsel %vm2867, %v2868, %v2864
        %v2870 = vadd.s32 %v2865, %v2869
        %v2871 = vadd.s32 %v2870, 536870912
        %v2872 = vshrl.u32 %v2871, 30
        %v2873 = vshll.u32 %v2872, 30
        %v2874 = vsub.s32 %v2870, %v2873
        %vm2875 = vcmp.lt.s32.totalorder %v2874, 0
        %v2876 = vsub.s32 0, %v2874
        %v2877 = vsel %vm2875, %v2876, %v2874
        %v2878 = vclz %v2877
        %v2879 = vsub.s32 %v2878, 2
        %vm2880 = vcmp.gt.s32.totalorder 0, %v2879
        %v2881 = vsel %vm2880, 0, %v2879
        %v2882 = vsub.s32 32, %v2881
        %v2883 = vshll.u32 %v2874, %v2881
        %v2884 = vshrl.u32 %v2866, %v2882
        %v2885 = vor.u32 %v2883, %v2884
        %v2886 = vsub.s32 4294967266, %v2881
        %v2887 = vadd.s32 %v2886, 127
        %v2888 = vshll.u32 %v2887, 23
        %v2889 = vor.u32 4788187, %v2888
        %v2890 = vand.u32 2147483647, %v2889
        %v2892 = vcvt.s32.f32 %v2885
        %v2893 = vmul.f32 %v2892, %v2890
        %v2894 = vxor.u32 %v2893, 2147483648
        %v2895 = vsel %vm2812, %v2894, %v2893
        %v2896 = vsub.s32 4, %v2872
        %v2897 = vsel %vm2812, %v2896, %v2872
        %v2898 = vsel %vm2811, %v829, %v2895
        %v2899 = vsel %vm2811, 0, %v2897
        %v2900 = vcosq.f32.pop %v2898
        %v2901 = vsinq.f32.pop %v2898
        %vm2902 = vweird.f32 %v829
        %v2903 = vadd.s32 %v2899, 3
        %v2904 = vand.u32 %v2903, 3
        %vm2905 = vcmp.lt.s32.totalorder %v2904, 2
        %vm2906 = vcmp.eq.s32.totalorder %v2904, 0
        %v2907 = vxor.u32 %v2901, 2147483648
        %v2908 = vsel %vm2906, %v2900, %v2907
        %vm2909 = vcmp.eq.s32.totalorder %v2904, 2
        %v2910 = vxor.u32 %v2900, 2147483648
        %v2911 = vsel %vm2909, %v2910, %v2901
        %v2912 = vsel %vm2905, %v2908, %v2911
        %v2913 = vsel %vm2902, nan, %v2912
        %v2914 = vand.u32 2147483647, %v830
        %vm2915 = vcmp.le.f32.partialorder %v2914, 0.7853982
        %vm2916 = vcmp.lt.s32.totalorder %v830, 0
        %v2917 = vand.u32 %v830, 2139095040
        %v2918 = vshrl.u32 %v2917, 23
        %v2919 = vsub.s32 %v2918, 127
        %v2920 = vand.u32 2147483647, %v830
        %v2921 = vand.u32 %v2920, 8388607
        %v2922 = vor.u32 %v2921, 8388608
        %v2923 = vsub.s32 0, %v2922
        %v2924 = vadd.s32 %v2919, 1
        %vm2925 = vcmp.gt.s32.totalorder %v2924, 0
        %v2926 = vsel %vm2925, %v2924, 0
        %v2927 = vshrl.u32 %v2926, 5
        %v2928 = vand.u32 %v2926, 31
        %v2929 = vsub.s32 32, %v2928
        %v2930 = vshrl.u32 683565275, %v2929
        %v2931 = vshll.u32 683565275, %v2928
        %v2932 = vshrl.u32 2475754826, %v2929
        %v2933 = vor.u32 %v2931, %v2932
        %v2934 = vshll.u32 2475754826, %v2928
        %v2935 = vshrl.u32 2131351028, %v2929
        %v2936 = vor.u32 %v2934, %v2935
        %v2937 = vshll.u32 2131351028, %v2928
        %v2938 = vshrl.u32 2102212464, %v2929
        %v2939 = vor.u32 %v2937, %v2938
        %v2940 = vshll.u32 2102212464, %v2928
        %v2941 = vshrl.u32 920167782, %v2929
        %v2942 = vor.u32 %v2940, %v2941
        %v2943 = vshll.u32 920167782, %v2928
        %v2944 = vshrl.u32 1326507024, %v2929
        %v2945 = vor.u32 %v2943, %v2944
        %vm2946 = vcmp.lt.s32.totalorder %v2927, 1
        %vm2947 = vcmp.lt.s32.totalorder %v2927, 2
        %vm2948 = vcmp.lt.s32.totalorder %v2927, 3
        %vm2949 = vcmp.lt.s32.totalorder %v2927, 4
        %v2950 = vsel %vm2946, %v2930, %v2933
        %v2951 = vsel %vm2949, %v2939, 2102212464
        %v2952 = vsel %vm2948, %v2936, %v2951
        %v2953 = vsel %vm2947, %v2950, %v2952
        %v2954 = vsel %vm2946, %v2933, %v2936
        %v2955 = vsel %vm2949, %v2942, 920167782
        %v2956 = vsel %vm2948, %v2939, %v2955
        %v2957 = vsel %vm2947, %v2954, %v2956
        %v2958 = vsel %vm2946, %v2936, %v2939
        %v2959 = vsel %vm2949, %v2945, 1326507024
        %v2960 = vsel %vm2948, %v2942, %v2959
        %v2961 = vsel %vm2947, %v2958, %v2960
        %v2962 = vshll.u32 %v2922, 8
        %v2963 = vmul.u32.u64.compose %v2962, %v2961
        %v2964 = vextract.low.u32 %v2963
        %v2965 = vextract.high.u32 %v2963
        %v2966 = vmul.u32.u64.compose %v2962, %v2957
        %v2967 = vextract.low.u32 %v2966
        %v2968 = vextract.high.u32 %v2966
        %v2969 = vmul.u32 %v2962, %v2953
        %v2970 = vadd.s32 %v2965, %v2967
        %vm2971 = vc.u32 %v2965, %v2967
        %v2972 = vadd.s32 %v2968, 1
        %v2973 = vsel %vm2971, %v2972, %v2968
        %v2974 = vadd.s32 %v2969, %v2973
        %v2975 = vadd.s32 %v2974, 536870912
        %v2976 = vshrl.u32 %v2975, 30
        %v2977 = vshll.u32 %v2976, 30
        %v2978 = vsub.s32 %v2974, %v2977
        %vm2979 = vcmp.lt.s32.totalorder %v2978, 0
        %v2980 = vsub.s32 0, %v2978
        %v2981 = vsel %vm2979, %v2980, %v2978
        %v2982 = vclz %v2981
        %v2983 = vsub.s32 %v2982, 2
        %vm2984 = vcmp.gt.s32.totalorder 0, %v2983
        %v2985 = vsel %vm2984, 0, %v2983
        %v2986 = vsub.s32 32, %v2985
        %v2987 = vshll.u32 %v2978, %v2985
        %v2988 = vshrl.u32 %v2970, %v2986
        %v2989 = vor.u32 %v2987, %v2988
        %v2990 = vsub.s32 4294967266, %v2985
        %v2991 = vadd.s32 %v2990, 127
        %v2992 = vshll.u32 %v2991, 23
        %v2993 = vor.u32 4788187, %v2992
        %v2994 = vand.u32 2147483647, %v2993
        %v2996 = vcvt.s32.f32 %v2989
        %v2997 = vmul.f32 %v2996, %v2994
        %v2998 = vxor.u32 %v2997, 2147483648
        %v2999 = vsel %vm2916, %v2998, %v2997
        %v3000 = vsub.s32 4, %v2976
        %v3001 = vsel %vm2916, %v3000, %v2976
        %v3002 = vsel %vm2915, %v830, %v2999
        %v3003 = vsel %vm2915, 0, %v3001
        %v3004 = vcosq.f32.pop %v3002
        %v3005 = vsinq.f32.pop %v3002
        %vm3006 = vweird.f32 %v830
        %v3007 = vadd.s32 %v3003, 3
        %v3008 = vand.u32 %v3007, 3
        %vm3009 = vcmp.lt.s32.totalorder %v3008, 2
        %vm3010 = vcmp.eq.s32.totalorder %v3008, 0
        %v3011 = vxor.u32 %v3005, 2147483648
        %v3012 = vsel %vm3010, %v3004, %v3011
        %vm3013 = vcmp.eq.s32.totalorder %v3008, 2
        %v3014 = vxor.u32 %v3004, 2147483648
        %v3015 = vsel %vm3013, %v3014, %v3005
        %v3016 = vsel %vm3009, %v3012, %v3015
        %v3017 = vsel %vm3006, nan, %v3016
        %v3018 = vand.u32 2147483647, %v831
        %vm3019 = vcmp.le.f32.partialorder %v3018, 0.7853982
        %vm3020 = vcmp.lt.s32.totalorder %v831, 0
        %v3021 = vand.u32 %v831, 2139095040
        %v3022 = vshrl.u32 %v3021, 23
        %v3023 = vsub.s32 %v3022, 127
        %v3024 = vand.u32 2147483647, %v831
        %v3025 = vand.u32 %v3024, 8388607
        %v3026 = vor.u32 %v3025, 8388608
        %v3027 = vsub.s32 0, %v3026
        %v3028 = vadd.s32 %v3023, 1
        %vm3029 = vcmp.gt.s32.totalorder %v3028, 0
        %v3030 = vsel %vm3029, %v3028, 0
        %v3031 = vshrl.u32 %v3030, 5
        %v3032 = vand.u32 %v3030, 31
        %v3033 = vsub.s32 32, %v3032
        %v3034 = vshrl.u32 683565275, %v3033
        %v3035 = vshll.u32 683565275, %v3032
        %v3036 = vshrl.u32 2475754826, %v3033
        %v3037 = vor.u32 %v3035, %v3036
        %v3038 = vshll.u32 2475754826, %v3032
        %v3039 = vshrl.u32 2131351028, %v3033
        %v3040 = vor.u32 %v3038, %v3039
        %v3041 = vshll.u32 2131351028, %v3032
        %v3042 = vshrl.u32 2102212464, %v3033
        %v3043 = vor.u32 %v3041, %v3042
        %v3044 = vshll.u32 2102212464, %v3032
        %v3045 = vshrl.u32 920167782, %v3033
        %v3046 = vor.u32 %v3044, %v3045
        %v3047 = vshll.u32 920167782, %v3032
        %v3048 = vshrl.u32 1326507024, %v3033
        %v3049 = vor.u32 %v3047, %v3048
        %vm3050 = vcmp.lt.s32.totalorder %v3031, 1
        %vm3051 = vcmp.lt.s32.totalorder %v3031, 2
        %vm3052 = vcmp.lt.s32.totalorder %v3031, 3
        %vm3053 = vcmp.lt.s32.totalorder %v3031, 4
        %v3054 = vsel %vm3050, %v3034, %v3037
        %v3055 = vsel %vm3053, %v3043, 2102212464
        %v3056 = vsel %vm3052, %v3040, %v3055
        %v3057 = vsel %vm3051, %v3054, %v3056
        %v3058 = vsel %vm3050, %v3037, %v3040
        %v3059 = vsel %vm3053, %v3046, 920167782
        %v3060 = vsel %vm3052, %v3043, %v3059
        %v3061 = vsel %vm3051, %v3058, %v3060
        %v3062 = vsel %vm3050, %v3040, %v3043
        %v3063 = vsel %vm3053, %v3049, 1326507024
        %v3064 = vsel %vm3052, %v3046, %v3063
        %v3065 = vsel %vm3051, %v3062, %v3064
        %v3066 = vshll.u32 %v3026, 8
        %v3067 = vmul.u32.u64.compose %v3066, %v3065
        %v3068 = vextract.low.u32 %v3067
        %v3069 = vextract.high.u32 %v3067
        %v3070 = vmul.u32.u64.compose %v3066, %v3061
        %v3071 = vextract.low.u32 %v3070
        %v3072 = vextract.high.u32 %v3070
        %v3073 = vmul.u32 %v3066, %v3057
        %v3074 = vadd.s32 %v3069, %v3071
        %vm3075 = vc.u32 %v3069, %v3071
        %v3076 = vadd.s32 %v3072, 1
        %v3077 = vsel %vm3075, %v3076, %v3072
        %v3078 = vadd.s32 %v3073, %v3077
        %v3079 = vadd.s32 %v3078, 536870912
        %v3080 = vshrl.u32 %v3079, 30
        %v3081 = vshll.u32 %v3080, 30
        %v3082 = vsub.s32 %v3078, %v3081
        %vm3083 = vcmp.lt.s32.totalorder %v3082, 0
        %v3084 = vsub.s32 0, %v3082
        %v3085 = vsel %vm3083, %v3084, %v3082
        %v3086 = vclz %v3085
        %v3087 = vsub.s32 %v3086, 2
        %vm3088 = vcmp.gt.s32.totalorder 0, %v3087
        %v3089 = vsel %vm3088, 0, %v3087
        %v3090 = vsub.s32 32, %v3089
        %v3091 = vshll.u32 %v3082, %v3089
        %v3092 = vshrl.u32 %v3074, %v3090
        %v3093 = vor.u32 %v3091, %v3092
        %v3094 = vsub.s32 4294967266, %v3089
        %v3095 = vadd.s32 %v3094, 127
        %v3096 = vshll.u32 %v3095, 23
        %v3097 = vor.u32 4788187, %v3096
        %v3098 = vand.u32 2147483647, %v3097
        %v3100 = vcvt.s32.f32 %v3093
        %v3101 = vmul.f32 %v3100, %v3098
        %v3102 = vxor.u32 %v3101, 2147483648
        %v3103 = vsel %vm3020, %v3102, %v3101
        %v3104 = vsub.s32 4, %v3080
        %v3105 = vsel %vm3020, %v3104, %v3080
        %v3106 = vsel %vm3019, %v831, %v3103
        %v3107 = vsel %vm3019, 0, %v3105
        %v3108 = vcosq.f32.pop %v3106
        %v3109 = vsinq.f32.pop %v3106
        %vm3110 = vweird.f32 %v831
        %v3111 = vadd.s32 %v3107, 3
        %v3112 = vand.u32 %v3111, 3
        %vm3113 = vcmp.lt.s32.totalorder %v3112, 2
        %vm3114 = vcmp.eq.s32.totalorder %v3112, 0
        %v3115 = vxor.u32 %v3109, 2147483648
        %v3116 = vsel %vm3114, %v3108, %v3115
        %vm3117 = vcmp.eq.s32.totalorder %v3112, 2
        %v3118 = vxor.u32 %v3108, 2147483648
        %v3119 = vsel %vm3117, %v3118, %v3109
        %v3120 = vsel %vm3113, %v3116, %v3119
        %v3121 = vsel %vm3110, nan, %v3120
        %v3122 = vand.u32 2147483647, %v832
        %vm3123 = vcmp.le.f32.partialorder %v3122, 0.7853982
        %vm3124 = vcmp.lt.s32.totalorder %v832, 0
        %v3125 = vand.u32 %v832, 2139095040
        %v3126 = vshrl.u32 %v3125, 23
        %v3127 = vsub.s32 %v3126, 127
        %v3128 = vand.u32 2147483647, %v832
        %v3129 = vand.u32 %v3128, 8388607
        %v3130 = vor.u32 %v3129, 8388608
        %v3131 = vsub.s32 0, %v3130
        %v3132 = vadd.s32 %v3127, 1
        %vm3133 = vcmp.gt.s32.totalorder %v3132, 0
        %v3134 = vsel %vm3133, %v3132, 0
        %v3135 = vshrl.u32 %v3134, 5
        %v3136 = vand.u32 %v3134, 31
        %v3137 = vsub.s32 32, %v3136
        %v3138 = vshrl.u32 683565275, %v3137
        %v3139 = vshll.u32 683565275, %v3136
        %v3140 = vshrl.u32 2475754826, %v3137
        %v3141 = vor.u32 %v3139, %v3140
        %v3142 = vshll.u32 2475754826, %v3136
        %v3143 = vshrl.u32 2131351028, %v3137
        %v3144 = vor.u32 %v3142, %v3143
        %v3145 = vshll.u32 2131351028, %v3136
        %v3146 = vshrl.u32 2102212464, %v3137
        %v3147 = vor.u32 %v3145, %v3146
        %v3148 = vshll.u32 2102212464, %v3136
        %v3149 = vshrl.u32 920167782, %v3137
        %v3150 = vor.u32 %v3148, %v3149
        %v3151 = vshll.u32 920167782, %v3136
        %v3152 = vshrl.u32 1326507024, %v3137
        %v3153 = vor.u32 %v3151, %v3152
        %vm3154 = vcmp.lt.s32.totalorder %v3135, 1
        %vm3155 = vcmp.lt.s32.totalorder %v3135, 2
        %vm3156 = vcmp.lt.s32.totalorder %v3135, 3
        %vm3157 = vcmp.lt.s32.totalorder %v3135, 4
        %v3158 = vsel %vm3154, %v3138, %v3141
        %v3159 = vsel %vm3157, %v3147, 2102212464
        %v3160 = vsel %vm3156, %v3144, %v3159
        %v3161 = vsel %vm3155, %v3158, %v3160
        %v3162 = vsel %vm3154, %v3141, %v3144
        %v3163 = vsel %vm3157, %v3150, 920167782
        %v3164 = vsel %vm3156, %v3147, %v3163
        %v3165 = vsel %vm3155, %v3162, %v3164
        %v3166 = vsel %vm3154, %v3144, %v3147
        %v3167 = vsel %vm3157, %v3153, 1326507024
        %v3168 = vsel %vm3156, %v3150, %v3167
        %v3169 = vsel %vm3155, %v3166, %v3168
        %v3170 = vshll.u32 %v3130, 8
        %v3171 = vmul.u32.u64.compose %v3170, %v3169
        %v3172 = vextract.low.u32 %v3171
        %v3173 = vextract.high.u32 %v3171
        %v3174 = vmul.u32.u64.compose %v3170, %v3165
        %v3175 = vextract.low.u32 %v3174
        %v3176 = vextract.high.u32 %v3174
        %v3177 = vmul.u32 %v3170, %v3161
        %v3178 = vadd.s32 %v3173, %v3175
        %vm3179 = vc.u32 %v3173, %v3175
        %v3180 = vadd.s32 %v3176, 1
        %v3181 = vsel %vm3179, %v3180, %v3176
        %v3182 = vadd.s32 %v3177, %v3181
        %v3183 = vadd.s32 %v3182, 536870912
        %v3184 = vshrl.u32 %v3183, 30
        %v3185 = vshll.u32 %v3184, 30
        %v3186 = vsub.s32 %v3182, %v3185
        %vm3187 = vcmp.lt.s32.totalorder %v3186, 0
        %v3188 = vsub.s32 0, %v3186
        %v3189 = vsel %vm3187, %v3188, %v3186
        %v3190 = vclz %v3189
        %v3191 = vsub.s32 %v3190, 2
        %vm3192 = vcmp.gt.s32.totalorder 0, %v3191
        %v3193 = vsel %vm3192, 0, %v3191
        %v3194 = vsub.s32 32, %v3193
        %v3195 = vshll.u32 %v3186, %v3193
        %v3196 = vshrl.u32 %v3178, %v3194
        %v3197 = vor.u32 %v3195, %v3196
        %v3198 = vsub.s32 4294967266, %v3193
        %v3199 = vadd.s32 %v3198, 127
        %v3200 = vshll.u32 %v3199, 23
        %v3201 = vor.u32 4788187, %v3200
        %v3202 = vand.u32 2147483647, %v3201
        %v3204 = vcvt.s32.f32 %v3197
        %v3205 = vmul.f32 %v3204, %v3202
        %v3206 = vxor.u32 %v3205, 2147483648
        %v3207 = vsel %vm3124, %v3206, %v3205
        %v3208 = vsub.s32 4, %v3184
        %v3209 = vsel %vm3124, %v3208, %v3184
        %v3210 = vsel %vm3123, %v832, %v3207
        %v3211 = vsel %vm3123, 0, %v3209
        %v3212 = vcosq.f32.pop %v3210
        %v3213 = vsinq.f32.pop %v3210
        %vm3214 = vweird.f32 %v832
        %v3215 = vadd.s32 %v3211, 3
        %v3216 = vand.u32 %v3215, 3
        %vm3217 = vcmp.lt.s32.totalorder %v3216, 2
        %vm3218 = vcmp.eq.s32.totalorder %v3216, 0
        %v3219 = vxor.u32 %v3213, 2147483648
        %v3220 = vsel %vm3218, %v3212, %v3219
        %vm3221 = vcmp.eq.s32.totalorder %v3216, 2
        %v3222 = vxor.u32 %v3212, 2147483648
        %v3223 = vsel %vm3221, %v3222, %v3213
        %v3224 = vsel %vm3217, %v3220, %v3223
        %v3225 = vsel %vm3214, nan, %v3224
        %v3226 = vand.u32 2147483647, %v833
        %vm3227 = vcmp.le.f32.partialorder %v3226, 0.7853982
        %vm3228 = vcmp.lt.s32.totalorder %v833, 0
        %v3229 = vand.u32 %v833, 2139095040
        %v3230 = vshrl.u32 %v3229, 23
        %v3231 = vsub.s32 %v3230, 127
        %v3232 = vand.u32 2147483647, %v833
        %v3233 = vand.u32 %v3232, 8388607
        %v3234 = vor.u32 %v3233, 8388608
        %v3235 = vsub.s32 0, %v3234
        %v3236 = vadd.s32 %v3231, 1
        %vm3237 = vcmp.gt.s32.totalorder %v3236, 0
        %v3238 = vsel %vm3237, %v3236, 0
        %v3239 = vshrl.u32 %v3238, 5
        %v3240 = vand.u32 %v3238, 31
        %v3241 = vsub.s32 32, %v3240
        %v3242 = vshrl.u32 683565275, %v3241
        %v3243 = vshll.u32 683565275, %v3240
        %v3244 = vshrl.u32 2475754826, %v3241
        %v3245 = vor.u32 %v3243, %v3244
        %v3246 = vshll.u32 2475754826, %v3240
        %v3247 = vshrl.u32 2131351028, %v3241
        %v3248 = vor.u32 %v3246, %v3247
        %v3249 = vshll.u32 2131351028, %v3240
        %v3250 = vshrl.u32 2102212464, %v3241
        %v3251 = vor.u32 %v3249, %v3250
        %v3252 = vshll.u32 2102212464, %v3240
        %v3253 = vshrl.u32 920167782, %v3241
        %v3254 = vor.u32 %v3252, %v3253
        %v3255 = vshll.u32 920167782, %v3240
        %v3256 = vshrl.u32 1326507024, %v3241
        %v3257 = vor.u32 %v3255, %v3256
        %vm3258 = vcmp.lt.s32.totalorder %v3239, 1
        %vm3259 = vcmp.lt.s32.totalorder %v3239, 2
        %vm3260 = vcmp.lt.s32.totalorder %v3239, 3
        %vm3261 = vcmp.lt.s32.totalorder %v3239, 4
        %v3262 = vsel %vm3258, %v3242, %v3245
        %v3263 = vsel %vm3261, %v3251, 2102212464
        %v3264 = vsel %vm3260, %v3248, %v3263
        %v3265 = vsel %vm3259, %v3262, %v3264
        %v3266 = vsel %vm3258, %v3245, %v3248
        %v3267 = vsel %vm3261, %v3254, 920167782
        %v3268 = vsel %vm3260, %v3251, %v3267
        %v3269 = vsel %vm3259, %v3266, %v3268
        %v3270 = vsel %vm3258, %v3248, %v3251
        %v3271 = vsel %vm3261, %v3257, 1326507024
        %v3272 = vsel %vm3260, %v3254, %v3271
        %v3273 = vsel %vm3259, %v3270, %v3272
        %v3274 = vshll.u32 %v3234, 8
        %v3275 = vmul.u32.u64.compose %v3274, %v3273
        %v3276 = vextract.low.u32 %v3275
        %v3277 = vextract.high.u32 %v3275
        %v3278 = vmul.u32.u64.compose %v3274, %v3269
        %v3279 = vextract.low.u32 %v3278
        %v3280 = vextract.high.u32 %v3278
        %v3281 = vmul.u32 %v3274, %v3265
        %v3282 = vadd.s32 %v3277, %v3279
        %vm3283 = vc.u32 %v3277, %v3279
        %v3284 = vadd.s32 %v3280, 1
        %v3285 = vsel %vm3283, %v3284, %v3280
        %v3286 = vadd.s32 %v3281, %v3285
        %v3287 = vadd.s32 %v3286, 536870912
        %v3288 = vshrl.u32 %v3287, 30
        %v3289 = vshll.u32 %v3288, 30
        %v3290 = vsub.s32 %v3286, %v3289
        %vm3291 = vcmp.lt.s32.totalorder %v3290, 0
        %v3292 = vsub.s32 0, %v3290
        %v3293 = vsel %vm3291, %v3292, %v3290
        %v3294 = vclz %v3293
        %v3295 = vsub.s32 %v3294, 2
        %vm3296 = vcmp.gt.s32.totalorder 0, %v3295
        %v3297 = vsel %vm3296, 0, %v3295
        %v3298 = vsub.s32 32, %v3297
        %v3299 = vshll.u32 %v3290, %v3297
        %v3300 = vshrl.u32 %v3282, %v3298
        %v3301 = vor.u32 %v3299, %v3300
        %v3302 = vsub.s32 4294967266, %v3297
        %v3303 = vadd.s32 %v3302, 127
        %v3304 = vshll.u32 %v3303, 23
        %v3305 = vor.u32 4788187, %v3304
        %v3306 = vand.u32 2147483647, %v3305
        %v3308 = vcvt.s32.f32 %v3301
        %v3309 = vmul.f32 %v3308, %v3306
        %v3310 = vxor.u32 %v3309, 2147483648
        %v3311 = vsel %vm3228, %v3310, %v3309
        %v3312 = vsub.s32 4, %v3288
        %v3313 = vsel %vm3228, %v3312, %v3288
        %v3314 = vsel %vm3227, %v833, %v3311
        %v3315 = vsel %vm3227, 0, %v3313
        %v3316 = vcosq.f32.pop %v3314
        %v3317 = vsinq.f32.pop %v3314
        %vm3318 = vweird.f32 %v833
        %v3319 = vadd.s32 %v3315, 3
        %v3320 = vand.u32 %v3319, 3
        %vm3321 = vcmp.lt.s32.totalorder %v3320, 2
        %vm3322 = vcmp.eq.s32.totalorder %v3320, 0
        %v3323 = vxor.u32 %v3317, 2147483648
        %v3324 = vsel %vm3322, %v3316, %v3323
        %vm3325 = vcmp.eq.s32.totalorder %v3320, 2
        %v3326 = vxor.u32 %v3316, 2147483648
        %v3327 = vsel %vm3325, %v3326, %v3317
        %v3328 = vsel %vm3321, %v3324, %v3327
        %v3329 = vsel %vm3318, nan, %v3328
        %v3330 = vld [vmem:[%s6] sm:$0x7]
        %v3331 = vld [vmem:[%s7] sm:$0xff]
        %v3332 = vld [vmem:[%s7 + $0x8] sm:$0xff]
        %v3333 = vld [vmem:[%s7 + $0x10] sm:$0xff]
        %v3334 = vld [vmem:[%s7 + $0x18] sm:$0xff]
        %vm3335 = vcmask 261120
        %v3337 = vsel %vm3335, %v937, 0
        %v3340 = vsel %vm3335, %v1041, 0
        %v3343 = vsel %vm3335, %v1145, 0
        %v3346 = vsel %vm3335, %v1249, 0
        %v3349 = vsel %vm3335, %v1353, 0
        %v3352 = vsel %vm3335, %v1457, 0
        %v3355 = vsel %vm3335, %v1561, 0
        %v3358 = vsel %vm3335, %v1665, 0
        %v3361 = vsel %vm3335, %v1769, 0
        %v3364 = vsel %vm3335, %v1873, 0
        %v3367 = vsel %vm3335, %v1977, 0
        %v3370 = vsel %vm3335, %v2081, 0
        %v3373 = vsel %vm3335, %v2185, 0
        %v3376 = vsel %vm3335, %v2289, 0
        %v3379 = vsel %vm3335, %v2393, 0
        %v3382 = vsel %vm3335, %v2497, 0
        %v3385 = vsel %vm3335, %v2601, 0
        %v3388 = vsel %vm3335, %v2705, 0
        %v3391 = vsel %vm3335, %v2809, 0
        %v3394 = vsel %vm3335, %v2913, 0
        %v3397 = vsel %vm3335, %v3017, 0
        %v3400 = vsel %vm3335, %v3121, 0
        %v3403 = vsel %vm3335, %v3225, 0
        %v3406 = vsel %vm3335, %v3329, 0
        %3408 = vmatprep.subr.mxu0 0.0
        %3409 = vmatpush1.msra.mxu0 %v3331
        %3410 = vmatprep.subr.mxu0 0.0
        %3411 = vmatpush1.msra.mxu0 %v3332
        %3412 = vmatprep.subr.mxu0 0.0
        %3413 = vmatpush1.msra.mxu0 %v3333
        %3414 = vmatprep.subr.mxu0 0.0
        %3415 = vmatpush1.msra.mxu0 %v3334
        %3416 = vmatprep.subr.mxu0 0.0
        %3417 = vmatpush1.msra.mxu0 0.0
        %3418 = vmatprep.subr.mxu0 0.0
        %3419 = vmatpush1.msra.mxu0 0.0
        %3420 = vmatprep.subr.mxu0 0.0
        %3421 = vmatpush1.msra.mxu0 0.0
        %3422 = vmatprep.subr.mxu0 0.0
        %3423 = vmatpush1.msra.mxu0 0.0
        %3424 = vmatprep.subr.mxu0 0.0
        %3425 = vmatpush1.msra.mxu0 0.0
        %3426 = vmatprep.subr.mxu0 0.0
        %3427 = vmatpush1.msra.mxu0 0.0
        %3428 = vmatprep.subr.mxu0 0.0
        %3429 = vmatpush1.msra.mxu0 0.0
        %3430 = vmatprep.subr.mxu0 0.0
        %3431 = vmatpush1.msra.mxu0 0.0
        %3432 = vmatprep.subr.mxu0 0.0
        %3433 = vmatpush1.msra.mxu0 0.0
        %3434 = vmatprep.subr.mxu0 0.0
        %3435 = vmatpush1.msra.mxu0 0.0
        %3436 = vmatprep.subr.mxu0 0.0
        %3437 = vmatpush1.msra.mxu0 0.0
        %3438 = vmatprep.subr.mxu0 0.0
        %3439 = vmatpush1.msra.mxu0 0.0
        %3440 = vmatprep.subr.mxu0 0.0
        %3441 = vmatpush1.msra.mxu0 0.0
        %3442 = vmatprep.subr.mxu0 0.0
        %3443 = vmatpush1.msra.mxu0 0.0
        %3444 = vmatprep.subr.mxu0 0.0
        %3445 = vmatpush1.msra.mxu0 0.0
        %3446 = vmatprep.subr.mxu0 0.0
        %3447 = vmatpush1.msra.mxu0 0.0
        %3448 = vmatprep.subr.mxu0 0.0
        %3449 = vmatpush1.msra.mxu0 0.0
        %3450 = vmatprep.subr.mxu0 0.0
        %3451 = vmatpush1.msra.mxu0 0.0
        %3452 = vmatprep.subr.mxu0 0.0
        %3453 = vmatpush1.msra.mxu0 0.0
        %3454 = vmatprep.subr.mxu0 0.0
        %3455 = vmatpush1.msra.mxu0 0.0
        %3456 = vmatprep.subr.mxu0 0.0
        %3457 = vmatpush1.msra.mxu0 0.0
        %3458 = vmatprep.subr.mxu0 0.0
        %3459 = vmatpush1.msra.mxu0 0.0
        %3460 = vmatprep.subr.mxu0 0.0
        %3461 = vmatpush1.msra.mxu0 0.0
        %3462 = vmatprep.subr.mxu0 0.0
        %3463 = vmatpush1.msra.mxu0 0.0
        %3464 = vmatprep.subr.mxu0 0.0
        %3465 = vmatpush1.msra.mxu0 0.0
        %3466 = vmatprep.subr.mxu0 0.0
        %3467 = vmatpush1.msra.mxu0 0.0
        %3468 = vmatprep.subr.mxu0 0.0
        %3469 = vmatpush1.msra.mxu0 0.0
        %3470 = vmatprep.subr.mxu0 0.0
        %3471 = vmatpush1.msra.mxu0 0.0
        %3472 = vmatprep.mubr.f32.mxu0 0.0
        %3473 = vmatmul.mubr.f32.gmra.mrb[0].mxu0 %v3337
        %v3474 = vpop.f32.mrb[0].mxu0
        %v3475 = vadd.f32 0.0, %v3474
        %v3476 = vpop.f32.mrb[0].mxu0
        %3477 = vmatprep.mubr.f32.mxu0 0.0
        %3478 = vmatmul.mubr.f32.gmra.mrb[0].mxu0 %v3340
        %v3479 = vpop.f32.mrb[0].mxu0
        %v3480 = vadd.f32 0.0, %v3479
        %v3481 = vpop.f32.mrb[0].mxu0
        %3482 = vmatprep.mubr.f32.mxu0 0.0
        %3483 = vmatmul.mubr.f32.gmra.mrb[0].mxu0 %v3343
        %v3484 = vpop.f32.mrb[0].mxu0
        %v3485 = vadd.f32 0.0, %v3484
        %v3486 = vpop.f32.mrb[0].mxu0
        %3487 = vmatprep.mubr.f32.mxu0 0.0
        %3488 = vmatmul.mubr.f32.gmra.mrb[0].mxu0 %v3346
        %v3489 = vpop.f32.mrb[0].mxu0
        %v3490 = vadd.f32 0.0, %v3489
        %v3491 = vpop.f32.mrb[0].mxu0
        %3492 = vmatprep.mubr.f32.mxu0 0.0
        %3493 = vmatmul.mubr.f32.gmra.mrb[0].mxu0 %v3349
        %v3494 = vpop.f32.mrb[0].mxu0
        %v3495 = vadd.f32 0.0, %v3494
        %v3496 = vpop.f32.mrb[0].mxu0
        %3497 = vmatprep.mubr.f32.mxu0 0.0
        %3498 = vmatmul.mubr.f32.gmra.mrb[0].mxu0 %v3352
        %v3499 = vpop.f32.mrb[0].mxu0
        %v3500 = vadd.f32 0.0, %v3499
        %v3501 = vpop.f32.mrb[0].mxu0
        %3502 = vmatprep.mubr.f32.mxu0 0.0
        %3503 = vmatmul.mubr.f32.gmra.mrb[0].mxu0 %v3355
        %v3504 = vpop.f32.mrb[0].mxu0
        %v3505 = vadd.f32 0.0, %v3504
        %v3506 = vpop.f32.mrb[0].mxu0
        %3507 = vmatprep.mubr.f32.mxu0 0.0
        %3508 = vmatmul.mubr.f32.gmra.mrb[0].mxu0 %v3358
        %v3509 = vpop.f32.mrb[0].mxu0
        %v3510 = vadd.f32 0.0, %v3509
        %v3511 = vpop.f32.mrb[0].mxu0
        %3512 = vmatprep.mubr.f32.mxu0 0.0
        %3513 = vmatmul.mubr.f32.gmra.mrb[0].mxu0 %v3361
        %v3514 = vpop.f32.mrb[0].mxu0
        %v3515 = vadd.f32 0.0, %v3514
        %v3516 = vpop.f32.mrb[0].mxu0
        %3517 = vmatprep.mubr.f32.mxu0 0.0
        %3518 = vmatmul.mubr.f32.gmra.mrb[0].mxu0 %v3364
        %v3519 = vpop.f32.mrb[0].mxu0
        %v3520 = vadd.f32 0.0, %v3519
        %v3521 = vpop.f32.mrb[0].mxu0
        %3522 = vmatprep.mubr.f32.mxu0 0.0
        %3523 = vmatmul.mubr.f32.gmra.mrb[0].mxu0 %v3367
        %v3524 = vpop.f32.mrb[0].mxu0
        %v3525 = vadd.f32 0.0, %v3524
        %v3526 = vpop.f32.mrb[0].mxu0
        %3527 = vmatprep.mubr.f32.mxu0 0.0
        %3528 = vmatmul.mubr.f32.gmra.mrb[0].mxu0 %v3370
        %v3529 = vpop.f32.mrb[0].mxu0
        %v3530 = vadd.f32 0.0, %v3529
        %v3531 = vpop.f32.mrb[0].mxu0
        %3532 = vmatprep.mubr.f32.mxu0 0.0
        %3533 = vmatmul.mubr.f32.gmra.mrb[0].mxu0 %v3373
        %v3534 = vpop.f32.mrb[0].mxu0
        %v3535 = vadd.f32 0.0, %v3534
        %v3536 = vpop.f32.mrb[0].mxu0
        %3537 = vmatprep.mubr.f32.mxu0 0.0
        %3538 = vmatmul.mubr.f32.gmra.mrb[0].mxu0 %v3376
        %v3539 = vpop.f32.mrb[0].mxu0
        %v3540 = vadd.f32 0.0, %v3539
        %v3541 = vpop.f32.mrb[0].mxu0
        %3542 = vmatprep.mubr.f32.mxu0 0.0
        %3543 = vmatmul.mubr.f32.gmra.mrb[0].mxu0 %v3379
        %v3544 = vpop.f32.mrb[0].mxu0
        %v3545 = vadd.f32 0.0, %v3544
        %v3546 = vpop.f32.mrb[0].mxu0
        %3547 = vmatprep.mubr.f32.mxu0 0.0
        %3548 = vmatmul.mubr.f32.gmra.mrb[0].mxu0 %v3382
        %v3549 = vpop.f32.mrb[0].mxu0
        %v3550 = vadd.f32 0.0, %v3549
        %v3551 = vpop.f32.mrb[0].mxu0
        %3552 = vmatprep.mubr.f32.mxu0 0.0
        %3553 = vmatmul.mubr.f32.gmra.mrb[0].mxu0 %v3385
        %v3554 = vpop.f32.mrb[0].mxu0
        %v3555 = vadd.f32 0.0, %v3554
        %v3556 = vpop.f32.mrb[0].mxu0
        %3557 = vmatprep.mubr.f32.mxu0 0.0
        %3558 = vmatmul.mubr.f32.gmra.mrb[0].mxu0 %v3388
        %v3559 = vpop.f32.mrb[0].mxu0
        %v3560 = vadd.f32 0.0, %v3559
        %v3561 = vpop.f32.mrb[0].mxu0
        %3562 = vmatprep.mubr.f32.mxu0 0.0
        %3563 = vmatmul.mubr.f32.gmra.mrb[0].mxu0 %v3391
        %v3564 = vpop.f32.mrb[0].mxu0
        %v3565 = vadd.f32 0.0, %v3564
        %v3566 = vpop.f32.mrb[0].mxu0
        %3567 = vmatprep.mubr.f32.mxu0 0.0
        %3568 = vmatmul.mubr.f32.gmra.mrb[0].mxu0 %v3394
        %v3569 = vpop.f32.mrb[0].mxu0
        %v3570 = vadd.f32 0.0, %v3569
        %v3571 = vpop.f32.mrb[0].mxu0
        %3572 = vmatprep.mubr.f32.mxu0 0.0
        %3573 = vmatmul.mubr.f32.gmra.mrb[0].mxu0 %v3397
        %v3574 = vpop.f32.mrb[0].mxu0
        %v3575 = vadd.f32 0.0, %v3574
        %v3576 = vpop.f32.mrb[0].mxu0
        %3577 = vmatprep.mubr.f32.mxu0 0.0
        %3578 = vmatmul.mubr.f32.gmra.mrb[0].mxu0 %v3400
        %v3579 = vpop.f32.mrb[0].mxu0
        %v3580 = vadd.f32 0.0, %v3579
        %v3581 = vpop.f32.mrb[0].mxu0
        %3582 = vmatprep.mubr.f32.mxu0 0.0
        %3583 = vmatmul.mubr.f32.gmra.mrb[0].mxu0 %v3403
        %v3584 = vpop.f32.mrb[0].mxu0
        %v3585 = vadd.f32 0.0, %v3584
        %v3586 = vpop.f32.mrb[0].mxu0
        %3587 = vmatprep.mubr.f32.mxu0 0.0
        %3588 = vmatmul.mubr.f32.gmra.mrb[0].mxu0 %v3406
        %v3589 = vpop.f32.mrb[0].mxu0
        %v3590 = vadd.f32 0.0, %v3589
        %v3591 = vpop.f32.mrb[0].mxu0
        %3592 = vdwg.mxu0
        %vm3593 = vcmask 23552
        %v3594 = vsel %vm3593, %v332, 0
        %v3596 = vsel %vm3593, %v333, 0
        %v3598 = vsel %vm3593, %v334, 0
        %v3600 = vsel %vm3593, %v335, 0
        %v3602 = vsel %vm3593, %v336, 0
        %v3604 = vsel %vm3593, %v337, 0
        %v3606 = vsel %vm3593, %v338, 0
        %v3608 = vsel %vm3593, %v339, 0
        %v3610 = vsel %vm3593, %v340, 0
        %v3612 = vsel %vm3593, %v341, 0
        %v3614 = vsel %vm3593, %v342, 0
        %v3616 = vsel %vm3593, %v343, 0
        %v3618 = vsel %vm3593, %v344, 0
        %v3620 = vsel %vm3593, %v345, 0
        %v3622 = vsel %vm3593, %v346, 0
        %v3624 = vsel %vm3593, %v347, 0
        %v3626 = vsel %vm3593, %v348, 0
        %v3628 = vsel %vm3593, %v349, 0
        %v3630 = vsel %vm3593, %v350, 0
        %v3632 = vsel %vm3593, %v351, 0
        %v3634 = vsel %vm3593, %v352, 0
        %v3636 = vsel %vm3593, %v353, 0
        %v3638 = vsel %vm3593, %v354, 0
        %v3640 = vsel %vm3593, %v355, 0
        %vm3642 = vcmask 1042432
        %v3644 = vsel %vm3642, %v3330, 0
        %3646 = vmatprep.subr.mxu0 0.0
        %3647 = vmatpush1.msra.mxu0 %v3644
        %3648 = vmatprep.subr.mxu0 0.0
        %3649 = vmatpush1.msra.mxu0 0.0
        %3650 = vmatprep.subr.mxu0 0.0
        %3651 = vmatpush1.msra.mxu0 0.0
        %3652 = vmatprep.subr.mxu0 0.0
        %3653 = vmatpush1.msra.mxu0 0.0
        %3654 = vmatprep.subr.mxu0 0.0
        %3655 = vmatpush1.msra.mxu0 0.0
        %3656 = vmatprep.subr.mxu0 0.0
        %3657 = vmatpush1.msra.mxu0 0.0
        %3658 = vmatprep.subr.mxu0 0.0
        %3659 = vmatpush1.msra.mxu0 0.0
        %3660 = vmatprep.subr.mxu0 0.0
        %3661 = vmatpush1.msra.mxu0 0.0
        %3662 = vmatprep.subr.mxu0 0.0
        %3663 = vmatpush1.msra.mxu0 0.0
        %3664 = vmatprep.subr.mxu0 0.0
        %3665 = vmatpush1.msra.mxu0 0.0
        %3666 = vmatprep.subr.mxu0 0.0
        %3667 = vmatpush1.msra.mxu0 0.0
        %3668 = vmatprep.subr.mxu0 0.0
        %3669 = vmatpush1.msra.mxu0 0.0
        %3670 = vmatprep.subr.mxu0 0.0
        %3671 = vmatpush1.msra.mxu0 0.0
        %3672 = vmatprep.subr.mxu0 0.0
        %3673 = vmatpush1.msra.mxu0 0.0
        %3674 = vmatprep.subr.mxu0 0.0
        %3675 = vmatpush1.msra.mxu0 0.0
        %3676 = vmatprep.subr.mxu0 0.0
        %3677 = vmatpush1.msra.mxu0 0.0
        %3678 = vmatprep.subr.mxu0 0.0
        %3679 = vmatpush1.msra.mxu0 0.0
        %3680 = vmatprep.subr.mxu0 0.0
        %3681 = vmatpush1.msra.mxu0 0.0
        %3682 = vmatprep.subr.mxu0 0.0
        %3683 = vmatpush1.msra.mxu0 0.0
        %3684 = vmatprep.subr.mxu0 0.0
        %3685 = vmatpush1.msra.mxu0 0.0
        %3686 = vmatprep.subr.mxu0 0.0
        %3687 = vmatpush1.msra.mxu0 0.0
        %3688 = vmatprep.subr.mxu0 0.0
        %3689 = vmatpush1.msra.mxu0 0.0
        %3690 = vmatprep.subr.mxu0 0.0
        %3691 = vmatpush1.msra.mxu0 0.0
        %3692 = vmatprep.subr.mxu0 0.0
        %3693 = vmatpush1.msra.mxu0 0.0
        %3694 = vmatprep.subr.mxu0 0.0
        %3695 = vmatpush1.msra.mxu0 0.0
        %3696 = vmatprep.subr.mxu0 0.0
        %3697 = vmatpush1.msra.mxu0 0.0
        %3698 = vmatprep.subr.mxu0 0.0
        %3699 = vmatpush1.msra.mxu0 0.0
        %3700 = vmatprep.subr.mxu0 0.0
        %3701 = vmatpush1.msra.mxu0 0.0
        %3702 = vmatprep.subr.mxu0 0.0
        %3703 = vmatpush1.msra.mxu0 0.0
        %3704 = vmatprep.subr.mxu0 0.0
        %3705 = vmatpush1.msra.mxu0 0.0
        %3706 = vmatprep.subr.mxu0 0.0
        %3707 = vmatpush1.msra.mxu0 0.0
        %3708 = vmatprep.subr.mxu0 0.0
        %3709 = vmatpush1.msra.mxu0 0.0
        %3710 = vmatprep.mubr.f32.mxu0 0.0
        %3711 = vmatmul.mubr.f32.gmra.mrb[0].mxu0 %v3594
        %v3712 = vpop.f32.mrb[0].mxu0
        %v3713 = vadd.f32 %v3475, %v3712
        %v3714 = vpop.f32.mrb[0].mxu0
        %3715 = vmatprep.mubr.f32.mxu0 0.0
        %3716 = vmatmul.mubr.f32.gmra.mrb[0].mxu0 %v3596
        %v3717 = vpop.f32.mrb[0].mxu0
        %v3718 = vadd.f32 %v3480, %v3717
        %v3719 = vpop.f32.mrb[0].mxu0
        %3720 = vmatprep.mubr.f32.mxu0 0.0
        %3721 = vmatmul.mubr.f32.gmra.mrb[0].mxu0 %v3598
        %v3722 = vpop.f32.mrb[0].mxu0
        %v3723 = vadd.f32 %v3485, %v3722
        %v3724 = vpop.f32.mrb[0].mxu0
        %3725 = vmatprep.mubr.f32.mxu0 0.0
        %3726 = vmatmul.mubr.f32.gmra.mrb[0].mxu0 %v3600
        %v3727 = vpop.f32.mrb[0].mxu0
        %v3728 = vadd.f32 %v3490, %v3727
        %v3729 = vpop.f32.mrb[0].mxu0
        %3730 = vmatprep.mubr.f32.mxu0 0.0
        %3731 = vmatmul.mubr.f32.gmra.mrb[0].mxu0 %v3602
        %v3732 = vpop.f32.mrb[0].mxu0
        %v3733 = vadd.f32 %v3495, %v3732
        %v3734 = vpop.f32.mrb[0].mxu0
        %3735 = vmatprep.mubr.f32.mxu0 0.0
        %3736 = vmatmul.mubr.f32.gmra.mrb[0].mxu0 %v3604
        %v3737 = vpop.f32.mrb[0].mxu0
        %v3738 = vadd.f32 %v3500, %v3737
        %v3739 = vpop.f32.mrb[0].mxu0
        %3740 = vmatprep.mubr.f32.mxu0 0.0
        %3741 = vmatmul.mubr.f32.gmra.mrb[0].mxu0 %v3606
        %v3742 = vpop.f32.mrb[0].mxu0
        %v3743 = vadd.f32 %v3505, %v3742
        %v3744 = vpop.f32.mrb[0].mxu0
        %3745 = vmatprep.mubr.f32.mxu0 0.0
        %3746 = vmatmul.mubr.f32.gmra.mrb[0].mxu0 %v3608
        %v3747 = vpop.f32.mrb[0].mxu0
        %v3748 = vadd.f32 %v3510, %v3747
        %v3749 = vpop.f32.mrb[0].mxu0
        %3750 = vmatprep.mubr.f32.mxu0 0.0
        %3751 = vmatmul.mubr.f32.gmra.mrb[0].mxu0 %v3610
        %v3752 = vpop.f32.mrb[0].mxu0
        %v3753 = vadd.f32 %v3515, %v3752
        %v3754 = vpop.f32.mrb[0].mxu0
        %3755 = vmatprep.mubr.f32.mxu0 0.0
        %3756 = vmatmul.mubr.f32.gmra.mrb[0].mxu0 %v3612
        %v3757 = vpop.f32.mrb[0].mxu0
        %v3758 = vadd.f32 %v3520, %v3757
        %v3759 = vpop.f32.mrb[0].mxu0
        %3760 = vmatprep.mubr.f32.mxu0 0.0
        %3761 = vmatmul.mubr.f32.gmra.mrb[0].mxu0 %v3614
        %v3762 = vpop.f32.mrb[0].mxu0
        %v3763 = vadd.f32 %v3525, %v3762
        %v3764 = vpop.f32.mrb[0].mxu0
        %3765 = vmatprep.mubr.f32.mxu0 0.0
        %3766 = vmatmul.mubr.f32.gmra.mrb[0].mxu0 %v3616
        %v3767 = vpop.f32.mrb[0].mxu0
        %v3768 = vadd.f32 %v3530, %v3767
        %v3769 = vpop.f32.mrb[0].mxu0
        %3770 = vmatprep.mubr.f32.mxu0 0.0
        %3771 = vmatmul.mubr.f32.gmra.mrb[0].mxu0 %v3618
        %v3772 = vpop.f32.mrb[0].mxu0
        %v3773 = vadd.f32 %v3535, %v3772
        %v3774 = vpop.f32.mrb[0].mxu0
        %3775 = vmatprep.mubr.f32.mxu0 0.0
        %3776 = vmatmul.mubr.f32.gmra.mrb[0].mxu0 %v3620
        %v3777 = vpop.f32.mrb[0].mxu0
        %v3778 = vadd.f32 %v3540, %v3777
        %v3779 = vpop.f32.mrb[0].mxu0
        %3780 = vmatprep.mubr.f32.mxu0 0.0
        %3781 = vmatmul.mubr.f32.gmra.mrb[0].mxu0 %v3622
        %v3782 = vpop.f32.mrb[0].mxu0
        %v3783 = vadd.f32 %v3545, %v3782
        %v3784 = vpop.f32.mrb[0].mxu0
        %3785 = vmatprep.mubr.f32.mxu0 0.0
        %3786 = vmatmul.mubr.f32.gmra.mrb[0].mxu0 %v3624
        %v3787 = vpop.f32.mrb[0].mxu0
        %v3788 = vadd.f32 %v3550, %v3787
        %v3789 = vpop.f32.mrb[0].mxu0
        %3790 = vmatprep.mubr.f32.mxu0 0.0
        %3791 = vmatmul.mubr.f32.gmra.mrb[0].mxu0 %v3626
        %v3792 = vpop.f32.mrb[0].mxu0
        %v3793 = vadd.f32 %v3555, %v3792
        %v3794 = vpop.f32.mrb[0].mxu0
        %3795 = vmatprep.mubr.f32.mxu0 0.0
        %3796 = vmatmul.mubr.f32.gmra.mrb[0].mxu0 %v3628
        %v3797 = vpop.f32.mrb[0].mxu0
        %v3798 = vadd.f32 %v3560, %v3797
        %v3799 = vpop.f32.mrb[0].mxu0
        %3800 = vmatprep.mubr.f32.mxu0 0.0
        %3801 = vmatmul.mubr.f32.gmra.mrb[0].mxu0 %v3630
        %v3802 = vpop.f32.mrb[0].mxu0
        %v3803 = vadd.f32 %v3565, %v3802
        %v3804 = vpop.f32.mrb[0].mxu0
        %3805 = vmatprep.mubr.f32.mxu0 0.0
        %3806 = vmatmul.mubr.f32.gmra.mrb[0].mxu0 %v3632
        %v3807 = vpop.f32.mrb[0].mxu0
        %v3808 = vadd.f32 %v3570, %v3807
        %v3809 = vpop.f32.mrb[0].mxu0
        %3810 = vmatprep.mubr.f32.mxu0 0.0
        %3811 = vmatmul.mubr.f32.gmra.mrb[0].mxu0 %v3634
        %v3812 = vpop.f32.mrb[0].mxu0
        %v3813 = vadd.f32 %v3575, %v3812
        %v3814 = vpop.f32.mrb[0].mxu0
        %3815 = vmatprep.mubr.f32.mxu0 0.0
        %3816 = vmatmul.mubr.f32.gmra.mrb[0].mxu0 %v3636
        %v3817 = vpop.f32.mrb[0].mxu0
        %v3818 = vadd.f32 %v3580, %v3817
        %v3819 = vpop.f32.mrb[0].mxu0
        %3820 = vmatprep.mubr.f32.mxu0 0.0
        %3821 = vmatmul.mubr.f32.gmra.mrb[0].mxu0 %v3638
        %v3822 = vpop.f32.mrb[0].mxu0
        %v3823 = vadd.f32 %v3585, %v3822
        %v3824 = vpop.f32.mrb[0].mxu0
        %3825 = vmatprep.mubr.f32.mxu0 0.0
        %3826 = vmatmul.mubr.f32.gmra.mrb[0].mxu0 %v3640
        %v3827 = vpop.f32.mrb[0].mxu0
        %v3828 = vadd.f32 %v3590, %v3827
        %v3829 = vpop.f32.mrb[0].mxu0
        %3830 = vdwg.mxu0
        %v3831 = vld [vmem:[%s8] sm:$0x1]
        %v3833 = vlaneseq
        %v3834 = vshrl.u32 %v3833, 7
        %v3835 = vsub.s32 0, %v3834
        %v3836 = vrot.slane %v3831, %v3835
        %v3838 = vadd.f32 %v3713, %v3836
        %v3839 = vadd.f32 %v3718, %v3836
        %v3840 = vadd.f32 %v3723, %v3836
        %v3841 = vadd.f32 %v3728, %v3836
        %v3842 = vadd.f32 %v3733, %v3836
        %v3843 = vadd.f32 %v3738, %v3836
        %v3844 = vadd.f32 %v3743, %v3836
        %v3845 = vadd.f32 %v3748, %v3836
        %v3846 = vadd.f32 %v3753, %v3836
        %v3847 = vadd.f32 %v3758, %v3836
        %v3848 = vadd.f32 %v3763, %v3836
        %v3849 = vadd.f32 %v3768, %v3836
        %v3850 = vadd.f32 %v3773, %v3836
        %v3851 = vadd.f32 %v3778, %v3836
        %v3852 = vadd.f32 %v3783, %v3836
        %v3853 = vadd.f32 %v3788, %v3836
        %v3854 = vadd.f32 %v3793, %v3836
        %v3855 = vadd.f32 %v3798, %v3836
        %v3856 = vadd.f32 %v3803, %v3836
        %v3857 = vadd.f32 %v3808, %v3836
        %v3858 = vadd.f32 %v3813, %v3836
        %v3859 = vadd.f32 %v3818, %v3836
        %v3860 = vadd.f32 %v3823, %v3836
        %v3861 = vadd.f32 %v3828, %v3836
        %v3862 = vmax.f32 %v3838, 0.0
        %v3863 = vmax.f32 %v3839, 0.0
        %v3864 = vmax.f32 %v3840, 0.0
        %v3865 = vmax.f32 %v3841, 0.0
        %v3866 = vmax.f32 %v3842, 0.0
        %v3867 = vmax.f32 %v3843, 0.0
        %v3868 = vmax.f32 %v3844, 0.0
        %v3869 = vmax.f32 %v3845, 0.0
        %v3870 = vmax.f32 %v3846, 0.0
        %v3871 = vmax.f32 %v3847, 0.0
        %v3872 = vmax.f32 %v3848, 0.0
        %v3873 = vmax.f32 %v3849, 0.0
        %v3874 = vmax.f32 %v3850, 0.0
        %v3875 = vmax.f32 %v3851, 0.0
        %v3876 = vmax.f32 %v3852, 0.0
        %v3877 = vmax.f32 %v3853, 0.0
        %v3878 = vmax.f32 %v3854, 0.0
        %v3879 = vmax.f32 %v3855, 0.0
        %v3880 = vmax.f32 %v3856, 0.0
        %v3881 = vmax.f32 %v3857, 0.0
        %v3882 = vmax.f32 %v3858, 0.0
        %v3883 = vmax.f32 %v3859, 0.0
        %v3884 = vmax.f32 %v3860, 0.0
        %v3885 = vmax.f32 %v3861, 0.0
        %vm3886 = vcmp.eq.f32.partialorder %v332, 0.0
        %vm3887 = vcmp.eq.f32.partialorder %v333, 0.0
        %vm3888 = vcmp.eq.f32.partialorder %v334, 0.0
        %vm3889 = vcmp.eq.f32.partialorder %v335, 0.0
        %vm3890 = vcmp.eq.f32.partialorder %v336, 0.0
        %vm3891 = vcmp.eq.f32.partialorder %v337, 0.0
        %vm3892 = vcmp.eq.f32.partialorder %v338, 0.0
        %vm3893 = vcmp.eq.f32.partialorder %v339, 0.0
        %vm3894 = vcmp.eq.f32.partialorder %v340, 0.0
        %vm3895 = vcmp.eq.f32.partialorder %v341, 0.0
        %vm3896 = vcmp.eq.f32.partialorder %v342, 0.0
        %vm3897 = vcmp.eq.f32.partialorder %v343, 0.0
        %vm3898 = vcmp.eq.f32.partialorder %v344, 0.0
        %vm3899 = vcmp.eq.f32.partialorder %v345, 0.0
        %vm3900 = vcmp.eq.f32.partialorder %v346, 0.0
        %vm3901 = vcmp.eq.f32.partialorder %v347, 0.0
        %vm3902 = vcmp.eq.f32.partialorder %v348, 0.0
        %vm3903 = vcmp.eq.f32.partialorder %v349, 0.0
        %vm3904 = vcmp.eq.f32.partialorder %v350, 0.0
        %vm3905 = vcmp.eq.f32.partialorder %v351, 0.0
        %vm3906 = vcmp.eq.f32.partialorder %v352, 0.0
        %vm3907 = vcmp.eq.f32.partialorder %v353, 0.0
        %vm3908 = vcmp.eq.f32.partialorder %v354, 0.0
        %vm3909 = vcmp.eq.f32.partialorder %v355, 0.0
        %v3910 = vsel %vm3886, 1, 0
        %v3911 = vsel %vm3887, 1, 0
        %v3912 = vsel %vm3888, 1, 0
        %v3913 = vsel %vm3889, 1, 0
        %v3914 = vsel %vm3890, 1, 0
        %v3915 = vsel %vm3891, 1, 0
        %v3916 = vsel %vm3892, 1, 0
        %v3917 = vsel %vm3893, 1, 0
        %v3918 = vsel %vm3894, 1, 0
        %v3919 = vsel %vm3895, 1, 0
        %v3920 = vsel %vm3896, 1, 0
        %v3921 = vsel %vm3897, 1, 0
        %v3922 = vsel %vm3898, 1, 0
        %v3923 = vsel %vm3899, 1, 0
        %v3924 = vsel %vm3900, 1, 0
        %v3925 = vsel %vm3901, 1, 0
        %v3926 = vsel %vm3902, 1, 0
        %v3927 = vsel %vm3903, 1, 0
        %v3928 = vsel %vm3904, 1, 0
        %v3929 = vsel %vm3905, 1, 0
        %v3930 = vsel %vm3906, 1, 0
        %v3931 = vsel %vm3907, 1, 0
        %v3932 = vsel %vm3908, 1, 0
        %v3933 = vsel %vm3909, 1, 0
        %3934 = vset.pattern.permute.xlu0 3
        %3935 = vperm.xlu0 %3934, %v3910
        %v3936 = vpop.permute.xlu0 %3935
        %3937 = vset.pattern.permute.xlu0 3
        %3938 = vperm.xlu0 %3937, %v3911
        %v3939 = vpop.permute.xlu0 %3938
        %3940 = vset.pattern.permute.xlu0 3
        %3941 = vperm.xlu0 %3940, %v3912
        %v3942 = vpop.permute.xlu0 %3941
        %3943 = vset.pattern.permute.xlu0 3
        %3944 = vperm.xlu0 %3943, %v3913
        %v3945 = vpop.permute.xlu0 %3944
        %3946 = vset.pattern.permute.xlu0 3
        %3947 = vperm.xlu0 %3946, %v3914
        %v3948 = vpop.permute.xlu0 %3947
        %3949 = vset.pattern.permute.xlu0 3
        %3950 = vperm.xlu0 %3949, %v3915
        %v3951 = vpop.permute.xlu0 %3950
        %3952 = vset.pattern.permute.xlu0 3
        %3953 = vperm.xlu0 %3952, %v3916
        %v3954 = vpop.permute.xlu0 %3953
        %3955 = vset.pattern.permute.xlu0 3
        %3956 = vperm.xlu0 %3955, %v3917
        %v3957 = vpop.permute.xlu0 %3956
        %3958 = vset.pattern.permute.xlu0 3
        %3959 = vperm.xlu0 %3958, %v3918
        %v3960 = vpop.permute.xlu0 %3959
        %3961 = vset.pattern.permute.xlu0 3
        %3962 = vperm.xlu0 %3961, %v3919
        %v3963 = vpop.permute.xlu0 %3962
        %3964 = vset.pattern.permute.xlu0 3
        %3965 = vperm.xlu0 %3964, %v3920
        %v3966 = vpop.permute.xlu0 %3965
        %3967 = vset.pattern.permute.xlu0 3
        %3968 = vperm.xlu0 %3967, %v3921
        %v3969 = vpop.permute.xlu0 %3968
        %3970 = vset.pattern.permute.xlu0 3
        %3971 = vperm.xlu0 %3970, %v3922
        %v3972 = vpop.permute.xlu0 %3971
        %3973 = vset.pattern.permute.xlu0 3
        %3974 = vperm.xlu0 %3973, %v3923
        %v3975 = vpop.permute.xlu0 %3974
        %3976 = vset.pattern.permute.xlu0 3
        %3977 = vperm.xlu0 %3976, %v3924
        %v3978 = vpop.permute.xlu0 %3977
        %3979 = vset.pattern.permute.xlu0 3
        %3980 = vperm.xlu0 %3979, %v3925
        %v3981 = vpop.permute.xlu0 %3980
        %3982 = vset.pattern.permute.xlu0 3
        %3983 = vperm.xlu0 %3982, %v3926
        %v3984 = vpop.permute.xlu0 %3983
        %3985 = vset.pattern.permute.xlu0 3
        %3986 = vperm.xlu0 %3985, %v3927
        %v3987 = vpop.permute.xlu0 %3986
        %3988 = vset.pattern.permute.xlu0 3
        %3989 = vperm.xlu0 %3988, %v3928
        %v3990 = vpop.permute.xlu0 %3989
        %3991 = vset.pattern.permute.xlu0 3
        %3992 = vperm.xlu0 %3991, %v3929
        %v3993 = vpop.permute.xlu0 %3992
        %3994 = vset.pattern.permute.xlu0 3
        %3995 = vperm.xlu0 %3994, %v3930
        %v3996 = vpop.permute.xlu0 %3995
        %3997 = vset.pattern.permute.xlu0 3
        %3998 = vperm.xlu0 %3997, %v3931
        %v3999 = vpop.permute.xlu0 %3998
        %4000 = vset.pattern.permute.xlu0 3
        %4001 = vperm.xlu0 %4000, %v3932
        %v4002 = vpop.permute.xlu0 %4001
        %4003 = vset.pattern.permute.xlu0 3
        %4004 = vperm.xlu0 %4003, %v3933
        %v4005 = vpop.permute.xlu0 %4004
        %vm4006 = vcmp.eq.s32.totalorder %v3936, 1
        %vm4007 = vcmp.eq.s32.totalorder %v3939, 1
        %vm4008 = vcmp.eq.s32.totalorder %v3942, 1
        %vm4009 = vcmp.eq.s32.totalorder %v3945, 1
        %vm4010 = vcmp.eq.s32.totalorder %v3948, 1
        %vm4011 = vcmp.eq.s32.totalorder %v3951, 1
        %vm4012 = vcmp.eq.s32.totalorder %v3954, 1
        %vm4013 = vcmp.eq.s32.totalorder %v3957, 1
        %vm4014 = vcmp.eq.s32.totalorder %v3960, 1
        %vm4015 = vcmp.eq.s32.totalorder %v3963, 1
        %vm4016 = vcmp.eq.s32.totalorder %v3966, 1
        %vm4017 = vcmp.eq.s32.totalorder %v3969, 1
        %vm4018 = vcmp.eq.s32.totalorder %v3972, 1
        %vm4019 = vcmp.eq.s32.totalorder %v3975, 1
        %vm4020 = vcmp.eq.s32.totalorder %v3978, 1
        %vm4021 = vcmp.eq.s32.totalorder %v3981, 1
        %vm4022 = vcmp.eq.s32.totalorder %v3984, 1
        %vm4023 = vcmp.eq.s32.totalorder %v3987, 1
        %vm4024 = vcmp.eq.s32.totalorder %v3990, 1
        %vm4025 = vcmp.eq.s32.totalorder %v3993, 1
        %vm4026 = vcmp.eq.s32.totalorder %v3996, 1
        %vm4027 = vcmp.eq.s32.totalorder %v3999, 1
        %vm4028 = vcmp.eq.s32.totalorder %v4002, 1
        %vm4029 = vcmp.eq.s32.totalorder %v4005, 1
        %v4030 = vsel %vm4006, %v3862, 0.0
        %v4031 = vsel %vm4007, %v3863, 0.0
        %v4032 = vsel %vm4008, %v3864, 0.0
        %v4033 = vsel %vm4009, %v3865, 0.0
        %v4034 = vsel %vm4010, %v3866, 0.0
        %v4035 = vsel %vm4011, %v3867, 0.0
        %v4036 = vsel %vm4012, %v3868, 0.0
        %v4037 = vsel %vm4013, %v3869, 0.0
        %v4038 = vsel %vm4014, %v3870, 0.0
        %v4039 = vsel %vm4015, %v3871, 0.0
        %v4040 = vsel %vm4016, %v3872, 0.0
        %v4041 = vsel %vm4017, %v3873, 0.0
        %v4042 = vsel %vm4018, %v3874, 0.0
        %v4043 = vsel %vm4019, %v3875, 0.0
        %v4044 = vsel %vm4020, %v3876, 0.0
        %v4045 = vsel %vm4021, %v3877, 0.0
        %v4046 = vsel %vm4022, %v3878, 0.0
        %v4047 = vsel %vm4023, %v3879, 0.0
        %v4048 = vsel %vm4024, %v3880, 0.0
        %v4049 = vsel %vm4025, %v3881, 0.0
        %v4050 = vsel %vm4026, %v3882, 0.0
        %v4051 = vsel %vm4027, %v3883, 0.0
        %v4052 = vsel %vm4028, %v3884, 0.0
        %v4053 = vsel %vm4029, %v3885, 0.0
        %v4054 = vmax.f32 %v4030, %v4034
        %v4055 = vmax.f32 %v4031, %v4035
        %v4056 = vmax.f32 %v4032, %v4036
        %v4057 = vmax.f32 %v4033, %v4037
        %v4058 = vmax.f32 %v4054, %v4038
        %v4059 = vmax.f32 %v4055, %v4039
        %v4060 = vmax.f32 %v4056, %v4040
        %v4061 = vmax.f32 %v4057, %v4041
        %v4062 = vmax.f32 %v4058, %v4042
        %v4063 = vmax.f32 %v4059, %v4043
        %v4064 = vmax.f32 %v4060, %v4044
        %v4065 = vmax.f32 %v4061, %v4045
        %v4066 = vmax.f32 %v4062, %v4046
        %v4067 = vmax.f32 %v4063, %v4047
        %v4068 = vmax.f32 %v4064, %v4048
        %v4069 = vmax.f32 %v4065, %v4049
        %v4070 = vmax.f32 %v4066, %v4050
        %v4071 = vmax.f32 %v4067, %v4051
        %v4072 = vmax.f32 %v4068, %v4052
        %v4073 = vmax.f32 %v4069, %v4053
        %v4074 = vmax.f32 %v4070, %v4071
        %v4075 = vmax.f32 %v4072, %v4073
        %v4076 = vmax.f32 %v4074, %v4075
        %v4077 = vrot.slane %v4076, 4
        %v4078 = vmax.f32 %v4076, %v4077
        %v4079 = vrot.slane %v4078, 2
        %v4080 = vmax.f32 %v4078, %v4079
        %v4081 = vrot.slane %v4080, 1
        %v4082 = vmax.f32 %v4080, %v4081
        %v4083 = vld [vmem:[#allocation2] sm:$0x1]
        %v4084 = vmax.f32 %v4083, %v4082
        %4085 = vst [vmem:[#allocation2] sm:$0x1] %v4084
        %vm4086 = vcmp.eq.f32.partialorder %v332, 1.0
        %vm4087 = vcmp.eq.f32.partialorder %v333, 1.0
        %vm4088 = vcmp.eq.f32.partialorder %v334, 1.0
        %vm4089 = vcmp.eq.f32.partialorder %v335, 1.0
        %vm4090 = vcmp.eq.f32.partialorder %v336, 1.0
        %vm4091 = vcmp.eq.f32.partialorder %v337, 1.0
        %vm4092 = vcmp.eq.f32.partialorder %v338, 1.0
        %vm4093 = vcmp.eq.f32.partialorder %v339, 1.0
        %vm4094 = vcmp.eq.f32.partialorder %v340, 1.0
        %vm4095 = vcmp.eq.f32.partialorder %v341, 1.0
        %vm4096 = vcmp.eq.f32.partialorder %v342, 1.0
        %vm4097 = vcmp.eq.f32.partialorder %v343, 1.0
        %vm4098 = vcmp.eq.f32.partialorder %v344, 1.0
        %vm4099 = vcmp.eq.f32.partialorder %v345, 1.0
        %vm4100 = vcmp.eq.f32.partialorder %v346, 1.0
        %vm4101 = vcmp.eq.f32.partialorder %v347, 1.0
        %vm4102 = vcmp.eq.f32.partialorder %v348, 1.0
        %vm4103 = vcmp.eq.f32.partialorder %v349, 1.0
        %vm4104 = vcmp.eq.f32.partialorder %v350, 1.0
        %vm4105 = vcmp.eq.f32.partialorder %v351, 1.0
        %vm4106 = vcmp.eq.f32.partialorder %v352, 1.0
        %vm4107 = vcmp.eq.f32.partialorder %v353, 1.0
        %vm4108 = vcmp.eq.f32.partialorder %v354, 1.0
        %vm4109 = vcmp.eq.f32.partialorder %v355, 1.0
        %v4110 = vsel %vm4086, 1, 0
        %v4111 = vsel %vm4087, 1, 0
        %v4112 = vsel %vm4088, 1, 0
        %v4113 = vsel %vm4089, 1, 0
        %v4114 = vsel %vm4090, 1, 0
        %v4115 = vsel %vm4091, 1, 0
        %v4116 = vsel %vm4092, 1, 0
        %v4117 = vsel %vm4093, 1, 0
        %v4118 = vsel %vm4094, 1, 0
        %v4119 = vsel %vm4095, 1, 0
        %v4120 = vsel %vm4096, 1, 0
        %v4121 = vsel %vm4097, 1, 0
        %v4122 = vsel %vm4098, 1, 0
        %v4123 = vsel %vm4099, 1, 0
        %v4124 = vsel %vm4100, 1, 0
        %v4125 = vsel %vm4101, 1, 0
        %v4126 = vsel %vm4102, 1, 0
        %v4127 = vsel %vm4103, 1, 0
        %v4128 = vsel %vm4104, 1, 0
        %v4129 = vsel %vm4105, 1, 0
        %v4130 = vsel %vm4106, 1, 0
        %v4131 = vsel %vm4107, 1, 0
        %v4132 = vsel %vm4108, 1, 0
        %v4133 = vsel %vm4109, 1, 0
        %4134 = vset.pattern.permute.xlu0 3
        %4135 = vperm.xlu0 %4134, %v4110
        %v4136 = vpop.permute.xlu0 %4135
        %4137 = vset.pattern.permute.xlu0 3
        %4138 = vperm.xlu0 %4137, %v4111
        %v4139 = vpop.permute.xlu0 %4138
        %4140 = vset.pattern.permute.xlu0 3
        %4141 = vperm.xlu0 %4140, %v4112
        %v4142 = vpop.permute.xlu0 %4141
        %4143 = vset.pattern.permute.xlu0 3
        %4144 = vperm.xlu0 %4143, %v4113
        %v4145 = vpop.permute.xlu0 %4144
        %4146 = vset.pattern.permute.xlu0 3
        %4147 = vperm.xlu0 %4146, %v4114
        %v4148 = vpop.permute.xlu0 %4147
        %4149 = vset.pattern.permute.xlu0 3
        %4150 = vperm.xlu0 %4149, %v4115
        %v4151 = vpop.permute.xlu0 %4150
        %4152 = vset.pattern.permute.xlu0 3
        %4153 = vperm.xlu0 %4152, %v4116
        %v4154 = vpop.permute.xlu0 %4153
        %4155 = vset.pattern.permute.xlu0 3
        %4156 = vperm.xlu0 %4155, %v4117
        %v4157 = vpop.permute.xlu0 %4156
        %4158 = vset.pattern.permute.xlu0 3
        %4159 = vperm.xlu0 %4158, %v4118
        %v4160 = vpop.permute.xlu0 %4159
        %4161 = vset.pattern.permute.xlu0 3
        %4162 = vperm.xlu0 %4161, %v4119
        %v4163 = vpop.permute.xlu0 %4162
        %4164 = vset.pattern.permute.xlu0 3
        %4165 = vperm.xlu0 %4164, %v4120
        %v4166 = vpop.permute.xlu0 %4165
        %4167 = vset.pattern.permute.xlu0 3
        %4168 = vperm.xlu0 %4167, %v4121
        %v4169 = vpop.permute.xlu0 %4168
        %4170 = vset.pattern.permute.xlu0 3
        %4171 = vperm.xlu0 %4170, %v4122
        %v4172 = vpop.permute.xlu0 %4171
        %4173 = vset.pattern.permute.xlu0 3
        %4174 = vperm.xlu0 %4173, %v4123
        %v4175 = vpop.permute.xlu0 %4174
        %4176 = vset.pattern.permute.xlu0 3
        %4177 = vperm.xlu0 %4176, %v4124
        %v4178 = vpop.permute.xlu0 %4177
        %4179 = vset.pattern.permute.xlu0 3
        %4180 = vperm.xlu0 %4179, %v4125
        %v4181 = vpop.permute.xlu0 %4180
        %4182 = vset.pattern.permute.xlu0 3
        %4183 = vperm.xlu0 %4182, %v4126
        %v4184 = vpop.permute.xlu0 %4183
        %4185 = vset.pattern.permute.xlu0 3
        %4186 = vperm.xlu0 %4185, %v4127
        %v4187 = vpop.permute.xlu0 %4186
        %4188 = vset.pattern.permute.xlu0 3
        %4189 = vperm.xlu0 %4188, %v4128
        %v4190 = vpop.permute.xlu0 %4189
        %4191 = vset.pattern.permute.xlu0 3
        %4192 = vperm.xlu0 %4191, %v4129
        %v4193 = vpop.permute.xlu0 %4192
        %4194 = vset.pattern.permute.xlu0 3
        %4195 = vperm.xlu0 %4194, %v4130
        %v4196 = vpop.permute.xlu0 %4195
        %4197 = vset.pattern.permute.xlu0 3
        %4198 = vperm.xlu0 %4197, %v4131
        %v4199 = vpop.permute.xlu0 %4198
        %4200 = vset.pattern.permute.xlu0 3
        %4201 = vperm.xlu0 %4200, %v4132
        %v4202 = vpop.permute.xlu0 %4201
        %4203 = vset.pattern.permute.xlu0 3
        %4204 = vperm.xlu0 %4203, %v4133
        %v4205 = vpop.permute.xlu0 %4204
        %vm4206 = vcmp.eq.s32.totalorder %v4136, 1
        %vm4207 = vcmp.eq.s32.totalorder %v4139, 1
        %vm4208 = vcmp.eq.s32.totalorder %v4142, 1
        %vm4209 = vcmp.eq.s32.totalorder %v4145, 1
        %vm4210 = vcmp.eq.s32.totalorder %v4148, 1
        %vm4211 = vcmp.eq.s32.totalorder %v4151, 1
        %vm4212 = vcmp.eq.s32.totalorder %v4154, 1
        %vm4213 = vcmp.eq.s32.totalorder %v4157, 1
        %vm4214 = vcmp.eq.s32.totalorder %v4160, 1
        %vm4215 = vcmp.eq.s32.totalorder %v4163, 1
        %vm4216 = vcmp.eq.s32.totalorder %v4166, 1
        %vm4217 = vcmp.eq.s32.totalorder %v4169, 1
        %vm4218 = vcmp.eq.s32.totalorder %v4172, 1
        %vm4219 = vcmp.eq.s32.totalorder %v4175, 1
        %vm4220 = vcmp.eq.s32.totalorder %v4178, 1
        %vm4221 = vcmp.eq.s32.totalorder %v4181, 1
        %vm4222 = vcmp.eq.s32.totalorder %v4184, 1
        %vm4223 = vcmp.eq.s32.totalorder %v4187, 1
        %vm4224 = vcmp.eq.s32.totalorder %v4190, 1
        %vm4225 = vcmp.eq.s32.totalorder %v4193, 1
        %vm4226 = vcmp.eq.s32.totalorder %v4196, 1
        %vm4227 = vcmp.eq.s32.totalorder %v4199, 1
        %vm4228 = vcmp.eq.s32.totalorder %v4202, 1
        %vm4229 = vcmp.eq.s32.totalorder %v4205, 1
        %v4230 = vsel %vm4206, %v3862, 0.0
        %v4231 = vsel %vm4207, %v3863, 0.0
        %v4232 = vsel %vm4208, %v3864, 0.0
        %v4233 = vsel %vm4209, %v3865, 0.0
        %v4234 = vsel %vm4210, %v3866, 0.0
        %v4235 = vsel %vm4211, %v3867, 0.0
        %v4236 = vsel %vm4212, %v3868, 0.0
        %v4237 = vsel %vm4213, %v3869, 0.0
        %v4238 = vsel %vm4214, %v3870, 0.0
        %v4239 = vsel %vm4215, %v3871, 0.0
        %v4240 = vsel %vm4216, %v3872, 0.0
        %v4241 = vsel %vm4217, %v3873, 0.0
        %v4242 = vsel %vm4218, %v3874, 0.0
        %v4243 = vsel %vm4219, %v3875, 0.0
        %v4244 = vsel %vm4220, %v3876, 0.0
        %v4245 = vsel %vm4221, %v3877, 0.0
        %v4246 = vsel %vm4222, %v3878, 0.0
        %v4247 = vsel %vm4223, %v3879, 0.0
        %v4248 = vsel %vm4224, %v3880, 0.0
        %v4249 = vsel %vm4225, %v3881, 0.0
        %v4250 = vsel %vm4226, %v3882, 0.0
        %v4251 = vsel %vm4227, %v3883, 0.0
        %v4252 = vsel %vm4228, %v3884, 0.0
        %v4253 = vsel %vm4229, %v3885, 0.0
        %v4254 = vmax.f32 %v4230, %v4234
        %v4255 = vmax.f32 %v4231, %v4235
        %v4256 = vmax.f32 %v4232, %v4236
        %v4257 = vmax.f32 %v4233, %v4237
        %v4258 = vmax.f32 %v4254, %v4238
        %v4259 = vmax.f32 %v4255, %v4239
        %v4260 = vmax.f32 %v4256, %v4240
        %v4261 = vmax.f32 %v4257, %v4241
        %v4262 = vmax.f32 %v4258, %v4242
        %v4263 = vmax.f32 %v4259, %v4243
        %v4264 = vmax.f32 %v4260, %v4244
        %v4265 = vmax.f32 %v4261, %v4245
        %v4266 = vmax.f32 %v4262, %v4246
        %v4267 = vmax.f32 %v4263, %v4247
        %v4268 = vmax.f32 %v4264, %v4248
        %v4269 = vmax.f32 %v4265, %v4249
        %v4270 = vmax.f32 %v4266, %v4250
        %v4271 = vmax.f32 %v4267, %v4251
        %v4272 = vmax.f32 %v4268, %v4252
        %v4273 = vmax.f32 %v4269, %v4253
        %v4274 = vmax.f32 %v4270, %v4271
        %v4275 = vmax.f32 %v4272, %v4273
        %v4276 = vmax.f32 %v4274, %v4275
        %v4277 = vrot.slane %v4276, 4
        %v4278 = vmax.f32 %v4276, %v4277
        %v4279 = vrot.slane %v4278, 2
        %v4280 = vmax.f32 %v4278, %v4279
        %v4281 = vrot.slane %v4280, 1
        %v4282 = vmax.f32 %v4280, %v4281
        %v4283 = vld [vmem:[#allocation2 + $0x1] sm:$0x1]
        %v4284 = vmax.f32 %v4283, %v4282
        %4285 = vst [vmem:[#allocation2 + $0x1] sm:$0x1] %v4284
        %vm4286 = vcmp.eq.f32.partialorder %v332, 2.0
        %vm4287 = vcmp.eq.f32.partialorder %v333, 2.0
        %vm4288 = vcmp.eq.f32.partialorder %v334, 2.0
        %vm4289 = vcmp.eq.f32.partialorder %v335, 2.0
        %vm4290 = vcmp.eq.f32.partialorder %v336, 2.0
        %vm4291 = vcmp.eq.f32.partialorder %v337, 2.0
        %vm4292 = vcmp.eq.f32.partialorder %v338, 2.0
        %vm4293 = vcmp.eq.f32.partialorder %v339, 2.0
        %vm4294 = vcmp.eq.f32.partialorder %v340, 2.0
        %vm4295 = vcmp.eq.f32.partialorder %v341, 2.0
        %vm4296 = vcmp.eq.f32.partialorder %v342, 2.0
        %vm4297 = vcmp.eq.f32.partialorder %v343, 2.0
        %vm4298 = vcmp.eq.f32.partialorder %v344, 2.0
        %vm4299 = vcmp.eq.f32.partialorder %v345, 2.0
        %vm4300 = vcmp.eq.f32.partialorder %v346, 2.0
        %vm4301 = vcmp.eq.f32.partialorder %v347, 2.0
        %vm4302 = vcmp.eq.f32.partialorder %v348, 2.0
        %vm4303 = vcmp.eq.f32.partialorder %v349, 2.0
        %vm4304 = vcmp.eq.f32.partialorder %v350, 2.0
        %vm4305 = vcmp.eq.f32.partialorder %v351, 2.0
        %vm4306 = vcmp.eq.f32.partialorder %v352, 2.0
        %vm4307 = vcmp.eq.f32.partialorder %v353, 2.0
        %vm4308 = vcmp.eq.f32.partialorder %v354, 2.0
        %vm4309 = vcmp.eq.f32.partialorder %v355, 2.0
        %v4310 = vsel %vm4286, 1, 0
        %v4311 = vsel %vm4287, 1, 0
        %v4312 = vsel %vm4288, 1, 0
        %v4313 = vsel %vm4289, 1, 0
        %v4314 = vsel %vm4290, 1, 0
        %v4315 = vsel %vm4291, 1, 0
        %v4316 = vsel %vm4292, 1, 0
        %v4317 = vsel %vm4293, 1, 0
        %v4318 = vsel %vm4294, 1, 0
        %v4319 = vsel %vm4295, 1, 0
        %v4320 = vsel %vm4296, 1, 0
        %v4321 = vsel %vm4297, 1, 0
        %v4322 = vsel %vm4298, 1, 0
        %v4323 = vsel %vm4299, 1, 0
        %v4324 = vsel %vm4300, 1, 0
        %v4325 = vsel %vm4301, 1, 0
        %v4326 = vsel %vm4302, 1, 0
        %v4327 = vsel %vm4303, 1, 0
        %v4328 = vsel %vm4304, 1, 0
        %v4329 = vsel %vm4305, 1, 0
        %v4330 = vsel %vm4306, 1, 0
        %v4331 = vsel %vm4307, 1, 0
        %v4332 = vsel %vm4308, 1, 0
        %v4333 = vsel %vm4309, 1, 0
        %4334 = vset.pattern.permute.xlu0 3
        %4335 = vperm.xlu0 %4334, %v4310
        %v4336 = vpop.permute.xlu0 %4335
        %4337 = vset.pattern.permute.xlu0 3
        %4338 = vperm.xlu0 %4337, %v4311
        %v4339 = vpop.permute.xlu0 %4338
        %4340 = vset.pattern.permute.xlu0 3
        %4341 = vperm.xlu0 %4340, %v4312
        %v4342 = vpop.permute.xlu0 %4341
        %4343 = vset.pattern.permute.xlu0 3
        %4344 = vperm.xlu0 %4343, %v4313
        %v4345 = vpop.permute.xlu0 %4344
        %4346 = vset.pattern.permute.xlu0 3
        %4347 = vperm.xlu0 %4346, %v4314
        %v4348 = vpop.permute.xlu0 %4347
        %4349 = vset.pattern.permute.xlu0 3
        %4350 = vperm.xlu0 %4349, %v4315
        %v4351 = vpop.permute.xlu0 %4350
        %4352 = vset.pattern.permute.xlu0 3
        %4353 = vperm.xlu0 %4352, %v4316
        %v4354 = vpop.permute.xlu0 %4353
        %4355 = vset.pattern.permute.xlu0 3
        %4356 = vperm.xlu0 %4355, %v4317
        %v4357 = vpop.permute.xlu0 %4356
        %4358 = vset.pattern.permute.xlu0 3
        %4359 = vperm.xlu0 %4358, %v4318
        %v4360 = vpop.permute.xlu0 %4359
        %4361 = vset.pattern.permute.xlu0 3
        %4362 = vperm.xlu0 %4361, %v4319
        %v4363 = vpop.permute.xlu0 %4362
        %4364 = vset.pattern.permute.xlu0 3
        %4365 = vperm.xlu0 %4364, %v4320
        %v4366 = vpop.permute.xlu0 %4365
        %4367 = vset.pattern.permute.xlu0 3
        %4368 = vperm.xlu0 %4367, %v4321
        %v4369 = vpop.permute.xlu0 %4368
        %4370 = vset.pattern.permute.xlu0 3
        %4371 = vperm.xlu0 %4370, %v4322
        %v4372 = vpop.permute.xlu0 %4371
        %4373 = vset.pattern.permute.xlu0 3
        %4374 = vperm.xlu0 %4373, %v4323
        %v4375 = vpop.permute.xlu0 %4374
        %4376 = vset.pattern.permute.xlu0 3
        %4377 = vperm.xlu0 %4376, %v4324
        %v4378 = vpop.permute.xlu0 %4377
        %4379 = vset.pattern.permute.xlu0 3
        %4380 = vperm.xlu0 %4379, %v4325
        %v4381 = vpop.permute.xlu0 %4380
        %4382 = vset.pattern.permute.xlu0 3
        %4383 = vperm.xlu0 %4382, %v4326
        %v4384 = vpop.permute.xlu0 %4383
        %4385 = vset.pattern.permute.xlu0 3
        %4386 = vperm.xlu0 %4385, %v4327
        %v4387 = vpop.permute.xlu0 %4386
        %4388 = vset.pattern.permute.xlu0 3
        %4389 = vperm.xlu0 %4388, %v4328
        %v4390 = vpop.permute.xlu0 %4389
        %4391 = vset.pattern.permute.xlu0 3
        %4392 = vperm.xlu0 %4391, %v4329
        %v4393 = vpop.permute.xlu0 %4392
        %4394 = vset.pattern.permute.xlu0 3
        %4395 = vperm.xlu0 %4394, %v4330
        %v4396 = vpop.permute.xlu0 %4395
        %4397 = vset.pattern.permute.xlu0 3
        %4398 = vperm.xlu0 %4397, %v4331
        %v4399 = vpop.permute.xlu0 %4398
        %4400 = vset.pattern.permute.xlu0 3
        %4401 = vperm.xlu0 %4400, %v4332
        %v4402 = vpop.permute.xlu0 %4401
        %4403 = vset.pattern.permute.xlu0 3
        %4404 = vperm.xlu0 %4403, %v4333
        %v4405 = vpop.permute.xlu0 %4404
        %vm4406 = vcmp.eq.s32.totalorder %v4336, 1
        %vm4407 = vcmp.eq.s32.totalorder %v4339, 1
        %vm4408 = vcmp.eq.s32.totalorder %v4342, 1
        %vm4409 = vcmp.eq.s32.totalorder %v4345, 1
        %vm4410 = vcmp.eq.s32.totalorder %v4348, 1
        %vm4411 = vcmp.eq.s32.totalorder %v4351, 1
        %vm4412 = vcmp.eq.s32.totalorder %v4354, 1
        %vm4413 = vcmp.eq.s32.totalorder %v4357, 1
        %vm4414 = vcmp.eq.s32.totalorder %v4360, 1
        %vm4415 = vcmp.eq.s32.totalorder %v4363, 1
        %vm4416 = vcmp.eq.s32.totalorder %v4366, 1
        %vm4417 = vcmp.eq.s32.totalorder %v4369, 1
        %vm4418 = vcmp.eq.s32.totalorder %v4372, 1
        %vm4419 = vcmp.eq.s32.totalorder %v4375, 1
        %vm4420 = vcmp.eq.s32.totalorder %v4378, 1
        %vm4421 = vcmp.eq.s32.totalorder %v4381, 1
        %vm4422 = vcmp.eq.s32.totalorder %v4384, 1
        %vm4423 = vcmp.eq.s32.totalorder %v4387, 1
        %vm4424 = vcmp.eq.s32.totalorder %v4390, 1
        %vm4425 = vcmp.eq.s32.totalorder %v4393, 1
        %vm4426 = vcmp.eq.s32.totalorder %v4396, 1
        %vm4427 = vcmp.eq.s32.totalorder %v4399, 1
        %vm4428 = vcmp.eq.s32.totalorder %v4402, 1
        %vm4429 = vcmp.eq.s32.totalorder %v4405, 1
        %v4430 = vsel %vm4406, %v3862, 0.0
        %v4431 = vsel %vm4407, %v3863, 0.0
        %v4432 = vsel %vm4408, %v3864, 0.0
        %v4433 = vsel %vm4409, %v3865, 0.0
        %v4434 = vsel %vm4410, %v3866, 0.0
        %v4435 = vsel %vm4411, %v3867, 0.0
        %v4436 = vsel %vm4412, %v3868, 0.0
        %v4437 = vsel %vm4413, %v3869, 0.0
        %v4438 = vsel %vm4414, %v3870, 0.0
        %v4439 = vsel %vm4415, %v3871, 0.0
        %v4440 = vsel %vm4416, %v3872, 0.0
        %v4441 = vsel %vm4417, %v3873, 0.0
        %v4442 = vsel %vm4418, %v3874, 0.0
        %v4443 = vsel %vm4419, %v3875, 0.0
        %v4444 = vsel %vm4420, %v3876, 0.0
        %v4445 = vsel %vm4421, %v3877, 0.0
        %v4446 = vsel %vm4422, %v3878, 0.0
        %v4447 = vsel %vm4423, %v3879, 0.0
        %v4448 = vsel %vm4424, %v3880, 0.0
        %v4449 = vsel %vm4425, %v3881, 0.0
        %v4450 = vsel %vm4426, %v3882, 0.0
        %v4451 = vsel %vm4427, %v3883, 0.0
        %v4452 = vsel %vm4428, %v3884, 0.0
        %v4453 = vsel %vm4429, %v3885, 0.0
        %v4454 = vmax.f32 %v4430, %v4434
        %v4455 = vmax.f32 %v4431, %v4435
        %v4456 = vmax.f32 %v4432, %v4436
        %v4457 = vmax.f32 %v4433, %v4437
        %v4458 = vmax.f32 %v4454, %v4438
        %v4459 = vmax.f32 %v4455, %v4439
        %v4460 = vmax.f32 %v4456, %v4440
        %v4461 = vmax.f32 %v4457, %v4441
        %v4462 = vmax.f32 %v4458, %v4442
        %v4463 = vmax.f32 %v4459, %v4443
        %v4464 = vmax.f32 %v4460, %v4444
        %v4465 = vmax.f32 %v4461, %v4445
        %v4466 = vmax.f32 %v4462, %v4446
        %v4467 = vmax.f32 %v4463, %v4447
        %v4468 = vmax.f32 %v4464, %v4448
        %v4469 = vmax.f32 %v4465, %v4449
        %v4470 = vmax.f32 %v4466, %v4450
        %v4471 = vmax.f32 %v4467, %v4451
        %v4472 = vmax.f32 %v4468, %v4452
        %v4473 = vmax.f32 %v4469, %v4453
        %v4474 = vmax.f32 %v4470, %v4471
        %v4475 = vmax.f32 %v4472, %v4473
        %v4476 = vmax.f32 %v4474, %v4475
        %v4477 = vrot.slane %v4476, 4
        %v4478 = vmax.f32 %v4476, %v4477
        %v4479 = vrot.slane %v4478, 2
        %v4480 = vmax.f32 %v4478, %v4479
        %v4481 = vrot.slane %v4480, 1
        %v4482 = vmax.f32 %v4480, %v4481
        %v4483 = vld [vmem:[#allocation2 + $0x2] sm:$0x1]
        %v4484 = vmax.f32 %v4483, %v4482
        %4485 = vst [vmem:[#allocation2 + $0x2] sm:$0x1] %v4484
        %vm4486 = vcmp.eq.f32.partialorder %v332, 3.0
        %vm4487 = vcmp.eq.f32.partialorder %v333, 3.0
        %vm4488 = vcmp.eq.f32.partialorder %v334, 3.0
        %vm4489 = vcmp.eq.f32.partialorder %v335, 3.0
        %vm4490 = vcmp.eq.f32.partialorder %v336, 3.0
        %vm4491 = vcmp.eq.f32.partialorder %v337, 3.0
        %vm4492 = vcmp.eq.f32.partialorder %v338, 3.0
        %vm4493 = vcmp.eq.f32.partialorder %v339, 3.0
        %vm4494 = vcmp.eq.f32.partialorder %v340, 3.0
        %vm4495 = vcmp.eq.f32.partialorder %v341, 3.0
        %vm4496 = vcmp.eq.f32.partialorder %v342, 3.0
        %vm4497 = vcmp.eq.f32.partialorder %v343, 3.0
        %vm4498 = vcmp.eq.f32.partialorder %v344, 3.0
        %vm4499 = vcmp.eq.f32.partialorder %v345, 3.0
        %vm4500 = vcmp.eq.f32.partialorder %v346, 3.0
        %vm4501 = vcmp.eq.f32.partialorder %v347, 3.0
        %vm4502 = vcmp.eq.f32.partialorder %v348, 3.0
        %vm4503 = vcmp.eq.f32.partialorder %v349, 3.0
        %vm4504 = vcmp.eq.f32.partialorder %v350, 3.0
        %vm4505 = vcmp.eq.f32.partialorder %v351, 3.0
        %vm4506 = vcmp.eq.f32.partialorder %v352, 3.0
        %vm4507 = vcmp.eq.f32.partialorder %v353, 3.0
        %vm4508 = vcmp.eq.f32.partialorder %v354, 3.0
        %vm4509 = vcmp.eq.f32.partialorder %v355, 3.0
        %v4510 = vsel %vm4486, 1, 0
        %v4511 = vsel %vm4487, 1, 0
        %v4512 = vsel %vm4488, 1, 0
        %v4513 = vsel %vm4489, 1, 0
        %v4514 = vsel %vm4490, 1, 0
        %v4515 = vsel %vm4491, 1, 0
        %v4516 = vsel %vm4492, 1, 0
        %v4517 = vsel %vm4493, 1, 0
        %v4518 = vsel %vm4494, 1, 0
        %v4519 = vsel %vm4495, 1, 0
        %v4520 = vsel %vm4496, 1, 0
        %v4521 = vsel %vm4497, 1, 0
        %v4522 = vsel %vm4498, 1, 0
        %v4523 = vsel %vm4499, 1, 0
        %v4524 = vsel %vm4500, 1, 0
        %v4525 = vsel %vm4501, 1, 0
        %v4526 = vsel %vm4502, 1, 0
        %v4527 = vsel %vm4503, 1, 0
        %v4528 = vsel %vm4504, 1, 0
        %v4529 = vsel %vm4505, 1, 0
        %v4530 = vsel %vm4506, 1, 0
        %v4531 = vsel %vm4507, 1, 0
        %v4532 = vsel %vm4508, 1, 0
        %v4533 = vsel %vm4509, 1, 0
        %4534 = vset.pattern.permute.xlu0 3
        %4535 = vperm.xlu0 %4534, %v4510
        %v4536 = vpop.permute.xlu0 %4535
        %4537 = vset.pattern.permute.xlu0 3
        %4538 = vperm.xlu0 %4537, %v4511
        %v4539 = vpop.permute.xlu0 %4538
        %4540 = vset.pattern.permute.xlu0 3
        %4541 = vperm.xlu0 %4540, %v4512
        %v4542 = vpop.permute.xlu0 %4541
        %4543 = vset.pattern.permute.xlu0 3
        %4544 = vperm.xlu0 %4543, %v4513
        %v4545 = vpop.permute.xlu0 %4544
        %4546 = vset.pattern.permute.xlu0 3
        %4547 = vperm.xlu0 %4546, %v4514
        %v4548 = vpop.permute.xlu0 %4547
        %4549 = vset.pattern.permute.xlu0 3
        %4550 = vperm.xlu0 %4549, %v4515
        %v4551 = vpop.permute.xlu0 %4550
        %4552 = vset.pattern.permute.xlu0 3
        %4553 = vperm.xlu0 %4552, %v4516
        %v4554 = vpop.permute.xlu0 %4553
        %4555 = vset.pattern.permute.xlu0 3
        %4556 = vperm.xlu0 %4555, %v4517
        %v4557 = vpop.permute.xlu0 %4556
        %4558 = vset.pattern.permute.xlu0 3
        %4559 = vperm.xlu0 %4558, %v4518
        %v4560 = vpop.permute.xlu0 %4559
        %4561 = vset.pattern.permute.xlu0 3
        %4562 = vperm.xlu0 %4561, %v4519
        %v4563 = vpop.permute.xlu0 %4562
        %4564 = vset.pattern.permute.xlu0 3
        %4565 = vperm.xlu0 %4564, %v4520
        %v4566 = vpop.permute.xlu0 %4565
        %4567 = vset.pattern.permute.xlu0 3
        %4568 = vperm.xlu0 %4567, %v4521
        %v4569 = vpop.permute.xlu0 %4568
        %4570 = vset.pattern.permute.xlu0 3
        %4571 = vperm.xlu0 %4570, %v4522
        %v4572 = vpop.permute.xlu0 %4571
        %4573 = vset.pattern.permute.xlu0 3
        %4574 = vperm.xlu0 %4573, %v4523
        %v4575 = vpop.permute.xlu0 %4574
        %4576 = vset.pattern.permute.xlu0 3
        %4577 = vperm.xlu0 %4576, %v4524
        %v4578 = vpop.permute.xlu0 %4577
        %4579 = vset.pattern.permute.xlu0 3
        %4580 = vperm.xlu0 %4579, %v4525
        %v4581 = vpop.permute.xlu0 %4580
        %4582 = vset.pattern.permute.xlu0 3
        %4583 = vperm.xlu0 %4582, %v4526
        %v4584 = vpop.permute.xlu0 %4583
        %4585 = vset.pattern.permute.xlu0 3
        %4586 = vperm.xlu0 %4585, %v4527
        %v4587 = vpop.permute.xlu0 %4586
        %4588 = vset.pattern.permute.xlu0 3
        %4589 = vperm.xlu0 %4588, %v4528
        %v4590 = vpop.permute.xlu0 %4589
        %4591 = vset.pattern.permute.xlu0 3
        %4592 = vperm.xlu0 %4591, %v4529
        %v4593 = vpop.permute.xlu0 %4592
        %4594 = vset.pattern.permute.xlu0 3
        %4595 = vperm.xlu0 %4594, %v4530
        %v4596 = vpop.permute.xlu0 %4595
        %4597 = vset.pattern.permute.xlu0 3
        %4598 = vperm.xlu0 %4597, %v4531
        %v4599 = vpop.permute.xlu0 %4598
        %4600 = vset.pattern.permute.xlu0 3
        %4601 = vperm.xlu0 %4600, %v4532
        %v4602 = vpop.permute.xlu0 %4601
        %4603 = vset.pattern.permute.xlu0 3
        %4604 = vperm.xlu0 %4603, %v4533
        %v4605 = vpop.permute.xlu0 %4604
        %vm4606 = vcmp.eq.s32.totalorder %v4536, 1
        %vm4607 = vcmp.eq.s32.totalorder %v4539, 1
        %vm4608 = vcmp.eq.s32.totalorder %v4542, 1
        %vm4609 = vcmp.eq.s32.totalorder %v4545, 1
        %vm4610 = vcmp.eq.s32.totalorder %v4548, 1
        %vm4611 = vcmp.eq.s32.totalorder %v4551, 1
        %vm4612 = vcmp.eq.s32.totalorder %v4554, 1
        %vm4613 = vcmp.eq.s32.totalorder %v4557, 1
        %vm4614 = vcmp.eq.s32.totalorder %v4560, 1
        %vm4615 = vcmp.eq.s32.totalorder %v4563, 1
        %vm4616 = vcmp.eq.s32.totalorder %v4566, 1
        %vm4617 = vcmp.eq.s32.totalorder %v4569, 1
        %vm4618 = vcmp.eq.s32.totalorder %v4572, 1
        %vm4619 = vcmp.eq.s32.totalorder %v4575, 1
        %vm4620 = vcmp.eq.s32.totalorder %v4578, 1
        %vm4621 = vcmp.eq.s32.totalorder %v4581, 1
        %vm4622 = vcmp.eq.s32.totalorder %v4584, 1
        %vm4623 = vcmp.eq.s32.totalorder %v4587, 1
        %vm4624 = vcmp.eq.s32.totalorder %v4590, 1
        %vm4625 = vcmp.eq.s32.totalorder %v4593, 1
        %vm4626 = vcmp.eq.s32.totalorder %v4596, 1
        %vm4627 = vcmp.eq.s32.totalorder %v4599, 1
        %vm4628 = vcmp.eq.s32.totalorder %v4602, 1
        %vm4629 = vcmp.eq.s32.totalorder %v4605, 1
        %v4630 = vsel %vm4606, %v3862, 0.0
        %v4631 = vsel %vm4607, %v3863, 0.0
        %v4632 = vsel %vm4608, %v3864, 0.0
        %v4633 = vsel %vm4609, %v3865, 0.0
        %v4634 = vsel %vm4610, %v3866, 0.0
        %v4635 = vsel %vm4611, %v3867, 0.0
        %v4636 = vsel %vm4612, %v3868, 0.0
        %v4637 = vsel %vm4613, %v3869, 0.0
        %v4638 = vsel %vm4614, %v3870, 0.0
        %v4639 = vsel %vm4615, %v3871, 0.0
        %v4640 = vsel %vm4616, %v3872, 0.0
        %v4641 = vsel %vm4617, %v3873, 0.0
        %v4642 = vsel %vm4618, %v3874, 0.0
        %v4643 = vsel %vm4619, %v3875, 0.0
        %v4644 = vsel %vm4620, %v3876, 0.0
        %v4645 = vsel %vm4621, %v3877, 0.0
        %v4646 = vsel %vm4622, %v3878, 0.0
        %v4647 = vsel %vm4623, %v3879, 0.0
        %v4648 = vsel %vm4624, %v3880, 0.0
        %v4649 = vsel %vm4625, %v3881, 0.0
        %v4650 = vsel %vm4626, %v3882, 0.0
        %v4651 = vsel %vm4627, %v3883, 0.0
        %v4652 = vsel %vm4628, %v3884, 0.0
        %v4653 = vsel %vm4629, %v3885, 0.0
        %v4654 = vmax.f32 %v4630, %v4634
        %v4655 = vmax.f32 %v4631, %v4635
        %v4656 = vmax.f32 %v4632, %v4636
        %v4657 = vmax.f32 %v4633, %v4637
        %v4658 = vmax.f32 %v4654, %v4638
        %v4659 = vmax.f32 %v4655, %v4639
        %v4660 = vmax.f32 %v4656, %v4640
        %v4661 = vmax.f32 %v4657, %v4641
        %v4662 = vmax.f32 %v4658, %v4642
        %v4663 = vmax.f32 %v4659, %v4643
        %v4664 = vmax.f32 %v4660, %v4644
        %v4665 = vmax.f32 %v4661, %v4645
        %v4666 = vmax.f32 %v4662, %v4646
        %v4667 = vmax.f32 %v4663, %v4647
        %v4668 = vmax.f32 %v4664, %v4648
        %v4669 = vmax.f32 %v4665, %v4649
        %v4670 = vmax.f32 %v4666, %v4650
        %v4671 = vmax.f32 %v4667, %v4651
        %v4672 = vmax.f32 %v4668, %v4652
        %v4673 = vmax.f32 %v4669, %v4653
        %v4674 = vmax.f32 %v4670, %v4671
        %v4675 = vmax.f32 %v4672, %v4673
        %v4676 = vmax.f32 %v4674, %v4675
        %v4677 = vrot.slane %v4676, 4
        %v4678 = vmax.f32 %v4676, %v4677
        %v4679 = vrot.slane %v4678, 2
        %v4680 = vmax.f32 %v4678, %v4679
        %v4681 = vrot.slane %v4680, 1
        %v4682 = vmax.f32 %v4680, %v4681
        %v4683 = vld [vmem:[#allocation2 + $0x3] sm:$0x1]
        %v4684 = vmax.f32 %v4683, %v4682
        %4685 = vst [vmem:[#allocation2 + $0x3] sm:$0x1] %v4684
        %vm4686 = vcmp.eq.f32.partialorder %v332, 4.0
        %vm4687 = vcmp.eq.f32.partialorder %v333, 4.0
        %vm4688 = vcmp.eq.f32.partialorder %v334, 4.0
        %vm4689 = vcmp.eq.f32.partialorder %v335, 4.0
        %vm4690 = vcmp.eq.f32.partialorder %v336, 4.0
        %vm4691 = vcmp.eq.f32.partialorder %v337, 4.0
        %vm4692 = vcmp.eq.f32.partialorder %v338, 4.0
        %vm4693 = vcmp.eq.f32.partialorder %v339, 4.0
        %vm4694 = vcmp.eq.f32.partialorder %v340, 4.0
        %vm4695 = vcmp.eq.f32.partialorder %v341, 4.0
        %vm4696 = vcmp.eq.f32.partialorder %v342, 4.0
        %vm4697 = vcmp.eq.f32.partialorder %v343, 4.0
        %vm4698 = vcmp.eq.f32.partialorder %v344, 4.0
        %vm4699 = vcmp.eq.f32.partialorder %v345, 4.0
        %vm4700 = vcmp.eq.f32.partialorder %v346, 4.0
        %vm4701 = vcmp.eq.f32.partialorder %v347, 4.0
        %vm4702 = vcmp.eq.f32.partialorder %v348, 4.0
        %vm4703 = vcmp.eq.f32.partialorder %v349, 4.0
        %vm4704 = vcmp.eq.f32.partialorder %v350, 4.0
        %vm4705 = vcmp.eq.f32.partialorder %v351, 4.0
        %vm4706 = vcmp.eq.f32.partialorder %v352, 4.0
        %vm4707 = vcmp.eq.f32.partialorder %v353, 4.0
        %vm4708 = vcmp.eq.f32.partialorder %v354, 4.0
        %vm4709 = vcmp.eq.f32.partialorder %v355, 4.0
        %v4710 = vsel %vm4686, 1, 0
        %v4711 = vsel %vm4687, 1, 0
        %v4712 = vsel %vm4688, 1, 0
        %v4713 = vsel %vm4689, 1, 0
        %v4714 = vsel %vm4690, 1, 0
        %v4715 = vsel %vm4691, 1, 0
        %v4716 = vsel %vm4692, 1, 0
        %v4717 = vsel %vm4693, 1, 0
        %v4718 = vsel %vm4694, 1, 0
        %v4719 = vsel %vm4695, 1, 0
        %v4720 = vsel %vm4696, 1, 0
        %v4721 = vsel %vm4697, 1, 0
        %v4722 = vsel %vm4698, 1, 0
        %v4723 = vsel %vm4699, 1, 0
        %v4724 = vsel %vm4700, 1, 0
        %v4725 = vsel %vm4701, 1, 0
        %v4726 = vsel %vm4702, 1, 0
        %v4727 = vsel %vm4703, 1, 0
        %v4728 = vsel %vm4704, 1, 0
        %v4729 = vsel %vm4705, 1, 0
        %v4730 = vsel %vm4706, 1, 0
        %v4731 = vsel %vm4707, 1, 0
        %v4732 = vsel %vm4708, 1, 0
        %v4733 = vsel %vm4709, 1, 0
        %4734 = vset.pattern.permute.xlu0 3
        %4735 = vperm.xlu0 %4734, %v4710
        %v4736 = vpop.permute.xlu0 %4735
        %4737 = vset.pattern.permute.xlu0 3
        %4738 = vperm.xlu0 %4737, %v4711
        %v4739 = vpop.permute.xlu0 %4738
        %4740 = vset.pattern.permute.xlu0 3
        %4741 = vperm.xlu0 %4740, %v4712
        %v4742 = vpop.permute.xlu0 %4741
        %4743 = vset.pattern.permute.xlu0 3
        %4744 = vperm.xlu0 %4743, %v4713
        %v4745 = vpop.permute.xlu0 %4744
        %4746 = vset.pattern.permute.xlu0 3
        %4747 = vperm.xlu0 %4746, %v4714
        %v4748 = vpop.permute.xlu0 %4747
        %4749 = vset.pattern.permute.xlu0 3
        %4750 = vperm.xlu0 %4749, %v4715
        %v4751 = vpop.permute.xlu0 %4750
        %4752 = vset.pattern.permute.xlu0 3
        %4753 = vperm.xlu0 %4752, %v4716
        %v4754 = vpop.permute.xlu0 %4753
        %4755 = vset.pattern.permute.xlu0 3
        %4756 = vperm.xlu0 %4755, %v4717
        %v4757 = vpop.permute.xlu0 %4756
        %4758 = vset.pattern.permute.xlu0 3
        %4759 = vperm.xlu0 %4758, %v4718
        %v4760 = vpop.permute.xlu0 %4759
        %4761 = vset.pattern.permute.xlu0 3
        %4762 = vperm.xlu0 %4761, %v4719
        %v4763 = vpop.permute.xlu0 %4762
        %4764 = vset.pattern.permute.xlu0 3
        %4765 = vperm.xlu0 %4764, %v4720
        %v4766 = vpop.permute.xlu0 %4765
        %4767 = vset.pattern.permute.xlu0 3
        %4768 = vperm.xlu0 %4767, %v4721
        %v4769 = vpop.permute.xlu0 %4768
        %4770 = vset.pattern.permute.xlu0 3
        %4771 = vperm.xlu0 %4770, %v4722
        %v4772 = vpop.permute.xlu0 %4771
        %4773 = vset.pattern.permute.xlu0 3
        %4774 = vperm.xlu0 %4773, %v4723
        %v4775 = vpop.permute.xlu0 %4774
        %4776 = vset.pattern.permute.xlu0 3
        %4777 = vperm.xlu0 %4776, %v4724
        %v4778 = vpop.permute.xlu0 %4777
        %4779 = vset.pattern.permute.xlu0 3
        %4780 = vperm.xlu0 %4779, %v4725
        %v4781 = vpop.permute.xlu0 %4780
        %4782 = vset.pattern.permute.xlu0 3
        %4783 = vperm.xlu0 %4782, %v4726
        %v4784 = vpop.permute.xlu0 %4783
        %4785 = vset.pattern.permute.xlu0 3
        %4786 = vperm.xlu0 %4785, %v4727
        %v4787 = vpop.permute.xlu0 %4786
        %4788 = vset.pattern.permute.xlu0 3
        %4789 = vperm.xlu0 %4788, %v4728
        %v4790 = vpop.permute.xlu0 %4789
        %4791 = vset.pattern.permute.xlu0 3
        %4792 = vperm.xlu0 %4791, %v4729
        %v4793 = vpop.permute.xlu0 %4792
        %4794 = vset.pattern.permute.xlu0 3
        %4795 = vperm.xlu0 %4794, %v4730
        %v4796 = vpop.permute.xlu0 %4795
        %4797 = vset.pattern.permute.xlu0 3
        %4798 = vperm.xlu0 %4797, %v4731
        %v4799 = vpop.permute.xlu0 %4798
        %4800 = vset.pattern.permute.xlu0 3
        %4801 = vperm.xlu0 %4800, %v4732
        %v4802 = vpop.permute.xlu0 %4801
        %4803 = vset.pattern.permute.xlu0 3
        %4804 = vperm.xlu0 %4803, %v4733
        %v4805 = vpop.permute.xlu0 %4804
        %vm4806 = vcmp.eq.s32.totalorder %v4736, 1
        %vm4807 = vcmp.eq.s32.totalorder %v4739, 1
        %vm4808 = vcmp.eq.s32.totalorder %v4742, 1
        %vm4809 = vcmp.eq.s32.totalorder %v4745, 1
        %vm4810 = vcmp.eq.s32.totalorder %v4748, 1
        %vm4811 = vcmp.eq.s32.totalorder %v4751, 1
        %vm4812 = vcmp.eq.s32.totalorder %v4754, 1
        %vm4813 = vcmp.eq.s32.totalorder %v4757, 1
        %vm4814 = vcmp.eq.s32.totalorder %v4760, 1
        %vm4815 = vcmp.eq.s32.totalorder %v4763, 1
        %vm4816 = vcmp.eq.s32.totalorder %v4766, 1
        %vm4817 = vcmp.eq.s32.totalorder %v4769, 1
        %vm4818 = vcmp.eq.s32.totalorder %v4772, 1
        %vm4819 = vcmp.eq.s32.totalorder %v4775, 1
        %vm4820 = vcmp.eq.s32.totalorder %v4778, 1
        %vm4821 = vcmp.eq.s32.totalorder %v4781, 1
        %vm4822 = vcmp.eq.s32.totalorder %v4784, 1
        %vm4823 = vcmp.eq.s32.totalorder %v4787, 1
        %vm4824 = vcmp.eq.s32.totalorder %v4790, 1
        %vm4825 = vcmp.eq.s32.totalorder %v4793, 1
        %vm4826 = vcmp.eq.s32.totalorder %v4796, 1
        %vm4827 = vcmp.eq.s32.totalorder %v4799, 1
        %vm4828 = vcmp.eq.s32.totalorder %v4802, 1
        %vm4829 = vcmp.eq.s32.totalorder %v4805, 1
        %v4830 = vsel %vm4806, %v3862, 0.0
        %v4831 = vsel %vm4807, %v3863, 0.0
        %v4832 = vsel %vm4808, %v3864, 0.0
        %v4833 = vsel %vm4809, %v3865, 0.0
        %v4834 = vsel %vm4810, %v3866, 0.0
        %v4835 = vsel %vm4811, %v3867, 0.0
        %v4836 = vsel %vm4812, %v3868, 0.0
        %v4837 = vsel %vm4813, %v3869, 0.0
        %v4838 = vsel %vm4814, %v3870, 0.0
        %v4839 = vsel %vm4815, %v3871, 0.0
        %v4840 = vsel %vm4816, %v3872, 0.0
        %v4841 = vsel %vm4817, %v3873, 0.0
        %v4842 = vsel %vm4818, %v3874, 0.0
        %v4843 = vsel %vm4819, %v3875, 0.0
        %v4844 = vsel %vm4820, %v3876, 0.0
        %v4845 = vsel %vm4821, %v3877, 0.0
        %v4846 = vsel %vm4822, %v3878, 0.0
        %v4847 = vsel %vm4823, %v3879, 0.0
        %v4848 = vsel %vm4824, %v3880, 0.0
        %v4849 = vsel %vm4825, %v3881, 0.0
        %v4850 = vsel %vm4826, %v3882, 0.0
        %v4851 = vsel %vm4827, %v3883, 0.0
        %v4852 = vsel %vm4828, %v3884, 0.0
        %v4853 = vsel %vm4829, %v3885, 0.0
        %v4854 = vmax.f32 %v4830, %v4834
        %v4855 = vmax.f32 %v4831, %v4835
        %v4856 = vmax.f32 %v4832, %v4836
        %v4857 = vmax.f32 %v4833, %v4837
        %v4858 = vmax.f32 %v4854, %v4838
        %v4859 = vmax.f32 %v4855, %v4839
        %v4860 = vmax.f32 %v4856, %v4840
        %v4861 = vmax.f32 %v4857, %v4841
        %v4862 = vmax.f32 %v4858, %v4842
        %v4863 = vmax.f32 %v4859, %v4843
        %v4864 = vmax.f32 %v4860, %v4844
        %v4865 = vmax.f32 %v4861, %v4845
        %v4866 = vmax.f32 %v4862, %v4846
        %v4867 = vmax.f32 %v4863, %v4847
        %v4868 = vmax.f32 %v4864, %v4848
        %v4869 = vmax.f32 %v4865, %v4849
        %v4870 = vmax.f32 %v4866, %v4850
        %v4871 = vmax.f32 %v4867, %v4851
        %v4872 = vmax.f32 %v4868, %v4852
        %v4873 = vmax.f32 %v4869, %v4853
        %v4874 = vmax.f32 %v4870, %v4871
        %v4875 = vmax.f32 %v4872, %v4873
        %v4876 = vmax.f32 %v4874, %v4875
        %v4877 = vrot.slane %v4876, 4
        %v4878 = vmax.f32 %v4876, %v4877
        %v4879 = vrot.slane %v4878, 2
        %v4880 = vmax.f32 %v4878, %v4879
        %v4881 = vrot.slane %v4880, 1
        %v4882 = vmax.f32 %v4880, %v4881
        %v4883 = vld [vmem:[#allocation2 + $0x4] sm:$0x1]
        %v4884 = vmax.f32 %v4883, %v4882
        %4885 = vst [vmem:[#allocation2 + $0x4] sm:$0x1] %v4884
        %vm4886 = vcmp.eq.f32.partialorder %v332, 5.0
        %vm4887 = vcmp.eq.f32.partialorder %v333, 5.0
        %vm4888 = vcmp.eq.f32.partialorder %v334, 5.0
        %vm4889 = vcmp.eq.f32.partialorder %v335, 5.0
        %vm4890 = vcmp.eq.f32.partialorder %v336, 5.0
        %vm4891 = vcmp.eq.f32.partialorder %v337, 5.0
        %vm4892 = vcmp.eq.f32.partialorder %v338, 5.0
        %vm4893 = vcmp.eq.f32.partialorder %v339, 5.0
        %vm4894 = vcmp.eq.f32.partialorder %v340, 5.0
        %vm4895 = vcmp.eq.f32.partialorder %v341, 5.0
        %vm4896 = vcmp.eq.f32.partialorder %v342, 5.0
        %vm4897 = vcmp.eq.f32.partialorder %v343, 5.0
        %vm4898 = vcmp.eq.f32.partialorder %v344, 5.0
        %vm4899 = vcmp.eq.f32.partialorder %v345, 5.0
        %vm4900 = vcmp.eq.f32.partialorder %v346, 5.0
        %vm4901 = vcmp.eq.f32.partialorder %v347, 5.0
        %vm4902 = vcmp.eq.f32.partialorder %v348, 5.0
        %vm4903 = vcmp.eq.f32.partialorder %v349, 5.0
        %vm4904 = vcmp.eq.f32.partialorder %v350, 5.0
        %vm4905 = vcmp.eq.f32.partialorder %v351, 5.0
        %vm4906 = vcmp.eq.f32.partialorder %v352, 5.0
        %vm4907 = vcmp.eq.f32.partialorder %v353, 5.0
        %vm4908 = vcmp.eq.f32.partialorder %v354, 5.0
        %vm4909 = vcmp.eq.f32.partialorder %v355, 5.0
        %v4910 = vsel %vm4886, 1, 0
        %v4911 = vsel %vm4887, 1, 0
        %v4912 = vsel %vm4888, 1, 0
        %v4913 = vsel %vm4889, 1, 0
        %v4914 = vsel %vm4890, 1, 0
        %v4915 = vsel %vm4891, 1, 0
        %v4916 = vsel %vm4892, 1, 0
        %v4917 = vsel %vm4893, 1, 0
        %v4918 = vsel %vm4894, 1, 0
        %v4919 = vsel %vm4895, 1, 0
        %v4920 = vsel %vm4896, 1, 0
        %v4921 = vsel %vm4897, 1, 0
        %v4922 = vsel %vm4898, 1, 0
        %v4923 = vsel %vm4899, 1, 0
        %v4924 = vsel %vm4900, 1, 0
        %v4925 = vsel %vm4901, 1, 0
        %v4926 = vsel %vm4902, 1, 0
        %v4927 = vsel %vm4903, 1, 0
        %v4928 = vsel %vm4904, 1, 0
        %v4929 = vsel %vm4905, 1, 0
        %v4930 = vsel %vm4906, 1, 0
        %v4931 = vsel %vm4907, 1, 0
        %v4932 = vsel %vm4908, 1, 0
        %v4933 = vsel %vm4909, 1, 0
        %4934 = vset.pattern.permute.xlu0 3
        %4935 = vperm.xlu0 %4934, %v4910
        %v4936 = vpop.permute.xlu0 %4935
        %4937 = vset.pattern.permute.xlu0 3
        %4938 = vperm.xlu0 %4937, %v4911
        %v4939 = vpop.permute.xlu0 %4938
        %4940 = vset.pattern.permute.xlu0 3
        %4941 = vperm.xlu0 %4940, %v4912
        %v4942 = vpop.permute.xlu0 %4941
        %4943 = vset.pattern.permute.xlu0 3
        %4944 = vperm.xlu0 %4943, %v4913
        %v4945 = vpop.permute.xlu0 %4944
        %4946 = vset.pattern.permute.xlu0 3
        %4947 = vperm.xlu0 %4946, %v4914
        %v4948 = vpop.permute.xlu0 %4947
        %4949 = vset.pattern.permute.xlu0 3
        %4950 = vperm.xlu0 %4949, %v4915
        %v4951 = vpop.permute.xlu0 %4950
        %4952 = vset.pattern.permute.xlu0 3
        %4953 = vperm.xlu0 %4952, %v4916
        %v4954 = vpop.permute.xlu0 %4953
        %4955 = vset.pattern.permute.xlu0 3
        %4956 = vperm.xlu0 %4955, %v4917
        %v4957 = vpop.permute.xlu0 %4956
        %4958 = vset.pattern.permute.xlu0 3
        %4959 = vperm.xlu0 %4958, %v4918
        %v4960 = vpop.permute.xlu0 %4959
        %4961 = vset.pattern.permute.xlu0 3
        %4962 = vperm.xlu0 %4961, %v4919
        %v4963 = vpop.permute.xlu0 %4962
        %4964 = vset.pattern.permute.xlu0 3
        %4965 = vperm.xlu0 %4964, %v4920
        %v4966 = vpop.permute.xlu0 %4965
        %4967 = vset.pattern.permute.xlu0 3
        %4968 = vperm.xlu0 %4967, %v4921
        %v4969 = vpop.permute.xlu0 %4968
        %4970 = vset.pattern.permute.xlu0 3
        %4971 = vperm.xlu0 %4970, %v4922
        %v4972 = vpop.permute.xlu0 %4971
        %4973 = vset.pattern.permute.xlu0 3
        %4974 = vperm.xlu0 %4973, %v4923
        %v4975 = vpop.permute.xlu0 %4974
        %4976 = vset.pattern.permute.xlu0 3
        %4977 = vperm.xlu0 %4976, %v4924
        %v4978 = vpop.permute.xlu0 %4977
        %4979 = vset.pattern.permute.xlu0 3
        %4980 = vperm.xlu0 %4979, %v4925
        %v4981 = vpop.permute.xlu0 %4980
        %4982 = vset.pattern.permute.xlu0 3
        %4983 = vperm.xlu0 %4982, %v4926
        %v4984 = vpop.permute.xlu0 %4983
        %4985 = vset.pattern.permute.xlu0 3
        %4986 = vperm.xlu0 %4985, %v4927
        %v4987 = vpop.permute.xlu0 %4986
        %4988 = vset.pattern.permute.xlu0 3
        %4989 = vperm.xlu0 %4988, %v4928
        %v4990 = vpop.permute.xlu0 %4989
        %4991 = vset.pattern.permute.xlu0 3
        %4992 = vperm.xlu0 %4991, %v4929
        %v4993 = vpop.permute.xlu0 %4992
        %4994 = vset.pattern.permute.xlu0 3
        %4995 = vperm.xlu0 %4994, %v4930
        %v4996 = vpop.permute.xlu0 %4995
        %4997 = vset.pattern.permute.xlu0 3
        %4998 = vperm.xlu0 %4997, %v4931
        %v4999 = vpop.permute.xlu0 %4998
        %5000 = vset.pattern.permute.xlu0 3
        %5001 = vperm.xlu0 %5000, %v4932
        %v5002 = vpop.permute.xlu0 %5001
        %5003 = vset.pattern.permute.xlu0 3
        %5004 = vperm.xlu0 %5003, %v4933
        %v5005 = vpop.permute.xlu0 %5004
        %vm5006 = vcmp.eq.s32.totalorder %v4936, 1
        %vm5007 = vcmp.eq.s32.totalorder %v4939, 1
        %vm5008 = vcmp.eq.s32.totalorder %v4942, 1
        %vm5009 = vcmp.eq.s32.totalorder %v4945, 1
        %vm5010 = vcmp.eq.s32.totalorder %v4948, 1
        %vm5011 = vcmp.eq.s32.totalorder %v4951, 1
        %vm5012 = vcmp.eq.s32.totalorder %v4954, 1
        %vm5013 = vcmp.eq.s32.totalorder %v4957, 1
        %vm5014 = vcmp.eq.s32.totalorder %v4960, 1
        %vm5015 = vcmp.eq.s32.totalorder %v4963, 1
        %vm5016 = vcmp.eq.s32.totalorder %v4966, 1
        %vm5017 = vcmp.eq.s32.totalorder %v4969, 1
        %vm5018 = vcmp.eq.s32.totalorder %v4972, 1
        %vm5019 = vcmp.eq.s32.totalorder %v4975, 1
        %vm5020 = vcmp.eq.s32.totalorder %v4978, 1
        %vm5021 = vcmp.eq.s32.totalorder %v4981, 1
        %vm5022 = vcmp.eq.s32.totalorder %v4984, 1
        %vm5023 = vcmp.eq.s32.totalorder %v4987, 1
        %vm5024 = vcmp.eq.s32.totalorder %v4990, 1
        %vm5025 = vcmp.eq.s32.totalorder %v4993, 1
        %vm5026 = vcmp.eq.s32.totalorder %v4996, 1
        %vm5027 = vcmp.eq.s32.totalorder %v4999, 1
        %vm5028 = vcmp.eq.s32.totalorder %v5002, 1
        %vm5029 = vcmp.eq.s32.totalorder %v5005, 1
        %v5030 = vsel %vm5006, %v3862, 0.0
        %v5031 = vsel %vm5007, %v3863, 0.0
        %v5032 = vsel %vm5008, %v3864, 0.0
        %v5033 = vsel %vm5009, %v3865, 0.0
        %v5034 = vsel %vm5010, %v3866, 0.0
        %v5035 = vsel %vm5011, %v3867, 0.0
        %v5036 = vsel %vm5012, %v3868, 0.0
        %v5037 = vsel %vm5013, %v3869, 0.0
        %v5038 = vsel %vm5014, %v3870, 0.0
        %v5039 = vsel %vm5015, %v3871, 0.0
        %v5040 = vsel %vm5016, %v3872, 0.0
        %v5041 = vsel %vm5017, %v3873, 0.0
        %v5042 = vsel %vm5018, %v3874, 0.0
        %v5043 = vsel %vm5019, %v3875, 0.0
        %v5044 = vsel %vm5020, %v3876, 0.0
        %v5045 = vsel %vm5021, %v3877, 0.0
        %v5046 = vsel %vm5022, %v3878, 0.0
        %v5047 = vsel %vm5023, %v3879, 0.0
        %v5048 = vsel %vm5024, %v3880, 0.0
        %v5049 = vsel %vm5025, %v3881, 0.0
        %v5050 = vsel %vm5026, %v3882, 0.0
        %v5051 = vsel %vm5027, %v3883, 0.0
        %v5052 = vsel %vm5028, %v3884, 0.0
        %v5053 = vsel %vm5029, %v3885, 0.0
        %v5054 = vmax.f32 %v5030, %v5034
        %v5055 = vmax.f32 %v5031, %v5035
        %v5056 = vmax.f32 %v5032, %v5036
        %v5057 = vmax.f32 %v5033, %v5037
        %v5058 = vmax.f32 %v5054, %v5038
        %v5059 = vmax.f32 %v5055, %v5039
        %v5060 = vmax.f32 %v5056, %v5040
        %v5061 = vmax.f32 %v5057, %v5041
        %v5062 = vmax.f32 %v5058, %v5042
        %v5063 = vmax.f32 %v5059, %v5043
        %v5064 = vmax.f32 %v5060, %v5044
        %v5065 = vmax.f32 %v5061, %v5045
        %v5066 = vmax.f32 %v5062, %v5046
        %v5067 = vmax.f32 %v5063, %v5047
        %v5068 = vmax.f32 %v5064, %v5048
        %v5069 = vmax.f32 %v5065, %v5049
        %v5070 = vmax.f32 %v5066, %v5050
        %v5071 = vmax.f32 %v5067, %v5051
        %v5072 = vmax.f32 %v5068, %v5052
        %v5073 = vmax.f32 %v5069, %v5053
        %v5074 = vmax.f32 %v5070, %v5071
        %v5075 = vmax.f32 %v5072, %v5073
        %v5076 = vmax.f32 %v5074, %v5075
        %v5077 = vrot.slane %v5076, 4
        %v5078 = vmax.f32 %v5076, %v5077
        %v5079 = vrot.slane %v5078, 2
        %v5080 = vmax.f32 %v5078, %v5079
        %v5081 = vrot.slane %v5080, 1
        %v5082 = vmax.f32 %v5080, %v5081
        %v5083 = vld [vmem:[#allocation2 + $0x5] sm:$0x1]
        %v5084 = vmax.f32 %v5083, %v5082
        %5085 = vst [vmem:[#allocation2 + $0x5] sm:$0x1] %v5084
        %vm5086 = vcmp.eq.f32.partialorder %v332, 6.0
        %vm5087 = vcmp.eq.f32.partialorder %v333, 6.0
        %vm5088 = vcmp.eq.f32.partialorder %v334, 6.0
        %vm5089 = vcmp.eq.f32.partialorder %v335, 6.0
        %vm5090 = vcmp.eq.f32.partialorder %v336, 6.0
        %vm5091 = vcmp.eq.f32.partialorder %v337, 6.0
        %vm5092 = vcmp.eq.f32.partialorder %v338, 6.0
        %vm5093 = vcmp.eq.f32.partialorder %v339, 6.0
        %vm5094 = vcmp.eq.f32.partialorder %v340, 6.0
        %vm5095 = vcmp.eq.f32.partialorder %v341, 6.0
        %vm5096 = vcmp.eq.f32.partialorder %v342, 6.0
        %vm5097 = vcmp.eq.f32.partialorder %v343, 6.0
        %vm5098 = vcmp.eq.f32.partialorder %v344, 6.0
        %vm5099 = vcmp.eq.f32.partialorder %v345, 6.0
        %vm5100 = vcmp.eq.f32.partialorder %v346, 6.0
        %vm5101 = vcmp.eq.f32.partialorder %v347, 6.0
        %vm5102 = vcmp.eq.f32.partialorder %v348, 6.0
        %vm5103 = vcmp.eq.f32.partialorder %v349, 6.0
        %vm5104 = vcmp.eq.f32.partialorder %v350, 6.0
        %vm5105 = vcmp.eq.f32.partialorder %v351, 6.0
        %vm5106 = vcmp.eq.f32.partialorder %v352, 6.0
        %vm5107 = vcmp.eq.f32.partialorder %v353, 6.0
        %vm5108 = vcmp.eq.f32.partialorder %v354, 6.0
        %vm5109 = vcmp.eq.f32.partialorder %v355, 6.0
        %v5110 = vsel %vm5086, 1, 0
        %v5111 = vsel %vm5087, 1, 0
        %v5112 = vsel %vm5088, 1, 0
        %v5113 = vsel %vm5089, 1, 0
        %v5114 = vsel %vm5090, 1, 0
        %v5115 = vsel %vm5091, 1, 0
        %v5116 = vsel %vm5092, 1, 0
        %v5117 = vsel %vm5093, 1, 0
        %v5118 = vsel %vm5094, 1, 0
        %v5119 = vsel %vm5095, 1, 0
        %v5120 = vsel %vm5096, 1, 0
        %v5121 = vsel %vm5097, 1, 0
        %v5122 = vsel %vm5098, 1, 0
        %v5123 = vsel %vm5099, 1, 0
        %v5124 = vsel %vm5100, 1, 0
        %v5125 = vsel %vm5101, 1, 0
        %v5126 = vsel %vm5102, 1, 0
        %v5127 = vsel %vm5103, 1, 0
        %v5128 = vsel %vm5104, 1, 0
        %v5129 = vsel %vm5105, 1, 0
        %v5130 = vsel %vm5106, 1, 0
        %v5131 = vsel %vm5107, 1, 0
        %v5132 = vsel %vm5108, 1, 0
        %v5133 = vsel %vm5109, 1, 0
        %5134 = vset.pattern.permute.xlu0 3
        %5135 = vperm.xlu0 %5134, %v5110
        %v5136 = vpop.permute.xlu0 %5135
        %5137 = vset.pattern.permute.xlu0 3
        %5138 = vperm.xlu0 %5137, %v5111
        %v5139 = vpop.permute.xlu0 %5138
        %5140 = vset.pattern.permute.xlu0 3
        %5141 = vperm.xlu0 %5140, %v5112
        %v5142 = vpop.permute.xlu0 %5141
        %5143 = vset.pattern.permute.xlu0 3
        %5144 = vperm.xlu0 %5143, %v5113
        %v5145 = vpop.permute.xlu0 %5144
        %5146 = vset.pattern.permute.xlu0 3
        %5147 = vperm.xlu0 %5146, %v5114
        %v5148 = vpop.permute.xlu0 %5147
        %5149 = vset.pattern.permute.xlu0 3
        %5150 = vperm.xlu0 %5149, %v5115
        %v5151 = vpop.permute.xlu0 %5150
        %5152 = vset.pattern.permute.xlu0 3
        %5153 = vperm.xlu0 %5152, %v5116
        %v5154 = vpop.permute.xlu0 %5153
        %5155 = vset.pattern.permute.xlu0 3
        %5156 = vperm.xlu0 %5155, %v5117
        %v5157 = vpop.permute.xlu0 %5156
        %5158 = vset.pattern.permute.xlu0 3
        %5159 = vperm.xlu0 %5158, %v5118
        %v5160 = vpop.permute.xlu0 %5159
        %5161 = vset.pattern.permute.xlu0 3
        %5162 = vperm.xlu0 %5161, %v5119
        %v5163 = vpop.permute.xlu0 %5162
        %5164 = vset.pattern.permute.xlu0 3
        %5165 = vperm.xlu0 %5164, %v5120
        %v5166 = vpop.permute.xlu0 %5165
        %5167 = vset.pattern.permute.xlu0 3
        %5168 = vperm.xlu0 %5167, %v5121
        %v5169 = vpop.permute.xlu0 %5168
        %5170 = vset.pattern.permute.xlu0 3
        %5171 = vperm.xlu0 %5170, %v5122
        %v5172 = vpop.permute.xlu0 %5171
        %5173 = vset.pattern.permute.xlu0 3
        %5174 = vperm.xlu0 %5173, %v5123
        %v5175 = vpop.permute.xlu0 %5174
        %5176 = vset.pattern.permute.xlu0 3
        %5177 = vperm.xlu0 %5176, %v5124
        %v5178 = vpop.permute.xlu0 %5177
        %5179 = vset.pattern.permute.xlu0 3
        %5180 = vperm.xlu0 %5179, %v5125
        %v5181 = vpop.permute.xlu0 %5180
        %5182 = vset.pattern.permute.xlu0 3
        %5183 = vperm.xlu0 %5182, %v5126
        %v5184 = vpop.permute.xlu0 %5183
        %5185 = vset.pattern.permute.xlu0 3
        %5186 = vperm.xlu0 %5185, %v5127
        %v5187 = vpop.permute.xlu0 %5186
        %5188 = vset.pattern.permute.xlu0 3
        %5189 = vperm.xlu0 %5188, %v5128
        %v5190 = vpop.permute.xlu0 %5189
        %5191 = vset.pattern.permute.xlu0 3
        %5192 = vperm.xlu0 %5191, %v5129
        %v5193 = vpop.permute.xlu0 %5192
        %5194 = vset.pattern.permute.xlu0 3
        %5195 = vperm.xlu0 %5194, %v5130
        %v5196 = vpop.permute.xlu0 %5195
        %5197 = vset.pattern.permute.xlu0 3
        %5198 = vperm.xlu0 %5197, %v5131
        %v5199 = vpop.permute.xlu0 %5198
        %5200 = vset.pattern.permute.xlu0 3
        %5201 = vperm.xlu0 %5200, %v5132
        %v5202 = vpop.permute.xlu0 %5201
        %5203 = vset.pattern.permute.xlu0 3
        %5204 = vperm.xlu0 %5203, %v5133
        %v5205 = vpop.permute.xlu0 %5204
        %vm5206 = vcmp.eq.s32.totalorder %v5136, 1
        %vm5207 = vcmp.eq.s32.totalorder %v5139, 1
        %vm5208 = vcmp.eq.s32.totalorder %v5142, 1
        %vm5209 = vcmp.eq.s32.totalorder %v5145, 1
        %vm5210 = vcmp.eq.s32.totalorder %v5148, 1
        %vm5211 = vcmp.eq.s32.totalorder %v5151, 1
        %vm5212 = vcmp.eq.s32.totalorder %v5154, 1
        %vm5213 = vcmp.eq.s32.totalorder %v5157, 1
        %vm5214 = vcmp.eq.s32.totalorder %v5160, 1
        %vm5215 = vcmp.eq.s32.totalorder %v5163, 1
        %vm5216 = vcmp.eq.s32.totalorder %v5166, 1
        %vm5217 = vcmp.eq.s32.totalorder %v5169, 1
        %vm5218 = vcmp.eq.s32.totalorder %v5172, 1
        %vm5219 = vcmp.eq.s32.totalorder %v5175, 1
        %vm5220 = vcmp.eq.s32.totalorder %v5178, 1
        %vm5221 = vcmp.eq.s32.totalorder %v5181, 1
        %vm5222 = vcmp.eq.s32.totalorder %v5184, 1
        %vm5223 = vcmp.eq.s32.totalorder %v5187, 1
        %vm5224 = vcmp.eq.s32.totalorder %v5190, 1
        %vm5225 = vcmp.eq.s32.totalorder %v5193, 1
        %vm5226 = vcmp.eq.s32.totalorder %v5196, 1
        %vm5227 = vcmp.eq.s32.totalorder %v5199, 1
        %vm5228 = vcmp.eq.s32.totalorder %v5202, 1
        %vm5229 = vcmp.eq.s32.totalorder %v5205, 1
        %v5230 = vsel %vm5206, %v3862, 0.0
        %v5231 = vsel %vm5207, %v3863, 0.0
        %v5232 = vsel %vm5208, %v3864, 0.0
        %v5233 = vsel %vm5209, %v3865, 0.0
        %v5234 = vsel %vm5210, %v3866, 0.0
        %v5235 = vsel %vm5211, %v3867, 0.0
        %v5236 = vsel %vm5212, %v3868, 0.0
        %v5237 = vsel %vm5213, %v3869, 0.0
        %v5238 = vsel %vm5214, %v3870, 0.0
        %v5239 = vsel %vm5215, %v3871, 0.0
        %v5240 = vsel %vm5216, %v3872, 0.0
        %v5241 = vsel %vm5217, %v3873, 0.0
        %v5242 = vsel %vm5218, %v3874, 0.0
        %v5243 = vsel %vm5219, %v3875, 0.0
        %v5244 = vsel %vm5220, %v3876, 0.0
        %v5245 = vsel %vm5221, %v3877, 0.0
        %v5246 = vsel %vm5222, %v3878, 0.0
        %v5247 = vsel %vm5223, %v3879, 0.0
        %v5248 = vsel %vm5224, %v3880, 0.0
        %v5249 = vsel %vm5225, %v3881, 0.0
        %v5250 = vsel %vm5226, %v3882, 0.0
        %v5251 = vsel %vm5227, %v3883, 0.0
        %v5252 = vsel %vm5228, %v3884, 0.0
        %v5253 = vsel %vm5229, %v3885, 0.0
        %v5254 = vmax.f32 %v5230, %v5234
        %v5255 = vmax.f32 %v5231, %v5235
        %v5256 = vmax.f32 %v5232, %v5236
        %v5257 = vmax.f32 %v5233, %v5237
        %v5258 = vmax.f32 %v5254, %v5238
        %v5259 = vmax.f32 %v5255, %v5239
        %v5260 = vmax.f32 %v5256, %v5240
        %v5261 = vmax.f32 %v5257, %v5241
        %v5262 = vmax.f32 %v5258, %v5242
        %v5263 = vmax.f32 %v5259, %v5243
        %v5264 = vmax.f32 %v5260, %v5244
        %v5265 = vmax.f32 %v5261, %v5245
        %v5266 = vmax.f32 %v5262, %v5246
        %v5267 = vmax.f32 %v5263, %v5247
        %v5268 = vmax.f32 %v5264, %v5248
        %v5269 = vmax.f32 %v5265, %v5249
        %v5270 = vmax.f32 %v5266, %v5250
        %v5271 = vmax.f32 %v5267, %v5251
        %v5272 = vmax.f32 %v5268, %v5252
        %v5273 = vmax.f32 %v5269, %v5253
        %v5274 = vmax.f32 %v5270, %v5271
        %v5275 = vmax.f32 %v5272, %v5273
        %v5276 = vmax.f32 %v5274, %v5275
        %v5277 = vrot.slane %v5276, 4
        %v5278 = vmax.f32 %v5276, %v5277
        %v5279 = vrot.slane %v5278, 2
        %v5280 = vmax.f32 %v5278, %v5279
        %v5281 = vrot.slane %v5280, 1
        %v5282 = vmax.f32 %v5280, %v5281
        %v5283 = vld [vmem:[#allocation2 + $0x6] sm:$0x1]
        %v5284 = vmax.f32 %v5283, %v5282
        %5285 = vst [vmem:[#allocation2 + $0x6] sm:$0x1] %v5284
        %vm5286 = vcmp.eq.f32.partialorder %v332, 7.0
        %vm5287 = vcmp.eq.f32.partialorder %v333, 7.0
        %vm5288 = vcmp.eq.f32.partialorder %v334, 7.0
        %vm5289 = vcmp.eq.f32.partialorder %v335, 7.0
        %vm5290 = vcmp.eq.f32.partialorder %v336, 7.0
        %vm5291 = vcmp.eq.f32.partialorder %v337, 7.0
        %vm5292 = vcmp.eq.f32.partialorder %v338, 7.0
        %vm5293 = vcmp.eq.f32.partialorder %v339, 7.0
        %vm5294 = vcmp.eq.f32.partialorder %v340, 7.0
        %vm5295 = vcmp.eq.f32.partialorder %v341, 7.0
        %vm5296 = vcmp.eq.f32.partialorder %v342, 7.0
        %vm5297 = vcmp.eq.f32.partialorder %v343, 7.0
        %vm5298 = vcmp.eq.f32.partialorder %v344, 7.0
        %vm5299 = vcmp.eq.f32.partialorder %v345, 7.0
        %vm5300 = vcmp.eq.f32.partialorder %v346, 7.0
        %vm5301 = vcmp.eq.f32.partialorder %v347, 7.0
        %vm5302 = vcmp.eq.f32.partialorder %v348, 7.0
        %vm5303 = vcmp.eq.f32.partialorder %v349, 7.0
        %vm5304 = vcmp.eq.f32.partialorder %v350, 7.0
        %vm5305 = vcmp.eq.f32.partialorder %v351, 7.0
        %vm5306 = vcmp.eq.f32.partialorder %v352, 7.0
        %vm5307 = vcmp.eq.f32.partialorder %v353, 7.0
        %vm5308 = vcmp.eq.f32.partialorder %v354, 7.0
        %vm5309 = vcmp.eq.f32.partialorder %v355, 7.0
        %v5310 = vsel %vm5286, 1, 0
        %v5311 = vsel %vm5287, 1, 0
        %v5312 = vsel %vm5288, 1, 0
        %v5313 = vsel %vm5289, 1, 0
        %v5314 = vsel %vm5290, 1, 0
        %v5315 = vsel %vm5291, 1, 0
        %v5316 = vsel %vm5292, 1, 0
        %v5317 = vsel %vm5293, 1, 0
        %v5318 = vsel %vm5294, 1, 0
        %v5319 = vsel %vm5295, 1, 0
        %v5320 = vsel %vm5296, 1, 0
        %v5321 = vsel %vm5297, 1, 0
        %v5322 = vsel %vm5298, 1, 0
        %v5323 = vsel %vm5299, 1, 0
        %v5324 = vsel %vm5300, 1, 0
        %v5325 = vsel %vm5301, 1, 0
        %v5326 = vsel %vm5302, 1, 0
        %v5327 = vsel %vm5303, 1, 0
        %v5328 = vsel %vm5304, 1, 0
        %v5329 = vsel %vm5305, 1, 0
        %v5330 = vsel %vm5306, 1, 0
        %v5331 = vsel %vm5307, 1, 0
        %v5332 = vsel %vm5308, 1, 0
        %v5333 = vsel %vm5309, 1, 0
        %5334 = vset.pattern.permute.xlu0 3
        %5335 = vperm.xlu0 %5334, %v5310
        %v5336 = vpop.permute.xlu0 %5335
        %5337 = vset.pattern.permute.xlu0 3
        %5338 = vperm.xlu0 %5337, %v5311
        %v5339 = vpop.permute.xlu0 %5338
        %5340 = vset.pattern.permute.xlu0 3
        %5341 = vperm.xlu0 %5340, %v5312
        %v5342 = vpop.permute.xlu0 %5341
        %5343 = vset.pattern.permute.xlu0 3
        %5344 = vperm.xlu0 %5343, %v5313
        %v5345 = vpop.permute.xlu0 %5344
        %5346 = vset.pattern.permute.xlu0 3
        %5347 = vperm.xlu0 %5346, %v5314
        %v5348 = vpop.permute.xlu0 %5347
        %5349 = vset.pattern.permute.xlu0 3
        %5350 = vperm.xlu0 %5349, %v5315
        %v5351 = vpop.permute.xlu0 %5350
        %5352 = vset.pattern.permute.xlu0 3
        %5353 = vperm.xlu0 %5352, %v5316
        %v5354 = vpop.permute.xlu0 %5353
        %5355 = vset.pattern.permute.xlu0 3
        %5356 = vperm.xlu0 %5355, %v5317
        %v5357 = vpop.permute.xlu0 %5356
        %5358 = vset.pattern.permute.xlu0 3
        %5359 = vperm.xlu0 %5358, %v5318
        %v5360 = vpop.permute.xlu0 %5359
        %5361 = vset.pattern.permute.xlu0 3
        %5362 = vperm.xlu0 %5361, %v5319
        %v5363 = vpop.permute.xlu0 %5362
        %5364 = vset.pattern.permute.xlu0 3
        %5365 = vperm.xlu0 %5364, %v5320
        %v5366 = vpop.permute.xlu0 %5365
        %5367 = vset.pattern.permute.xlu0 3
        %5368 = vperm.xlu0 %5367, %v5321
        %v5369 = vpop.permute.xlu0 %5368
        %5370 = vset.pattern.permute.xlu0 3
        %5371 = vperm.xlu0 %5370, %v5322
        %v5372 = vpop.permute.xlu0 %5371
        %5373 = vset.pattern.permute.xlu0 3
        %5374 = vperm.xlu0 %5373, %v5323
        %v5375 = vpop.permute.xlu0 %5374
        %5376 = vset.pattern.permute.xlu0 3
        %5377 = vperm.xlu0 %5376, %v5324
        %v5378 = vpop.permute.xlu0 %5377
        %5379 = vset.pattern.permute.xlu0 3
        %5380 = vperm.xlu0 %5379, %v5325
        %v5381 = vpop.permute.xlu0 %5380
        %5382 = vset.pattern.permute.xlu0 3
        %5383 = vperm.xlu0 %5382, %v5326
        %v5384 = vpop.permute.xlu0 %5383
        %5385 = vset.pattern.permute.xlu0 3
        %5386 = vperm.xlu0 %5385, %v5327
        %v5387 = vpop.permute.xlu0 %5386
        %5388 = vset.pattern.permute.xlu0 3
        %5389 = vperm.xlu0 %5388, %v5328
        %v5390 = vpop.permute.xlu0 %5389
        %5391 = vset.pattern.permute.xlu0 3
        %5392 = vperm.xlu0 %5391, %v5329
        %v5393 = vpop.permute.xlu0 %5392
        %5394 = vset.pattern.permute.xlu0 3
        %5395 = vperm.xlu0 %5394, %v5330
        %v5396 = vpop.permute.xlu0 %5395
        %5397 = vset.pattern.permute.xlu0 3
        %5398 = vperm.xlu0 %5397, %v5331
        %v5399 = vpop.permute.xlu0 %5398
        %5400 = vset.pattern.permute.xlu0 3
        %5401 = vperm.xlu0 %5400, %v5332
        %v5402 = vpop.permute.xlu0 %5401
        %5403 = vset.pattern.permute.xlu0 3
        %5404 = vperm.xlu0 %5403, %v5333
        %v5405 = vpop.permute.xlu0 %5404
        %vm5406 = vcmp.eq.s32.totalorder %v5336, 1
        %vm5407 = vcmp.eq.s32.totalorder %v5339, 1
        %vm5408 = vcmp.eq.s32.totalorder %v5342, 1
        %vm5409 = vcmp.eq.s32.totalorder %v5345, 1
        %vm5410 = vcmp.eq.s32.totalorder %v5348, 1
        %vm5411 = vcmp.eq.s32.totalorder %v5351, 1
        %vm5412 = vcmp.eq.s32.totalorder %v5354, 1
        %vm5413 = vcmp.eq.s32.totalorder %v5357, 1
        %vm5414 = vcmp.eq.s32.totalorder %v5360, 1
        %vm5415 = vcmp.eq.s32.totalorder %v5363, 1
        %vm5416 = vcmp.eq.s32.totalorder %v5366, 1
        %vm5417 = vcmp.eq.s32.totalorder %v5369, 1
        %vm5418 = vcmp.eq.s32.totalorder %v5372, 1
        %vm5419 = vcmp.eq.s32.totalorder %v5375, 1
        %vm5420 = vcmp.eq.s32.totalorder %v5378, 1
        %vm5421 = vcmp.eq.s32.totalorder %v5381, 1
        %vm5422 = vcmp.eq.s32.totalorder %v5384, 1
        %vm5423 = vcmp.eq.s32.totalorder %v5387, 1
        %vm5424 = vcmp.eq.s32.totalorder %v5390, 1
        %vm5425 = vcmp.eq.s32.totalorder %v5393, 1
        %vm5426 = vcmp.eq.s32.totalorder %v5396, 1
        %vm5427 = vcmp.eq.s32.totalorder %v5399, 1
        %vm5428 = vcmp.eq.s32.totalorder %v5402, 1
        %vm5429 = vcmp.eq.s32.totalorder %v5405, 1
        %v5430 = vsel %vm5406, %v3862, 0.0
        %v5431 = vsel %vm5407, %v3863, 0.0
        %v5432 = vsel %vm5408, %v3864, 0.0
        %v5433 = vsel %vm5409, %v3865, 0.0
        %v5434 = vsel %vm5410, %v3866, 0.0
        %v5435 = vsel %vm5411, %v3867, 0.0
        %v5436 = vsel %vm5412, %v3868, 0.0
        %v5437 = vsel %vm5413, %v3869, 0.0
        %v5438 = vsel %vm5414, %v3870, 0.0
        %v5439 = vsel %vm5415, %v3871, 0.0
        %v5440 = vsel %vm5416, %v3872, 0.0
        %v5441 = vsel %vm5417, %v3873, 0.0
        %v5442 = vsel %vm5418, %v3874, 0.0
        %v5443 = vsel %vm5419, %v3875, 0.0
        %v5444 = vsel %vm5420, %v3876, 0.0
        %v5445 = vsel %vm5421, %v3877, 0.0
        %v5446 = vsel %vm5422, %v3878, 0.0
        %v5447 = vsel %vm5423, %v3879, 0.0
        %v5448 = vsel %vm5424, %v3880, 0.0
        %v5449 = vsel %vm5425, %v3881, 0.0
        %v5450 = vsel %vm5426, %v3882, 0.0
        %v5451 = vsel %vm5427, %v3883, 0.0
        %v5452 = vsel %vm5428, %v3884, 0.0
        %v5453 = vsel %vm5429, %v3885, 0.0
        %v5454 = vmax.f32 %v5430, %v5434
        %v5455 = vmax.f32 %v5431, %v5435
        %v5456 = vmax.f32 %v5432, %v5436
        %v5457 = vmax.f32 %v5433, %v5437
        %v5458 = vmax.f32 %v5454, %v5438
        %v5459 = vmax.f32 %v5455, %v5439
        %v5460 = vmax.f32 %v5456, %v5440
        %v5461 = vmax.f32 %v5457, %v5441
        %v5462 = vmax.f32 %v5458, %v5442
        %v5463 = vmax.f32 %v5459, %v5443
        %v5464 = vmax.f32 %v5460, %v5444
        %v5465 = vmax.f32 %v5461, %v5445
        %v5466 = vmax.f32 %v5462, %v5446
        %v5467 = vmax.f32 %v5463, %v5447
        %v5468 = vmax.f32 %v5464, %v5448
        %v5469 = vmax.f32 %v5465, %v5449
        %v5470 = vmax.f32 %v5466, %v5450
        %v5471 = vmax.f32 %v5467, %v5451
        %v5472 = vmax.f32 %v5468, %v5452
        %v5473 = vmax.f32 %v5469, %v5453
        %v5474 = vmax.f32 %v5470, %v5471
        %v5475 = vmax.f32 %v5472, %v5473
        %v5476 = vmax.f32 %v5474, %v5475
        %v5477 = vrot.slane %v5476, 4
        %v5478 = vmax.f32 %v5476, %v5477
        %v5479 = vrot.slane %v5478, 2
        %v5480 = vmax.f32 %v5478, %v5479
        %v5481 = vrot.slane %v5480, 1
        %v5482 = vmax.f32 %v5480, %v5481
        %v5483 = vld [vmem:[#allocation2 + $0x7] sm:$0x1]
        %v5484 = vmax.f32 %v5483, %v5482
        %5485 = vst [vmem:[#allocation2 + $0x7] sm:$0x1] %v5484
        %s5486 = sld [smem:[#allocation6 + %s39]]
        %p5487 = scmp.eq.s32.totalorder %s5486, 1
        // Predicated region
        $region57: #{tpu_custom_call.1} parent=51 // pred_check
          %p5488 = pneg %p5487
        $region58: #{tpu_custom_call.1} parent=51 // pred_check_branch
          %5490 = sbr.rel (%p5488) target = $region60
        $region59: #{tpu_custom_call.1} parent=51 // pred_region
          %v5491 = vld [vmem:[#allocation2] sm:$0xff]
          %v5492 = vld [vmem:[%s9] sm:$0xff]
          %v5493 = vld [vmem:[%s9 + $0x8] sm:$0xff]
          %v5494 = vld [vmem:[%s9 + $0x10] sm:$0xff]
          %v5495 = vld [vmem:[%s9 + $0x18] sm:$0xff]
          %v5496 = vld [vmem:[%s9 + $0x20] sm:$0xff]
          %v5497 = vld [vmem:[%s9 + $0x28] sm:$0xff]
          %v5498 = vld [vmem:[%s9 + $0x30] sm:$0xff]
          %v5499 = vld [vmem:[%s9 + $0x38] sm:$0xff]
          %v5500 = vld [vmem:[%s9 + $0x40] sm:$0xff]
          %v5501 = vld [vmem:[%s9 + $0x48] sm:$0xff]
          %v5502 = vld [vmem:[%s9 + $0x50] sm:$0xff]
          %v5503 = vld [vmem:[%s9 + $0x58] sm:$0xff]
          %v5504 = vld [vmem:[%s9 + $0x60] sm:$0xff]
          %v5505 = vld [vmem:[%s9 + $0x68] sm:$0xff]
          %v5506 = vld [vmem:[%s9 + $0x70] sm:$0xff]
          %v5507 = vld [vmem:[%s9 + $0x78] sm:$0xff]
          %v5508 = vld [vmem:[%s10] sm:$0x1]
          %v5510 = vlaneseq
          %v5511 = vshrl.u32 %v5510, 7
          %v5512 = vsub.s32 0, %v5511
          %v5513 = vrot.slane %v5508, %v5512
          %5515 = vmatprep.subr.mxu0 0.0
          %5516 = vmatpush1.msra.mxu0 %v5492
          %5517 = vmatprep.subr.mxu0 0.0
          %5518 = vmatpush1.msra.mxu0 %v5493
          %5519 = vmatprep.subr.mxu0 0.0
          %5520 = vmatpush1.msra.mxu0 %v5494
          %5521 = vmatprep.subr.mxu0 0.0
          %5522 = vmatpush1.msra.mxu0 %v5495
          %5523 = vmatprep.subr.mxu0 0.0
          %5524 = vmatpush1.msra.mxu0 %v5496
          %5525 = vmatprep.subr.mxu0 0.0
          %5526 = vmatpush1.msra.mxu0 %v5497
          %5527 = vmatprep.subr.mxu0 0.0
          %5528 = vmatpush1.msra.mxu0 %v5498
          %5529 = vmatprep.subr.mxu0 0.0
          %5530 = vmatpush1.msra.mxu0 %v5499
          %5531 = vmatprep.subr.mxu0 0.0
          %5532 = vmatpush1.msra.mxu0 %v5500
          %5533 = vmatprep.subr.mxu0 0.0
          %5534 = vmatpush1.msra.mxu0 %v5501
          %5535 = vmatprep.subr.mxu0 0.0
          %5536 = vmatpush1.msra.mxu0 %v5502
          %5537 = vmatprep.subr.mxu0 0.0
          %5538 = vmatpush1.msra.mxu0 %v5503
          %5539 = vmatprep.subr.mxu0 0.0
          %5540 = vmatpush1.msra.mxu0 %v5504
          %5541 = vmatprep.subr.mxu0 0.0
          %5542 = vmatpush1.msra.mxu0 %v5505
          %5543 = vmatprep.subr.mxu0 0.0
          %5544 = vmatpush1.msra.mxu0 %v5506
          %5545 = vmatprep.subr.mxu0 0.0
          %5546 = vmatpush1.msra.mxu0 %v5507
          %5547 = vmatprep.subr.mxu0 0.0
          %5548 = vmatpush1.msra.mxu0 0.0
          %5549 = vmatprep.subr.mxu0 0.0
          %5550 = vmatpush1.msra.mxu0 0.0
          %5551 = vmatprep.subr.mxu0 0.0
          %5552 = vmatpush1.msra.mxu0 0.0
          %5553 = vmatprep.subr.mxu0 0.0
          %5554 = vmatpush1.msra.mxu0 0.0
          %5555 = vmatprep.subr.mxu0 0.0
          %5556 = vmatpush1.msra.mxu0 0.0
          %5557 = vmatprep.subr.mxu0 0.0
          %5558 = vmatpush1.msra.mxu0 0.0
          %5559 = vmatprep.subr.mxu0 0.0
          %5560 = vmatpush1.msra.mxu0 0.0
          %5561 = vmatprep.subr.mxu0 0.0
          %5562 = vmatpush1.msra.mxu0 0.0
          %5563 = vmatprep.subr.mxu0 0.0
          %5564 = vmatpush1.msra.mxu0 0.0
          %5565 = vmatprep.subr.mxu0 0.0
          %5566 = vmatpush1.msra.mxu0 0.0
          %5567 = vmatprep.subr.mxu0 0.0
          %5568 = vmatpush1.msra.mxu0 0.0
          %5569 = vmatprep.subr.mxu0 0.0
          %5570 = vmatpush1.msra.mxu0 0.0
          %5571 = vmatprep.subr.mxu0 0.0
          %5572 = vmatpush1.msra.mxu0 0.0
          %5573 = vmatprep.subr.mxu0 0.0
          %5574 = vmatpush1.msra.mxu0 0.0
          %5575 = vmatprep.subr.mxu0 0.0
          %5576 = vmatpush1.msra.mxu0 0.0
          %5577 = vmatprep.subr.mxu0 0.0
          %5578 = vmatpush1.msra.mxu0 0.0
          %5579 = vmatprep.mubr.f32.mxu0 0.0
          %5580 = vmatmul.mubr.f32.gmra.mrb[0].mxu0 %v5491
          %v5581 = vpop.f32.mrb[0].mxu0
          %v5582 = vadd.f32 %v5513, %v5581
          %v5583 = vpop.f32.mrb[0].mxu0
          %5584 = vdwg.mxu0
          %5585 = vst [vmem:[%s318] sm:$0xff] %v5582
        $region60: #{tpu_custom_call.1} parent=51 // pred_fallthru
          _
        %s5586 = sand.u32 %s222, 1
        %s5587 = scalar_lea.sflag [#allocation8], %s5586
        %s5588 = sand.u32 %s222, 1
        %s5589 = smul.addr %s5588, 8
        %s5590 = scalar_lea.vmem [#allocation7], %s5589
        // Predicated region
        $region61: #{tpu_custom_call.1} parent=51 // pred_check
          %p5591 = pneg %p232
        $region62: #{tpu_custom_call.1} parent=51 // pred_check_branch
          %5593 = sbr.rel (%p5591) target = $region64
        $region63: #{tpu_custom_call.1} parent=51 // pred_region
          %s5594 = sld [smem:[#allocation4 + %s39]]
          %s5596 = ssub.s32 128, 128
          %5597 = vsyncadd %s5587, %s5596
          %s5598 = smul.addr %s5594, 128
          %s5599 = scalar_lea.hbm %s11, %s5598
          %s5601 = sshll.u32 %s5590, 4
          %s5602 = int_to_ptr.vmem [resolvable:$true] %s5601
          %5604 = dma.vmem_to_hbm [thread:$0]  %s5602, 128, %s5599, %s5587
        $region64: #{tpu_custom_call.1} parent=51 // pred_fallthru
          _
      $region52: #{tpu_custom_call.1} parent=5 // pred_fallthru
        _
      %p5605 = scmp.le.s32.totalorder 2, %s34
      // Predicated region
      $region65: #{tpu_custom_call.1} parent=5 // pred_check
        %p5606 = pneg %p5605
      $region66: #{tpu_custom_call.1} parent=5 // pred_check_branch
        %5608 = sbr.rel (%p5606) target = $region68
      $region67: #{tpu_custom_call.1} parent=5 // pred_region
        %s5609 = ssub.s32 %s34, 2
        // Predicated region
        $region69: #{tpu_custom_call.1} parent=67 // pred_check
          %p5610 = pneg %p238
        $region70: #{tpu_custom_call.1} parent=67 // pred_check_branch
          %5612 = sbr.rel (%p5610) target = $region72
        $region71: #{tpu_custom_call.1} parent=67 // pred_region
          %s5613 = sand.u32 %s223, 1
          %s5614 = scalar_lea.sflag [#allocation8], %s5613
          %s5615 = sand.u32 %s223, 1
          %s5616 = smul.addr %s5615, 8
          %s5617 = scalar_lea.vmem [#allocation7], %s5616
          %5618 = dma.done %s5614, 128
        $region72: #{tpu_custom_call.1} parent=67 // pred_fallthru
          _
      $region68: #{tpu_custom_call.1} parent=5 // pred_fallthru
        _
    $region6: #{tpu_custom_call.1} parent=1 // loop_footer
      %s38 = sadd.s32 1, %s34
    $region7: #{tpu_custom_call.1} parent=1 // loop_footer_branch
      %33 = sbr.rel target = $region3
    $region8: #{tpu_custom_call.1} parent=1 // loop_exit
      _
    %5619 = vsyncpa [#allocation8], 1
    %s5620 = scalar_lea.sflag [#allocation8], 1
    %5621 = vsyncpa %s5620, 1

</llo_original>
